<compile_context>
chip_gen: v5e
topology: v5e:2x2
jax: 0.10.0
libtpu: 0.0.40
codegen_flags: <defaults>
</compile_context>

<pallas_src>
import numpy as np
import jax
import jax.numpy as jnp
from jax.experimental import pallas as pl
from jax.experimental.pallas import tpu as pltpu


def _bilinear_matrix(in_size, out_size):
    """Row-interpolation matrix for bilinear upsampling with align_corners=True."""
    if out_size == 1:
        src = np.zeros((1,), np.float64)
    else:
        src = np.arange(out_size, dtype=np.float64) * (in_size - 1) / (out_size - 1)
    lo = np.floor(src).astype(np.int64)
    lo = np.clip(lo, 0, in_size - 1)
    hi = np.minimum(lo + 1, in_size - 1)
    frac = src - lo
    A = np.zeros((out_size, in_size), np.float64)
    A[np.arange(out_size), lo] += (1.0 - frac)
    A[np.arange(out_size), hi] += frac
    return A.astype(np.float32)


def _conv_head_kernel(x_ref, nz_ref, w1_ref, bnb_ref, w2_ref, b2_ref,
                      lg_ref, xpad_ref):
    """Feature noise + 3x3 conv (9 accumulated matmuls) + folded BN + ReLU + 1x1 conv."""
    _, H, W, C = x_ref.shape
    Cmid = w1_ref.shape[2]
    K = w2_ref.shape[1]

    # ---- stage noisy input into a zero-framed (H+2, W+2, C) bf16 scratch ----
    # Noise multiply in f32 (v5e has no bf16 VPU), store bf16.
    xn = (x_ref[0].astype(jnp.float32) * nz_ref[0].astype(jnp.float32)
          ).astype(xpad_ref.dtype)
    # Zero only the 1-pixel border frame (interior is fully overwritten).
    xpad_ref[0:1, :, :] = jnp.zeros((1, W + 2, C), xpad_ref.dtype)
    xpad_ref[H + 1:H + 2, :, :] = jnp.zeros((1, W + 2, C), xpad_ref.dtype)
    xpad_ref[:, 0:1, :] = jnp.zeros((H + 2, 1, C), xpad_ref.dtype)
    xpad_ref[:, W + 1:W + 2, :] = jnp.zeros((H + 2, 1, C), xpad_ref.dtype)
    xpad_ref[1:H + 1, 1:W + 1, :] = xn

    # ---- 3x3 conv as 9 accumulated MXU matmuls, row-chunked to bound the ----
    # ---- live range of the (rows, Cmid) f32 activation between the dots ----
    row_chunk = max(1, min(H, 512 // max(W, 1)))
    for r0 in range(0, H, row_chunk):
        rows = min(row_chunk, H - r0)
        acc = None
        t = 0
        for dh in range(3):
            for dw in range(3):
                tap = xpad_ref[r0 + dh:r0 + dh + rows, dw:dw + W, :]
                tap = tap.reshape(rows * W, C)                     # bf16
                d = jnp.dot(tap, w1_ref[t],
                            preferred_element_type=jnp.float32)    # (rows*W, Cmid)
                acc = d if acc is None else acc + d
                t += 1
        # Folded BatchNorm shift + ReLU (VPU), then 1x1 conv with bias (MXU).
        hact = jnp.maximum(acc + bnb_ref[...], 0.0).astype(jnp.bfloat16)
        logits = jnp.dot(hact, w2_ref[...],
                         preferred_element_type=jnp.float32) + b2_ref[...]
        lg_ref[0, r0:r0 + rows, :, :] = (
            logits.reshape(rows, W, K).astype(lg_ref.dtype))


def _upsample_kernel(lg_ref, awt_ref, ah_ref, out_ref):
    """Separable bilinear upsample (align_corners=True) for one image, all classes."""
    _, K, H, W = lg_ref.shape
    Wout = awt_ref.shape[1]
    # W-direction upsample for all classes in one MXU matmul.
    zk = lg_ref[0].reshape(K * H, W)                                     # bf16
    mk = jnp.dot(zk, awt_ref[...], preferred_element_type=jnp.float32)   # (K*H, Wout)
    mk = mk.astype(jnp.bfloat16).reshape(K, H, Wout)
    # H-direction upsample per class; each store is a lane-dense (Hout, Wout) slab.
    for k in range(K):
        out_ref[0, k] = jnp.dot(ah_ref[...], mk[k],
                                preferred_element_type=jnp.float32)


def feature_noise_decoder(x_nchw, noise_chw, params, upscale):
    w1 = params["conv1_w"]          # (Cmid, C_in, 3, 3)
    w2 = params["conv2_w"]          # (K, Cmid, 1, 1)
    b2 = params["conv2_b"]          # (K,)
    bn_gamma, bn_beta = params["bn_gamma"], params["bn_beta"]
    bn_mean, bn_var = params["bn_mean"], params["bn_var"]
    eps = 1e-5

    N, C, H, W = x_nchw.shape
    Cmid = w1.shape[0]
    K = w2.shape[0]
    Hout, Wout = H * upscale, W * upscale

    # NCHW -> NHWC (channels on the lane dim), bf16 to halve HBM read traffic.
    x = jnp.transpose(x_nchw, (0, 2, 3, 1)).astype(jnp.bfloat16)
    nz = (1.0 + jnp.transpose(noise_chw, (1, 2, 0)))[None].astype(jnp.bfloat16)

    # Eval-mode BatchNorm folded: scale into conv weights, shift as bias.
    inv_std = 1.0 / jnp.sqrt(bn_var + eps)
    bn_scale = bn_gamma * inv_std
    bnb = (bn_beta - bn_mean * bn_gamma * inv_std).reshape(1, Cmid).astype(jnp.float32)

    # (Cmid, Cin, 3, 3) -> (3, 3, Cin, Cmid) -> (9, Cin, Cmid), BN-scaled, bf16.
    w1_k = (jnp.transpose(w1, (2, 3, 1, 0)).reshape(9, C, Cmid)
            * bn_scale[None, None, :]).astype(jnp.bfloat16)
    w2_k = jnp.transpose(w2.reshape(K, Cmid), (1, 0)).astype(jnp.bfloat16)   # (Cmid, K)
    b2_k = b2.reshape(1, K).astype(jnp.float32)

    vmem_limit = 64 * 1024 * 1024

    # ---- kernel A: noise + conv3x3 + BN + ReLU + conv1x1 -> low-res logits (bf16) ----
    logits = pl.pallas_call(
        _conv_head_kernel,
        out_shape=jax.ShapeDtypeStruct((N, H, W, K), jnp.bfloat16),
        grid=(N,),
        in_specs=[
            pl.BlockSpec((1, H, W, C), lambda n: (n, 0, 0, 0)),   # x (bf16)
            pl.BlockSpec((1, H, W, C), lambda n: (0, 0, 0, 0)),   # 1 + noise (bf16)
            pl.BlockSpec((9, C, Cmid), lambda n: (0, 0, 0)),      # conv3x3 w (BN folded)
            pl.BlockSpec((1, Cmid), lambda n: (0, 0)),            # BN shift
            pl.BlockSpec((Cmid, K), lambda n: (0, 0)),            # conv1x1 w
            pl.BlockSpec((1, K), lambda n: (0, 0)),               # conv1x1 bias
        ],
        out_specs=pl.BlockSpec((1, H, W, K), lambda n: (n, 0, 0, 0)),
        scratch_shapes=[pltpu.VMEM((H + 2, W + 2, C), jnp.bfloat16)],  # padded input
        compiler_params=pltpu.CompilerParams(
            dimension_semantics=("parallel",),
            vmem_limit_bytes=vmem_limit),
    )(x, nz, w1_k, bnb, w2_k, b2_k)

    # Tiny bf16 (N, H, W, K) -> (N, K, H, W) so kernel B emits NCHW directly.
    logits_t = jnp.transpose(logits, (0, 3, 1, 2))

    # Separable interpolation matrices (align_corners=True), bf16 MXU operands.
    ah = jnp.asarray(_bilinear_matrix(H, Hout), jnp.bfloat16)       # (Hout, H)
    awt = jnp.asarray(_bilinear_matrix(W, Wout).T, jnp.bfloat16)    # (W, Wout)

    # ---- kernel B: separable bilinear upsample, one grid step per image ----
    out = pl.pallas_call(
        _upsample_kernel,
        out_shape=jax.ShapeDtypeStruct((N, K, Hout, Wout), jnp.float32),
        grid=(N,),
        in_specs=[
            pl.BlockSpec((1, K, H, W), lambda n: (n, 0, 0, 0)),      # logits (bf16)
            pl.BlockSpec((W, Wout), lambda n: (0, 0)),               # A_w^T
            pl.BlockSpec((Hout, H), lambda n: (0, 0)),               # A_h
        ],
        out_specs=pl.BlockSpec((1, K, Hout, Wout), lambda n: (n, 0, 0, 0)),
        compiler_params=pltpu.CompilerParams(
            dimension_semantics=("parallel",),
            vmem_limit_bytes=vmem_limit),
    )(logits_t, awt, ah)

    return out                                                   # already NCHW


def _reference(x_nchw, noise_chw, params, upscale):
    """Pure-JAX f32 reference of the same math (for validation)."""
    w1, w2, b2 = params["conv1_w"], params["conv2_w"], params["conv2_b"]
    bn_gamma, bn_beta = params["bn_gamma"], params["bn_beta"]
    bn_mean, bn_var = params["bn_mean"], params["bn_var"]
    eps = 1e-5
    N, C, H, W = x_nchw.shape
    Cmid, K = w1.shape[0], w2.shape[0]
    Hout, Wout = H * upscale, W * upscale

    x = jnp.transpose(x_nchw, (0, 2, 3, 1))
    nf = 1.0 + jnp.transpose(noise_chw, (1, 2, 0))[None]
    xn = x * nf
    w_hwio = jnp.transpose(w1, (2, 3, 1, 0))
    y = jax.lax.conv_general_dilated(
        xn, w_hwio, window_strides=(1, 1), padding=((1, 1), (1, 1)),
        dimension_numbers=("NHWC", "HWIO", "NHWC"))
    inv_std = 1.0 / jnp.sqrt(bn_var + eps)
    y = y * (bn_gamma * inv_std).reshape(1, 1, 1, Cmid) + \
        (bn_beta - bn_mean * bn_gamma * inv_std).reshape(1, 1, 1, Cmid)
    y = jnp.maximum(y, 0.0)
    z = jnp.einsum("nhwc,ck->nhwk", y, w2.reshape(K, Cmid).T) + b2.reshape(1, 1, 1, K)
    A_h = jnp.asarray(_bilinear_matrix(H, Hout))
    A_w = jnp.asarray(_bilinear_matrix(W, Wout))
    up = jnp.einsum("ih,jw,nhwk->nijk", A_h, A_w, z)
    return jnp.transpose(up, (0, 3, 1, 2))


if __name__ == "__main__":
    N, C, H, W = 2, 4, 16, 16
    num_classes = 4
    upscale = 2
    Cmid = 256
    uniform_range = 0.3

    key = jax.random.PRNGKey(0)
    k_x, k_n, k_w1, k_w2, k_b2 = jax.random.split(key, 5)

    x = jax.random.normal(k_x, (N, C, H, W), jnp.float32)
    # deterministic stand-in for torch.distributions.Uniform(-r, r).sample(x.shape[1:])
    noise = jax.random.uniform(k_n, (C, H, W), jnp.float32,
                               minval=-uniform_range, maxval=uniform_range)

    params = dict(
        conv1_w=jax.random.normal(k_w1, (Cmid, C, 3, 3), jnp.float32) * 0.1,
        bn_gamma=jnp.ones((Cmid,), jnp.float32),     # PyTorch BatchNorm2d defaults
        bn_beta=jnp.zeros((Cmid,), jnp.float32),
        bn_mean=jnp.zeros((Cmid,), jnp.float32),
        bn_var=jnp.ones((Cmid,), jnp.float32),
        conv2_w=jax.random.normal(k_w2, (num_classes, Cmid, 1, 1), jnp.float32) * 0.05,
        conv2_b=jax.random.normal(k_b2, (num_classes,), jnp.float32) * 0.05,
    )

    out = feature_noise_decoder(x, noise, params, upscale)
    out = jax.block_until_ready(out)
    assert out.shape == (N, num_classes, H * upscale, W * upscale), out.shape

    ref = _reference(x, noise, params, upscale)
    np.testing.assert_allclose(np.asarray(out), np.asarray(ref), rtol=2e-2, atol=2e-2)

    print("KERNEL_OK")
</pallas_src>

<mosaic_0001>
module attributes {stable_mosaic.version = 11 : i64} {
  func.func @_conv_head_kernel(%arg0: i32, %arg1: memref<1x16x16x4xbf16, #tpu.memory_space<vmem>>, %arg2: memref<1x16x16x4xbf16, #tpu.memory_space<vmem>>, %arg3: memref<9x4x256xbf16, #tpu.memory_space<vmem>>, %arg4: memref<1x256xf32, #tpu.memory_space<vmem>>, %arg5: memref<256x4xbf16, #tpu.memory_space<vmem>>, %arg6: memref<1x4xf32, #tpu.memory_space<vmem>>, %arg7: memref<1x16x16x4xbf16, #tpu.memory_space<vmem>>, %arg8: memref<18x18x4xbf16, #tpu.memory_space<vmem>>) attributes {dimension_semantics = [#tpu.dimension_semantics<parallel>], iteration_bounds = array<i64: 2>, scalar_prefetch = 0 : i64, scratch_operands = 1 : i64, tpu.core_type = #tpu.core_type<tc>, window_params = [{transform_indices = @transform_0, window_bounds = array<i64: 1, 16, 16, 4>}, {pipeline_mode = #tpu.pipeline_mode<synchronous>, transform_indices = @transform_1, window_bounds = array<i64: 1, 16, 16, 4>}, {pipeline_mode = #tpu.pipeline_mode<synchronous>, transform_indices = @transform_2, window_bounds = array<i64: 9, 4, 256>}, {pipeline_mode = #tpu.pipeline_mode<synchronous>, transform_indices = @transform_3, window_bounds = array<i64: 1, 256>}, {pipeline_mode = #tpu.pipeline_mode<synchronous>, transform_indices = @transform_4, window_bounds = array<i64: 256, 4>}, {pipeline_mode = #tpu.pipeline_mode<synchronous>, transform_indices = @transform_5, window_bounds = array<i64: 1, 4>}, {transform_indices = @transform_6, window_bounds = array<i64: 1, 16, 16, 4>}]} {
    %c0 = arith.constant 0 : index
    %c0_0 = arith.constant 0 : index
    %c0_1 = arith.constant 0 : index
    %c0_2 = arith.constant 0 : index
    %0 = vector.load %arg1[%c0, %c0_0, %c0_1, %c0_2] : memref<1x16x16x4xbf16, #tpu.memory_space<vmem>>, vector<1x16x16x4xbf16>
    %1 = vector.shape_cast %0 : vector<1x16x16x4xbf16> to vector<16x16x4xbf16>
    %2 = arith.extf %1 : vector<16x16x4xbf16> to vector<16x16x4xf32>
    %c0_3 = arith.constant 0 : index
    %c0_4 = arith.constant 0 : index
    %c0_5 = arith.constant 0 : index
    %c0_6 = arith.constant 0 : index
    %3 = vector.load %arg2[%c0_3, %c0_4, %c0_5, %c0_6] : memref<1x16x16x4xbf16, #tpu.memory_space<vmem>>, vector<1x16x16x4xbf16>
    %4 = vector.shape_cast %3 : vector<1x16x16x4xbf16> to vector<16x16x4xbf16>
    %5 = arith.extf %4 : vector<16x16x4xbf16> to vector<16x16x4xf32>
    %6 = arith.mulf %2, %5 : vector<16x16x4xf32>
    %7 = arith.truncf %6 : vector<16x16x4xf32> to vector<16x16x4xbf16>
    %cst = arith.constant 0.000000e+00 : bf16
    %8 = vector.broadcast %cst : bf16 to vector<1x18x4xbf16>
    %c0_7 = arith.constant 0 : index
    %c0_8 = arith.constant 0 : index
    %c0_9 = arith.constant 0 : index
    %9 = vector.load %arg8[%c0_7, %c0_8, %c0_9] : memref<18x18x4xbf16, #tpu.memory_space<vmem>>, vector<1x18x4xbf16>
    tpu.vector_store %arg8[%c0_7, %c0_8, %c0_9], %8 {strides = array<i32>} : memref<18x18x4xbf16, #tpu.memory_space<vmem>>, vector<1x18x4xbf16>,
    %cst_10 = arith.constant 0.000000e+00 : bf16
    %10 = vector.broadcast %cst_10 : bf16 to vector<1x18x4xbf16>
    %c17 = arith.constant 17 : index
    %c0_11 = arith.constant 0 : index
    %c0_12 = arith.constant 0 : index
    %11 = vector.load %arg8[%c17, %c0_11, %c0_12] : memref<18x18x4xbf16, #tpu.memory_space<vmem>>, vector<1x18x4xbf16>
    tpu.vector_store %arg8[%c17, %c0_11, %c0_12], %10 {strides = array<i32>} : memref<18x18x4xbf16, #tpu.memory_space<vmem>>, vector<1x18x4xbf16>,
    %cst_13 = arith.constant 0.000000e+00 : bf16
    %12 = vector.broadcast %cst_13 : bf16 to vector<18x1x4xbf16>
    %c0_14 = arith.constant 0 : index
    %c0_15 = arith.constant 0 : index
    %c0_16 = arith.constant 0 : index
    %13 = vector.load %arg8[%c0_14, %c0_15, %c0_16] : memref<18x18x4xbf16, #tpu.memory_space<vmem>>, vector<18x1x4xbf16>
    tpu.vector_store %arg8[%c0_14, %c0_15, %c0_16], %12 {strides = array<i32>} : memref<18x18x4xbf16, #tpu.memory_space<vmem>>, vector<18x1x4xbf16>,
    %cst_17 = arith.constant 0.000000e+00 : bf16
    %14 = vector.broadcast %cst_17 : bf16 to vector<18x1x4xbf16>
    %c0_18 = arith.constant 0 : index
    %c17_19 = arith.constant 17 : index
    %c0_20 = arith.constant 0 : index
    %15 = vector.load %arg8[%c0_18, %c17_19, %c0_20] : memref<18x18x4xbf16, #tpu.memory_space<vmem>>, vector<18x1x4xbf16>
    tpu.vector_store %arg8[%c0_18, %c17_19, %c0_20], %14 {strides = array<i32>} : memref<18x18x4xbf16, #tpu.memory_space<vmem>>, vector<18x1x4xbf16>,
    %c1 = arith.constant 1 : index
    %c1_21 = arith.constant 1 : index
    %c0_22 = arith.constant 0 : index
    %16 = vector.load %arg8[%c1, %c1_21, %c0_22] : memref<18x18x4xbf16, #tpu.memory_space<vmem>>, vector<16x16x4xbf16>
    tpu.vector_store %arg8[%c1, %c1_21, %c0_22], %7 {strides = array<i32>} : memref<18x18x4xbf16, #tpu.memory_space<vmem>>, vector<16x16x4xbf16>,
    %c0_23 = arith.constant 0 : index
    %c0_24 = arith.constant 0 : index
    %c0_25 = arith.constant 0 : index
    %17 = vector.load %arg8[%c0_23, %c0_24, %c0_25] : memref<18x18x4xbf16, #tpu.memory_space<vmem>>, vector<16x16x4xbf16>
    %18 = vector.shape_cast %17 : vector<16x16x4xbf16> to vector<256x4xbf16>
    %c0_26 = arith.constant 0 : index
    %c0_27 = arith.constant 0 : index
    %c0_28 = arith.constant 0 : index
    %19 = vector.load %arg3[%c0_26, %c0_27, %c0_28] : memref<9x4x256xbf16, #tpu.memory_space<vmem>>, vector<1x4x256xbf16>
    %20 = vector.shape_cast %19 : vector<1x4x256xbf16> to vector<4x256xbf16>
    %cst_29 = arith.constant dense<0.000000e+00> : vector<256x256xf32>
    %21 = tpu.matmul %18, %20, %cst_29 {dimension_numbers = #tpu.dot_dimension_numbers<[1], [0], [0], [1], [0, 0, 1, 1], [], []>} : vector<256x4xbf16>, vector<4x256xbf16>, vector<256x256xf32> -> vector<256x256xf32>
    %c0_30 = arith.constant 0 : index
    %c1_31 = arith.constant 1 : index
    %c0_32 = arith.constant 0 : index
    %22 = vector.load %arg8[%c0_30, %c1_31, %c0_32] : memref<18x18x4xbf16, #tpu.memory_space<vmem>>, vector<16x16x4xbf16>
    %23 = vector.shape_cast %22 : vector<16x16x4xbf16> to vector<256x4xbf16>
    %c1_33 = arith.constant 1 : index
    %c0_34 = arith.constant 0 : index
    %c0_35 = arith.constant 0 : index
    %24 = vector.load %arg3[%c1_33, %c0_34, %c0_35] : memref<9x4x256xbf16, #tpu.memory_space<vmem>>, vector<1x4x256xbf16>
    %25 = vector.shape_cast %24 : vector<1x4x256xbf16> to vector<4x256xbf16>
    %cst_36 = arith.constant dense<0.000000e+00> : vector<256x256xf32>
    %26 = tpu.matmul %23, %25, %cst_36 {dimension_numbers = #tpu.dot_dimension_numbers<[1], [0], [0], [1], [0, 0, 1, 1], [], []>} : vector<256x4xbf16>, vector<4x256xbf16>, vector<256x256xf32> -> vector<256x256xf32>
    %27 = arith.addf %21, %26 : vector<256x256xf32>
    %c0_37 = arith.constant 0 : index
    %c2 = arith.constant 2 : index
    %c0_38 = arith.constant 0 : index
    %28 = vector.load %arg8[%c0_37, %c2, %c0_38] : memref<18x18x4xbf16, #tpu.memory_space<vmem>>, vector<16x16x4xbf16>
    %29 = vector.shape_cast %28 : vector<16x16x4xbf16> to vector<256x4xbf16>
    %c2_39 = arith.constant 2 : index
    %c0_40 = arith.constant 0 : index
    %c0_41 = arith.constant 0 : index
    %30 = vector.load %arg3[%c2_39, %c0_40, %c0_41] : memref<9x4x256xbf16, #tpu.memory_space<vmem>>, vector<1x4x256xbf16>
    %31 = vector.shape_cast %30 : vector<1x4x256xbf16> to vector<4x256xbf16>
    %cst_42 = arith.constant dense<0.000000e+00> : vector<256x256xf32>
    %32 = tpu.matmul %29, %31, %cst_42 {dimension_numbers = #tpu.dot_dimension_numbers<[1], [0], [0], [1], [0, 0, 1, 1], [], []>} : vector<256x4xbf16>, vector<4x256xbf16>, vector<256x256xf32> -> vector<256x256xf32>
    %33 = arith.addf %27, %32 : vector<256x256xf32>
    %c1_43 = arith.constant 1 : index
    %c0_44 = arith.constant 0 : index
    %c0_45 = arith.constant 0 : index
    %34 = vector.load %arg8[%c1_43, %c0_44, %c0_45] : memref<18x18x4xbf16, #tpu.memory_space<vmem>>, vector<16x16x4xbf16>
    %35 = vector.shape_cast %34 : vector<16x16x4xbf16> to vector<256x4xbf16>
    %c3 = arith.constant 3 : index
    %c0_46 = arith.constant 0 : index
    %c0_47 = arith.constant 0 : index
    %36 = vector.load %arg3[%c3, %c0_46, %c0_47] : memref<9x4x256xbf16, #tpu.memory_space<vmem>>, vector<1x4x256xbf16>
    %37 = vector.shape_cast %36 : vector<1x4x256xbf16> to vector<4x256xbf16>
    %cst_48 = arith.constant dense<0.000000e+00> : vector<256x256xf32>
    %38 = tpu.matmul %35, %37, %cst_48 {dimension_numbers = #tpu.dot_dimension_numbers<[1], [0], [0], [1], [0, 0, 1, 1], [], []>} : vector<256x4xbf16>, vector<4x256xbf16>, vector<256x256xf32> -> vector<256x256xf32>
    %39 = arith.addf %33, %38 : vector<256x256xf32>
    %c1_49 = arith.constant 1 : index
    %c1_50 = arith.constant 1 : index
    %c0_51 = arith.constant 0 : index
    %40 = vector.load %arg8[%c1_49, %c1_50, %c0_51] : memref<18x18x4xbf16, #tpu.memory_space<vmem>>, vector<16x16x4xbf16>
    %41 = vector.shape_cast %40 : vector<16x16x4xbf16> to vector<256x4xbf16>
    %c4 = arith.constant 4 : index
    %c0_52 = arith.constant 0 : index
    %c0_53 = arith.constant 0 : index
    %42 = vector.load %arg3[%c4, %c0_52, %c0_53] : memref<9x4x256xbf16, #tpu.memory_space<vmem>>, vector<1x4x256xbf16>
    %43 = vector.shape_cast %42 : vector<1x4x256xbf16> to vector<4x256xbf16>
    %cst_54 = arith.constant dense<0.000000e+00> : vector<256x256xf32>
    %44 = tpu.matmul %41, %43, %cst_54 {dimension_numbers = #tpu.dot_dimension_numbers<[1], [0], [0], [1], [0, 0, 1, 1], [], []>} : vector<256x4xbf16>, vector<4x256xbf16>, vector<256x256xf32> -> vector<256x256xf32>
    %45 = arith.addf %39, %44 : vector<256x256xf32>
    %c1_55 = arith.constant 1 : index
    %c2_56 = arith.constant 2 : index
    %c0_57 = arith.constant 0 : index
    %46 = vector.load %arg8[%c1_55, %c2_56, %c0_57] : memref<18x18x4xbf16, #tpu.memory_space<vmem>>, vector<16x16x4xbf16>
    %47 = vector.shape_cast %46 : vector<16x16x4xbf16> to vector<256x4xbf16>
    %c5 = arith.constant 5 : index
    %c0_58 = arith.constant 0 : index
    %c0_59 = arith.constant 0 : index
    %48 = vector.load %arg3[%c5, %c0_58, %c0_59] : memref<9x4x256xbf16, #tpu.memory_space<vmem>>, vector<1x4x256xbf16>
    %49 = vector.shape_cast %48 : vector<1x4x256xbf16> to vector<4x256xbf16>
    %cst_60 = arith.constant dense<0.000000e+00> : vector<256x256xf32>
    %50 = tpu.matmul %47, %49, %cst_60 {dimension_numbers = #tpu.dot_dimension_numbers<[1], [0], [0], [1], [0, 0, 1, 1], [], []>} : vector<256x4xbf16>, vector<4x256xbf16>, vector<256x256xf32> -> vector<256x256xf32>
    %51 = arith.addf %45, %50 : vector<256x256xf32>
    %c2_61 = arith.constant 2 : index
    %c0_62 = arith.constant 0 : index
    %c0_63 = arith.constant 0 : index
    %52 = vector.load %arg8[%c2_61, %c0_62, %c0_63] : memref<18x18x4xbf16, #tpu.memory_space<vmem>>, vector<16x16x4xbf16>
    %53 = vector.shape_cast %52 : vector<16x16x4xbf16> to vector<256x4xbf16>
    %c6 = arith.constant 6 : index
    %c0_64 = arith.constant 0 : index
    %c0_65 = arith.constant 0 : index
    %54 = vector.load %arg3[%c6, %c0_64, %c0_65] : memref<9x4x256xbf16, #tpu.memory_space<vmem>>, vector<1x4x256xbf16>
    %55 = vector.shape_cast %54 : vector<1x4x256xbf16> to vector<4x256xbf16>
    %cst_66 = arith.constant dense<0.000000e+00> : vector<256x256xf32>
    %56 = tpu.matmul %53, %55, %cst_66 {dimension_numbers = #tpu.dot_dimension_numbers<[1], [0], [0], [1], [0, 0, 1, 1], [], []>} : vector<256x4xbf16>, vector<4x256xbf16>, vector<256x256xf32> -> vector<256x256xf32>
    %57 = arith.addf %51, %56 : vector<256x256xf32>
    %c2_67 = arith.constant 2 : index
    %c1_68 = arith.constant 1 : index
    %c0_69 = arith.constant 0 : index
    %58 = vector.load %arg8[%c2_67, %c1_68, %c0_69] : memref<18x18x4xbf16, #tpu.memory_space<vmem>>, vector<16x16x4xbf16>
    %59 = vector.shape_cast %58 : vector<16x16x4xbf16> to vector<256x4xbf16>
    %c7 = arith.constant 7 : index
    %c0_70 = arith.constant 0 : index
    %c0_71 = arith.constant 0 : index
    %60 = vector.load %arg3[%c7, %c0_70, %c0_71] : memref<9x4x256xbf16, #tpu.memory_space<vmem>>, vector<1x4x256xbf16>
    %61 = vector.shape_cast %60 : vector<1x4x256xbf16> to vector<4x256xbf16>
    %cst_72 = arith.constant dense<0.000000e+00> : vector<256x256xf32>
    %62 = tpu.matmul %59, %61, %cst_72 {dimension_numbers = #tpu.dot_dimension_numbers<[1], [0], [0], [1], [0, 0, 1, 1], [], []>} : vector<256x4xbf16>, vector<4x256xbf16>, vector<256x256xf32> -> vector<256x256xf32>
    %63 = arith.addf %57, %62 : vector<256x256xf32>
    %c2_73 = arith.constant 2 : index
    %c2_74 = arith.constant 2 : index
    %c0_75 = arith.constant 0 : index
    %64 = vector.load %arg8[%c2_73, %c2_74, %c0_75] : memref<18x18x4xbf16, #tpu.memory_space<vmem>>, vector<16x16x4xbf16>
    %65 = vector.shape_cast %64 : vector<16x16x4xbf16> to vector<256x4xbf16>
    %c8 = arith.constant 8 : index
    %c0_76 = arith.constant 0 : index
    %c0_77 = arith.constant 0 : index
    %66 = vector.load %arg3[%c8, %c0_76, %c0_77] : memref<9x4x256xbf16, #tpu.memory_space<vmem>>, vector<1x4x256xbf16>
    %67 = vector.shape_cast %66 : vector<1x4x256xbf16> to vector<4x256xbf16>
    %cst_78 = arith.constant dense<0.000000e+00> : vector<256x256xf32>
    %68 = tpu.matmul %65, %67, %cst_78 {dimension_numbers = #tpu.dot_dimension_numbers<[1], [0], [0], [1], [0, 0, 1, 1], [], []>} : vector<256x4xbf16>, vector<4x256xbf16>, vector<256x256xf32> -> vector<256x256xf32>
    %69 = arith.addf %63, %68 : vector<256x256xf32>
    %c0_79 = arith.constant 0 : index
    %c0_80 = arith.constant 0 : index
    %70 = vector.load %arg4[%c0_79, %c0_80] : memref<1x256xf32, #tpu.memory_space<vmem>>, vector<1x256xf32>
    %71 = vector.broadcast %70 : vector<1x256xf32> to vector<256x256xf32>
    %72 = arith.addf %69, %71 : vector<256x256xf32>
    %cst_81 = arith.constant 0.000000e+00 : f32
    %73 = vector.broadcast %cst_81 : f32 to vector<256x256xf32>
    %74 = arith.maximumf %72, %73 : vector<256x256xf32>
    %75 = arith.truncf %74 : vector<256x256xf32> to vector<256x256xbf16>
    %c0_82 = arith.constant 0 : index
    %c0_83 = arith.constant 0 : index
    %76 = vector.load %arg5[%c0_82, %c0_83] : memref<256x4xbf16, #tpu.memory_space<vmem>>, vector<256x4xbf16>
    %cst_84 = arith.constant dense<0.000000e+00> : vector<256x4xf32>
    %77 = tpu.matmul %75, %76, %cst_84 {dimension_numbers = #tpu.dot_dimension_numbers<[1], [0], [0], [1], [0, 0, 1, 1], [], []>} : vector<256x256xbf16>, vector<256x4xbf16>, vector<256x4xf32> -> vector<256x4xf32>
    %c0_85 = arith.constant 0 : index
    %c0_86 = arith.constant 0 : index
    %78 = vector.load %arg6[%c0_85, %c0_86] : memref<1x4xf32, #tpu.memory_space<vmem>>, vector<1x4xf32>
    %79 = vector.broadcast %78 : vector<1x4xf32> to vector<256x4xf32>
    %80 = arith.addf %77, %79 : vector<256x4xf32>
    %81 = vector.shape_cast %80 : vector<256x4xf32> to vector<16x16x4xf32>
    %82 = arith.truncf %81 : vector<16x16x4xf32> to vector<16x16x4xbf16>
    %c0_87 = arith.constant 0 : index
    %c0_88 = arith.constant 0 : index
    %c0_89 = arith.constant 0 : index
    %c0_90 = arith.constant 0 : index
    %83 = vector.load %arg7[%c0_87, %c0_88, %c0_89, %c0_90] : memref<1x16x16x4xbf16, #tpu.memory_space<vmem>>, vector<1x16x16x4xbf16>
    %84 = vector.shape_cast %83 : vector<1x16x16x4xbf16> to vector<16x16x4xbf16>
    %85 = vector.shape_cast %82 : vector<16x16x4xbf16> to vector<1x16x16x4xbf16>
    tpu.vector_store %arg7[%c0_87, %c0_88, %c0_89, %c0_90], %85 {strides = array<i32>} : memref<1x16x16x4xbf16, #tpu.memory_space<vmem>>, vector<1x16x16x4xbf16>,
    return
  }
  func.func @transform_0(%arg0: i32) -> (i32, i32, i32, i32) {
    %c0_i32 = arith.constant 0 : i32
    %c0_i32_0 = arith.constant 0 : i32
    %c0_i32_1 = arith.constant 0 : i32
    %c0_i32_2 = arith.constant 0 : i32
    return %arg0, %c0_i32, %c0_i32_0, %c0_i32_1 : i32, i32, i32, i32
  }
  func.func @transform_1(%arg0: i32) -> (i32, i32, i32, i32) {
    %c0_i32 = arith.constant 0 : i32
    %c0_i32_0 = arith.constant 0 : i32
    %c0_i32_1 = arith.constant 0 : i32
    %c0_i32_2 = arith.constant 0 : i32
    %c0_i32_3 = arith.constant 0 : i32
    return %c0_i32, %c0_i32_0, %c0_i32_1, %c0_i32_2 : i32, i32, i32, i32
  }
  func.func @transform_2(%arg0: i32) -> (i32, i32, i32) {
    %c0_i32 = arith.constant 0 : i32
    %c0_i32_0 = arith.constant 0 : i32
    %c0_i32_1 = arith.constant 0 : i32
    %c0_i32_2 = arith.constant 0 : i32
    return %c0_i32, %c0_i32_0, %c0_i32_1 : i32, i32, i32
  }
  func.func @transform_3(%arg0: i32) -> (i32, i32) {
    %c0_i32 = arith.constant 0 : i32
    %c0_i32_0 = arith.constant 0 : i32
    %c0_i32_1 = arith.constant 0 : i32
    return %c0_i32, %c0_i32_0 : i32, i32
  }
  func.func @transform_4(%arg0: i32) -> (i32, i32) {
    %c0_i32 = arith.constant 0 : i32
    %c0_i32_0 = arith.constant 0 : i32
    %c0_i32_1 = arith.constant 0 : i32
    return %c0_i32, %c0_i32_0 : i32, i32
  }
  func.func @transform_5(%arg0: i32) -> (i32, i32) {
    %c0_i32 = arith.constant 0 : i32
    %c0_i32_0 = arith.constant 0 : i32
    %c0_i32_1 = arith.constant 0 : i32
    return %c0_i32, %c0_i32_0 : i32, i32
  }
  func.func @transform_6(%arg0: i32) -> (i32, i32, i32, i32) {
    %c0_i32 = arith.constant 0 : i32
    %c0_i32_0 = arith.constant 0 : i32
    %c0_i32_1 = arith.constant 0 : i32
    %c0_i32_2 = arith.constant 0 : i32
    return %arg0, %c0_i32, %c0_i32_0, %c0_i32_1 : i32, i32, i32, i32
  }
}

</mosaic_0001>

<llo_original>
// kernel: tpu_custom_call.1
$region0: #{tpu_custom_call.1}
  #allocation0 [shape = 'u32[]', space=smem, size = 0x4, offset = 0x4, fixed_abs, tag = 'smem constant byte address 0x4 - core index']
  #allocation1 [shape = 'u32[72,128]{1,0:T(1,128)}', space=vmem, size = 0x9000, scoped, tag = 'internal scratch']
  #allocation2 [shape = 'bf16[18,18,4]{2,1,0:T(8,128)(2,1)}', space=vmem, size = 0x1b000, scoped, tag = 'scratch operand']
  %s0 = inlined_call_operand.vmem [shape: bf16[2,16,16,4], index: 0, kind: input, shape index: {}]
  %s1 = inlined_call_operand.vmem [shape: bf16[1,16,16,4], index: 1, kind: input, shape index: {}]
  %s2 = inlined_call_operand.vmem [shape: bf16[9,4,256], index: 2, kind: input, shape index: {}]
  %s3 = inlined_call_operand.vmem [shape: f32[1,256], index: 3, kind: input, shape index: {}]
  %s4 = inlined_call_operand.vmem [shape: bf16[256,4], index: 4, kind: input, shape index: {}]
  %s5 = inlined_call_operand.vmem [shape: f32[1,4], index: 5, kind: input, shape index: {}]
  %s6 = inlined_call_operand.vmem [shape: bf16[2,16,16,4], index: 6, kind: output, shape index: {}]
  %s7 = sld [smem:[#allocation0]]
  $region57: #{tpu_custom_call.1} parent=0
    _
  %s9 = ssub.s32 1, %s7
  %s10 = scalar_select 0, %s9, %s7
  loop: start=0, step=1, limit=4
  $region2: #{tpu_custom_call.1} parent=0 // loop_pre_header
    _
  $region3: #{tpu_custom_call.1} parent=0 // loop_header
    %s12 = sphi 0, %s16
    %p13 = scmp.ge.s32.totalorder %s12, 4
    %s22 = sphi 0, %s24
    %s25 = sphi 0, %s22
    %s26 = sphi 0, %s25
    %s42 = sphi 0, %s26
    %s46 = sphi 0, %s46
    %s48 = sphi 0, %s46
    %s49 = sphi 0, %s48
    %s63 = sphi 0, %s49
    %s67 = sphi 0, %s67
    %s69 = sphi 0, %s67
    %s70 = sphi 0, %s69
    %s84 = sphi 0, %s70
    %s88 = sphi 0, %s88
    %s90 = sphi 0, %s88
    %s91 = sphi 0, %s90
    %s105 = sphi 0, %s91
    %s109 = sphi 0, %s109
    %s111 = sphi 0, %s109
    %s112 = sphi 0, %s111
    %s126 = sphi 0, %s112
    %s130 = sphi 0, %s130
    %s132 = sphi 0, %s130
    %s133 = sphi 0, %s132
    %s147 = sphi 0, %s133
    %s153 = sphi 0, %s155
    %s156 = sphi 0, %s153
    %s157 = sphi 0, %s156
    %s173 = sphi 0, %s157
  $region4: #{tpu_custom_call.1} parent=0 // loop_header_branch
    %15 = sbr.rel (%p13) target = $region8
  $region5: #{tpu_custom_call.1} parent=0 // loop_body
    %s17 = ssub.s32 %s12, 1
    %s18 = ssub.s32 %s12, 2
    %s19 = sadd.s32 %s12, 1
    %s20 = ssub.s32 %s12, %s19
    %p21 = scmp.eq.s32.totalorder %s20, 0
    %s23 = sadd.s32 %s22, 1
    %s24 = scalar_select %p21, %s22, %s23
    %p27 = pneg %p21
    %p28 = scmp.eq.s32.totalorder %s12, 1
    %p29 = por %p27, %p28
    %p30 = scmp.ne.s32.totalorder %s22, %s25
    %p31 = scmp.eq.s32.totalorder %s12, 0
    %p32 = por %p30, %p31
    %p33 = scmp.ne.s32.totalorder %s22, %s25
    %p34 = scmp.eq.s32.totalorder %s17, 1
    %p35 = por %p33, %p34
    %p36 = scmp.ne.s32.totalorder %s25, %s26
    %p37 = scmp.eq.s32.totalorder %s17, 0
    %p38 = por %p36, %p37
    %p39 = scmp.ne.s32.totalorder %s25, %s26
    %p40 = scmp.eq.s32.totalorder %s18, 1
    %p41 = por %p39, %p40
    %p43 = scmp.ne.s32.totalorder %s26, %s42
    %p44 = scmp.eq.s32.totalorder %s18, 0
    %p45 = por %p43, %p44
    %s47 = sadd.s32 %s46, 1
    %p50 = scmp.eq.s32.totalorder %s12, 1
    %p51 = scmp.ne.s32.totalorder %s46, %s48
    %p52 = scmp.eq.s32.totalorder %s12, 0
    %p53 = por %p51, %p52
    %p54 = scmp.ne.s32.totalorder %s46, %s48
    %p55 = scmp.eq.s32.totalorder %s17, 1
    %p56 = por %p54, %p55
    %p57 = scmp.ne.s32.totalorder %s48, %s49
    %p58 = scmp.eq.s32.totalorder %s17, 0
    %p59 = por %p57, %p58
    %p60 = scmp.ne.s32.totalorder %s48, %s49
    %p61 = scmp.eq.s32.totalorder %s18, 1
    %p62 = por %p60, %p61
    %p64 = scmp.ne.s32.totalorder %s49, %s63
    %p65 = scmp.eq.s32.totalorder %s18, 0
    %p66 = por %p64, %p65
    %s68 = sadd.s32 %s67, 1
    %p71 = scmp.eq.s32.totalorder %s12, 1
    %p72 = scmp.ne.s32.totalorder %s67, %s69
    %p73 = scmp.eq.s32.totalorder %s12, 0
    %p74 = por %p72, %p73
    %p75 = scmp.ne.s32.totalorder %s67, %s69
    %p76 = scmp.eq.s32.totalorder %s17, 1
    %p77 = por %p75, %p76
    %p78 = scmp.ne.s32.totalorder %s69, %s70
    %p79 = scmp.eq.s32.totalorder %s17, 0
    %p80 = por %p78, %p79
    %p81 = scmp.ne.s32.totalorder %s69, %s70
    %p82 = scmp.eq.s32.totalorder %s18, 1
    %p83 = por %p81, %p82
    %p85 = scmp.ne.s32.totalorder %s70, %s84
    %p86 = scmp.eq.s32.totalorder %s18, 0
    %p87 = por %p85, %p86
    %s89 = sadd.s32 %s88, 1
    %p92 = scmp.eq.s32.totalorder %s12, 1
    %p93 = scmp.ne.s32.totalorder %s88, %s90
    %p94 = scmp.eq.s32.totalorder %s12, 0
    %p95 = por %p93, %p94
    %p96 = scmp.ne.s32.totalorder %s88, %s90
    %p97 = scmp.eq.s32.totalorder %s17, 1
    %p98 = por %p96, %p97
    %p99 = scmp.ne.s32.totalorder %s90, %s91
    %p100 = scmp.eq.s32.totalorder %s17, 0
    %p101 = por %p99, %p100
    %p102 = scmp.ne.s32.totalorder %s90, %s91
    %p103 = scmp.eq.s32.totalorder %s18, 1
    %p104 = por %p102, %p103
    %p106 = scmp.ne.s32.totalorder %s91, %s105
    %p107 = scmp.eq.s32.totalorder %s18, 0
    %p108 = por %p106, %p107
    %s110 = sadd.s32 %s109, 1
    %p113 = scmp.eq.s32.totalorder %s12, 1
    %p114 = scmp.ne.s32.totalorder %s109, %s111
    %p115 = scmp.eq.s32.totalorder %s12, 0
    %p116 = por %p114, %p115
    %p117 = scmp.ne.s32.totalorder %s109, %s111
    %p118 = scmp.eq.s32.totalorder %s17, 1
    %p119 = por %p117, %p118
    %p120 = scmp.ne.s32.totalorder %s111, %s112
    %p121 = scmp.eq.s32.totalorder %s17, 0
    %p122 = por %p120, %p121
    %p123 = scmp.ne.s32.totalorder %s111, %s112
    %p124 = scmp.eq.s32.totalorder %s18, 1
    %p125 = por %p123, %p124
    %p127 = scmp.ne.s32.totalorder %s112, %s126
    %p128 = scmp.eq.s32.totalorder %s18, 0
    %p129 = por %p127, %p128
    %s131 = sadd.s32 %s130, 1
    %p134 = scmp.eq.s32.totalorder %s12, 1
    %p135 = scmp.ne.s32.totalorder %s130, %s132
    %p136 = scmp.eq.s32.totalorder %s12, 0
    %p137 = por %p135, %p136
    %p138 = scmp.ne.s32.totalorder %s130, %s132
    %p139 = scmp.eq.s32.totalorder %s17, 1
    %p140 = por %p138, %p139
    %p141 = scmp.ne.s32.totalorder %s132, %s133
    %p142 = scmp.eq.s32.totalorder %s17, 0
    %p143 = por %p141, %p142
    %p144 = scmp.ne.s32.totalorder %s132, %s133
    %p145 = scmp.eq.s32.totalorder %s18, 1
    %p146 = por %p144, %p145
    %p148 = scmp.ne.s32.totalorder %s133, %s147
    %p149 = scmp.eq.s32.totalorder %s18, 0
    %p150 = por %p148, %p149
    %s151 = ssub.s32 %s12, %s19
    %p152 = scmp.eq.s32.totalorder %s151, 0
    %s154 = sadd.s32 %s153, 1
    %s155 = scalar_select %p152, %s153, %s154
    %p158 = pneg %p152
    %p159 = scmp.eq.s32.totalorder %s12, 1
    %p160 = por %p158, %p159
    %p161 = scmp.ne.s32.totalorder %s153, %s156
    %p162 = scmp.eq.s32.totalorder %s12, 0
    %p163 = por %p161, %p162
    %p164 = scmp.ne.s32.totalorder %s153, %s156
    %p165 = scmp.eq.s32.totalorder %s17, 1
    %p166 = por %p164, %p165
    %p167 = scmp.ne.s32.totalorder %s156, %s157
    %p168 = scmp.eq.s32.totalorder %s17, 0
    %p169 = por %p167, %p168
    %p170 = scmp.ne.s32.totalorder %s156, %s157
    %p171 = scmp.eq.s32.totalorder %s18, 1
    %p172 = por %p170, %p171
    %p174 = scmp.ne.s32.totalorder %s157, %s173
    %p175 = scmp.eq.s32.totalorder %s18, 0
    %p176 = por %p174, %p175
    %p177 = scmp.le.s32.totalorder 1, %s12
    %p178 = scmp.lt.s32.totalorder %s12, 3
    %p179 = pnand %p177, %p178
    %p180 = pneg %p179
    // Predicated region
    $region9: #{tpu_custom_call.1} parent=5 // pred_check
      _
    $region10: #{tpu_custom_call.1} parent=5 // pred_check_branch
      %182 = sbr.rel (%p179) target = $region12
    $region11: #{tpu_custom_call.1} parent=5 // pred_region
      %s183 = ssub.s32 %s12, 1
      // Predicated region
      $region13: #{tpu_custom_call.1} parent=11 // pred_check
        %p184 = pneg %p59
      $region14: #{tpu_custom_call.1} parent=11 // pred_check_branch
        %186 = sbr.rel (%p184) target = $region16
      $region15: #{tpu_custom_call.1} parent=11 // pred_region
        _
      $region16: #{tpu_custom_call.1} parent=11 // pred_fallthru
        _
      // Predicated region
      $region17: #{tpu_custom_call.1} parent=11 // pred_check
        %p187 = pneg %p80
      $region18: #{tpu_custom_call.1} parent=11 // pred_check_branch
        %189 = sbr.rel (%p187) target = $region20
      $region19: #{tpu_custom_call.1} parent=11 // pred_region
        _
      $region20: #{tpu_custom_call.1} parent=11 // pred_fallthru
        _
      // Predicated region
      $region21: #{tpu_custom_call.1} parent=11 // pred_check
        %p190 = pneg %p101
      $region22: #{tpu_custom_call.1} parent=11 // pred_check_branch
        %192 = sbr.rel (%p190) target = $region24
      $region23: #{tpu_custom_call.1} parent=11 // pred_region
        _
      $region24: #{tpu_custom_call.1} parent=11 // pred_fallthru
        _
      // Predicated region
      $region25: #{tpu_custom_call.1} parent=11 // pred_check
        %p193 = pneg %p122
      $region26: #{tpu_custom_call.1} parent=11 // pred_check_branch
        %195 = sbr.rel (%p193) target = $region28
      $region27: #{tpu_custom_call.1} parent=11 // pred_region
        _
      $region28: #{tpu_custom_call.1} parent=11 // pred_fallthru
        _
      // Predicated region
      $region29: #{tpu_custom_call.1} parent=11 // pred_check
        %p196 = pneg %p143
      $region30: #{tpu_custom_call.1} parent=11 // pred_check_branch
        %198 = sbr.rel (%p196) target = $region32
      $region31: #{tpu_custom_call.1} parent=11 // pred_region
        _
      $region32: #{tpu_custom_call.1} parent=11 // pred_fallthru
        _
    $region12: #{tpu_custom_call.1} parent=5 // pred_fallthru
      _
    %p199 = scmp.lt.s32.totalorder %s12, 2
    // Predicated region
    $region33: #{tpu_custom_call.1} parent=5 // pred_check
      %p200 = pneg %p199
    $region34: #{tpu_custom_call.1} parent=5 // pred_check_branch
      %202 = sbr.rel (%p200) target = $region36
    $region35: #{tpu_custom_call.1} parent=5 // pred_region
      // Predicated region
      $region37: #{tpu_custom_call.1} parent=35 // pred_check
        %p203 = pneg %p32
      $region38: #{tpu_custom_call.1} parent=35 // pred_check_branch
        %205 = sbr.rel (%p203) target = $region40
      $region39: #{tpu_custom_call.1} parent=35 // pred_region
        %p206 = scmp.lt.s32.totalorder %s12, 1
        %s207 = scalar_select %p206, %s12, 1
        %s208 = smul.addr %s207, 32
        %s209 = smul.addr %s208, 4
        %s210 = scalar_lea.vmem %s0, %s209
      $region40: #{tpu_custom_call.1} parent=35 // pred_fallthru
        _
    $region36: #{tpu_custom_call.1} parent=5 // pred_fallthru
      _
    %p211 = scmp.le.s32.totalorder 1, %s12
    %p212 = scmp.lt.s32.totalorder %s12, 3
    %p213 = pnand %p211, %p212
    %p214 = pneg %p213
    // Predicated region
    $region41: #{tpu_custom_call.1} parent=5 // pred_check
      _
    $region42: #{tpu_custom_call.1} parent=5 // pred_check_branch
      %216 = sbr.rel (%p213) target = $region44
    $region43: #{tpu_custom_call.1} parent=5 // pred_region
      %s217 = ssub.s32 %s12, 1
      %p218 = scmp.lt.s32.totalorder %s17, 1
      %s219 = scalar_select %p218, %s17, 1
      %s220 = smul.addr %s219, 32
      %s221 = smul.addr %s220, 4
      %s222 = scalar_lea.vmem %s0, %s221
      %p223 = pneg %p38
      %p224 = pneg %p35
      %p225 = pneg %p59
      %p226 = pneg %p56
      %p227 = pneg %p80
      %p228 = pneg %p77
      %p229 = pneg %p101
      %p230 = pneg %p98
      %p231 = pneg %p122
      %p232 = pneg %p119
      %p233 = pneg %p143
      %p234 = pneg %p140
      %p235 = pneg %p169
      %p236 = pneg %p166
      %p237 = scmp.lt.s32.totalorder %s17, 1
      %s238 = scalar_select %p237, %s17, 1
      %s239 = smul.addr %s238, 32
      %s240 = smul.addr %s239, 4
      %s241 = scalar_lea.vmem %s6, %s240
      %p242 = scmp.lt.s32.totalorder %s17, 1
      %s243 = scalar_select %p242, %s17, 1
      %s244 = smul.addr %s243, 32
      %s245 = smul.addr %s244, 4
      %s246 = scalar_lea.vmem %s0, %s245
      %p247 = scmp.lt.s32.totalorder %s17, 1
      %s248 = scalar_select %p247, %s17, 1
      %s249 = smul.addr %s248, 32
      %s250 = smul.addr %s249, 4
      %s251 = scalar_lea.vmem %s6, %s250
      %v253 = vld [vmem:[%s246] sm:$0xf]
      %v254 = vld [vmem:[%s246 + $0x4] sm:$0xf]
      %v255 = vld [vmem:[%s246 + $0x8] sm:$0xf]
      %v256 = vld [vmem:[%s246 + $0xc] sm:$0xf]
      %v257 = vld [vmem:[%s246 + $0x10] sm:$0xf]
      %v258 = vld [vmem:[%s246 + $0x14] sm:$0xf]
      %v259 = vld [vmem:[%s246 + $0x18] sm:$0xf]
      %v260 = vld [vmem:[%s246 + $0x1c] sm:$0xf]
      %v261 = vld [vmem:[%s246 + $0x20] sm:$0xf]
      %v262 = vld [vmem:[%s246 + $0x24] sm:$0xf]
      %v263 = vld [vmem:[%s246 + $0x28] sm:$0xf]
      %v264 = vld [vmem:[%s246 + $0x2c] sm:$0xf]
      %v265 = vld [vmem:[%s246 + $0x30] sm:$0xf]
      %v266 = vld [vmem:[%s246 + $0x34] sm:$0xf]
      %v267 = vld [vmem:[%s246 + $0x38] sm:$0xf]
      %v268 = vld [vmem:[%s246 + $0x3c] sm:$0xf]
      %v269 = vld [vmem:[%s246 + $0x40] sm:$0xf]
      %v270 = vld [vmem:[%s246 + $0x44] sm:$0xf]
      %v271 = vld [vmem:[%s246 + $0x48] sm:$0xf]
      %v272 = vld [vmem:[%s246 + $0x4c] sm:$0xf]
      %v273 = vld [vmem:[%s246 + $0x50] sm:$0xf]
      %v274 = vld [vmem:[%s246 + $0x54] sm:$0xf]
      %v275 = vld [vmem:[%s246 + $0x58] sm:$0xf]
      %v276 = vld [vmem:[%s246 + $0x5c] sm:$0xf]
      %v277 = vld [vmem:[%s246 + $0x60] sm:$0xf]
      %v278 = vld [vmem:[%s246 + $0x64] sm:$0xf]
      %v279 = vld [vmem:[%s246 + $0x68] sm:$0xf]
      %v280 = vld [vmem:[%s246 + $0x6c] sm:$0xf]
      %v281 = vld [vmem:[%s246 + $0x70] sm:$0xf]
      %v282 = vld [vmem:[%s246 + $0x74] sm:$0xf]
      %v283 = vld [vmem:[%s246 + $0x78] sm:$0xf]
      %v284 = vld [vmem:[%s246 + $0x7c] sm:$0xf]
      %v285 = vunpack.c.l.bf16 %v253
      %v286 = vunpack.c.l.bf16 %v254
      %v287 = vunpack.c.l.bf16 %v255
      %v288 = vunpack.c.l.bf16 %v256
      %v289 = vunpack.c.l.bf16 %v257
      %v290 = vunpack.c.l.bf16 %v258
      %v291 = vunpack.c.l.bf16 %v259
      %v292 = vunpack.c.l.bf16 %v260
      %v293 = vunpack.c.l.bf16 %v261
      %v294 = vunpack.c.l.bf16 %v262
      %v295 = vunpack.c.l.bf16 %v263
      %v296 = vunpack.c.l.bf16 %v264
      %v297 = vunpack.c.l.bf16 %v265
      %v298 = vunpack.c.l.bf16 %v266
      %v299 = vunpack.c.l.bf16 %v267
      %v300 = vunpack.c.l.bf16 %v268
      %v301 = vunpack.c.l.bf16 %v269
      %v302 = vunpack.c.l.bf16 %v270
      %v303 = vunpack.c.l.bf16 %v271
      %v304 = vunpack.c.l.bf16 %v272
      %v305 = vunpack.c.l.bf16 %v273
      %v306 = vunpack.c.l.bf16 %v274
      %v307 = vunpack.c.l.bf16 %v275
      %v308 = vunpack.c.l.bf16 %v276
      %v309 = vunpack.c.l.bf16 %v277
      %v310 = vunpack.c.l.bf16 %v278
      %v311 = vunpack.c.l.bf16 %v279
      %v312 = vunpack.c.l.bf16 %v280
      %v313 = vunpack.c.l.bf16 %v281
      %v314 = vunpack.c.l.bf16 %v282
      %v315 = vunpack.c.l.bf16 %v283
      %v316 = vunpack.c.l.bf16 %v284
      %v317 = vld [vmem:[%s1] sm:$0xf]
      %v318 = vld [vmem:[%s1 + $0x4] sm:$0xf]
      %v319 = vld [vmem:[%s1 + $0x8] sm:$0xf]
      %v320 = vld [vmem:[%s1 + $0xc] sm:$0xf]
      %v321 = vld [vmem:[%s1 + $0x10] sm:$0xf]
      %v322 = vld [vmem:[%s1 + $0x14] sm:$0xf]
      %v323 = vld [vmem:[%s1 + $0x18] sm:$0xf]
      %v324 = vld [vmem:[%s1 + $0x1c] sm:$0xf]
      %v325 = vld [vmem:[%s1 + $0x20] sm:$0xf]
      %v326 = vld [vmem:[%s1 + $0x24] sm:$0xf]
      %v327 = vld [vmem:[%s1 + $0x28] sm:$0xf]
      %v328 = vld [vmem:[%s1 + $0x2c] sm:$0xf]
      %v329 = vld [vmem:[%s1 + $0x30] sm:$0xf]
      %v330 = vld [vmem:[%s1 + $0x34] sm:$0xf]
      %v331 = vld [vmem:[%s1 + $0x38] sm:$0xf]
      %v332 = vld [vmem:[%s1 + $0x3c] sm:$0xf]
      %v333 = vld [vmem:[%s1 + $0x40] sm:$0xf]
      %v334 = vld [vmem:[%s1 + $0x44] sm:$0xf]
      %v335 = vld [vmem:[%s1 + $0x48] sm:$0xf]
      %v336 = vld [vmem:[%s1 + $0x4c] sm:$0xf]
      %v337 = vld [vmem:[%s1 + $0x50] sm:$0xf]
      %v338 = vld [vmem:[%s1 + $0x54] sm:$0xf]
      %v339 = vld [vmem:[%s1 + $0x58] sm:$0xf]
      %v340 = vld [vmem:[%s1 + $0x5c] sm:$0xf]
      %v341 = vld [vmem:[%s1 + $0x60] sm:$0xf]
      %v342 = vld [vmem:[%s1 + $0x64] sm:$0xf]
      %v343 = vld [vmem:[%s1 + $0x68] sm:$0xf]
      %v344 = vld [vmem:[%s1 + $0x6c] sm:$0xf]
      %v345 = vld [vmem:[%s1 + $0x70] sm:$0xf]
      %v346 = vld [vmem:[%s1 + $0x74] sm:$0xf]
      %v347 = vld [vmem:[%s1 + $0x78] sm:$0xf]
      %v348 = vld [vmem:[%s1 + $0x7c] sm:$0xf]
      %v349 = vunpack.c.l.bf16 %v317
      %v350 = vunpack.c.l.bf16 %v318
      %v351 = vunpack.c.l.bf16 %v319
      %v352 = vunpack.c.l.bf16 %v320
      %v353 = vunpack.c.l.bf16 %v321
      %v354 = vunpack.c.l.bf16 %v322
      %v355 = vunpack.c.l.bf16 %v323
      %v356 = vunpack.c.l.bf16 %v324
      %v357 = vunpack.c.l.bf16 %v325
      %v358 = vunpack.c.l.bf16 %v326
      %v359 = vunpack.c.l.bf16 %v327
      %v360 = vunpack.c.l.bf16 %v328
      %v361 = vunpack.c.l.bf16 %v329
      %v362 = vunpack.c.l.bf16 %v330
      %v363 = vunpack.c.l.bf16 %v331
      %v364 = vunpack.c.l.bf16 %v332
      %v365 = vunpack.c.l.bf16 %v333
      %v366 = vunpack.c.l.bf16 %v334
      %v367 = vunpack.c.l.bf16 %v335
      %v368 = vunpack.c.l.bf16 %v336
      %v369 = vunpack.c.l.bf16 %v337
      %v370 = vunpack.c.l.bf16 %v338
      %v371 = vunpack.c.l.bf16 %v339
      %v372 = vunpack.c.l.bf16 %v340
      %v373 = vunpack.c.l.bf16 %v341
      %v374 = vunpack.c.l.bf16 %v342
      %v375 = vunpack.c.l.bf16 %v343
      %v376 = vunpack.c.l.bf16 %v344
      %v377 = vunpack.c.l.bf16 %v345
      %v378 = vunpack.c.l.bf16 %v346
      %v379 = vunpack.c.l.bf16 %v347
      %v380 = vunpack.c.l.bf16 %v348
      %v381 = vmul.f32 %v285, %v349
      %v382 = vmul.f32 %v286, %v350
      %v383 = vmul.f32 %v287, %v351
      %v384 = vmul.f32 %v288, %v352
      %v385 = vmul.f32 %v289, %v353
      %v386 = vmul.f32 %v290, %v354
      %v387 = vmul.f32 %v291, %v355
      %v388 = vmul.f32 %v292, %v356
      %v389 = vmul.f32 %v293, %v357
      %v390 = vmul.f32 %v294, %v358
      %v391 = vmul.f32 %v295, %v359
      %v392 = vmul.f32 %v296, %v360
      %v393 = vmul.f32 %v297, %v361
      %v394 = vmul.f32 %v298, %v362
      %v395 = vmul.f32 %v299, %v363
      %v396 = vmul.f32 %v300, %v364
      %v397 = vmul.f32 %v301, %v365
      %v398 = vmul.f32 %v302, %v366
      %v399 = vmul.f32 %v303, %v367
      %v400 = vmul.f32 %v304, %v368
      %v401 = vmul.f32 %v305, %v369
      %v402 = vmul.f32 %v306, %v370
      %v403 = vmul.f32 %v307, %v371
      %v404 = vmul.f32 %v308, %v372
      %v405 = vmul.f32 %v309, %v373
      %v406 = vmul.f32 %v310, %v374
      %v407 = vmul.f32 %v311, %v375
      %v408 = vmul.f32 %v312, %v376
      %v409 = vmul.f32 %v313, %v377
      %v410 = vmul.f32 %v314, %v378
      %v411 = vmul.f32 %v315, %v379
      %v412 = vmul.f32 %v316, %v380
      %v413 = vpack.c.bf16 %v381, %v381
      %v414 = vpack.c.bf16 %v382, %v382
      %v415 = vpack.c.bf16 %v383, %v383
      %v416 = vpack.c.bf16 %v384, %v384
      %v417 = vpack.c.bf16 %v385, %v385
      %v418 = vpack.c.bf16 %v386, %v386
      %v419 = vpack.c.bf16 %v387, %v387
      %v420 = vpack.c.bf16 %v388, %v388
      %v421 = vpack.c.bf16 %v389, %v389
      %v422 = vpack.c.bf16 %v390, %v390
      %v423 = vpack.c.bf16 %v391, %v391
      %v424 = vpack.c.bf16 %v392, %v392
      %v425 = vpack.c.bf16 %v393, %v393
      %v426 = vpack.c.bf16 %v394, %v394
      %v427 = vpack.c.bf16 %v395, %v395
      %v428 = vpack.c.bf16 %v396, %v396
      %v429 = vpack.c.bf16 %v397, %v397
      %v430 = vpack.c.bf16 %v398, %v398
      %v431 = vpack.c.bf16 %v399, %v399
      %v432 = vpack.c.bf16 %v400, %v400
      %v433 = vpack.c.bf16 %v401, %v401
      %v434 = vpack.c.bf16 %v402, %v402
      %v435 = vpack.c.bf16 %v403, %v403
      %v436 = vpack.c.bf16 %v404, %v404
      %v437 = vpack.c.bf16 %v405, %v405
      %v438 = vpack.c.bf16 %v406, %v406
      %v439 = vpack.c.bf16 %v407, %v407
      %v440 = vpack.c.bf16 %v408, %v408
      %v441 = vpack.c.bf16 %v409, %v409
      %v442 = vpack.c.bf16 %v410, %v410
      %v443 = vpack.c.bf16 %v411, %v411
      %v444 = vpack.c.bf16 %v412, %v412
      %vm445 = vcmask 27648
      %446 = vst.msk [vmem:[#allocation2] sm:$0xf] %vm445, 0
      %447 = vst.msk [vmem:[#allocation2 + $0x4] sm:$0xf] %vm445, 0
      %vm448 = vcmask 24576
      %449 = vst.msk [vmem:[#allocation2 + $0x8] sm:$0x1] %vm448, 0
      %s450 = scalar_lea.vmem [#allocation2], 204
      %451 = vst.msk [vmem:[%s450] sm:$0xf] %vm445, 0
      %452 = vst.msk [vmem:[%s450 + $0x4] sm:$0xf] %vm445, 0
      %453 = vst.msk [vmem:[%s450 + $0x8] sm:$0x1] %vm448, 0
      %vm454 = vcmask 24576
      %vm455 = vsmask.f32 256
      %vm456 = vmand %vm454, %vm455
      %v457 = vld [vmem:[#allocation2] sm:$0x1]
      %v458 = vsel %vm456, 0, %v457
      %459 = vst [vmem:[#allocation2] sm:$0x1] %v458
      %v460 = vld [vmem:[#allocation2 + $0xc] sm:$0x1]
      %v461 = vsel %vm456, 0, %v460
      %462 = vst [vmem:[#allocation2 + $0xc] sm:$0x1] %v461
      %v463 = vld [vmem:[#allocation2 + $0x18] sm:$0x1]
      %v464 = vsel %vm456, 0, %v463
      %465 = vst [vmem:[#allocation2 + $0x18] sm:$0x1] %v464
      %v466 = vld [vmem:[#allocation2 + $0x24] sm:$0x1]
      %v467 = vsel %vm456, 0, %v466
      %468 = vst [vmem:[#allocation2 + $0x24] sm:$0x1] %v467
      %v469 = vld [vmem:[#allocation2 + $0x30] sm:$0x1]
      %v470 = vsel %vm456, 0, %v469
      %471 = vst [vmem:[#allocation2 + $0x30] sm:$0x1] %v470
      %v472 = vld [vmem:[#allocation2 + $0x3c] sm:$0x1]
      %v473 = vsel %vm456, 0, %v472
      %474 = vst [vmem:[#allocation2 + $0x3c] sm:$0x1] %v473
      %v475 = vld [vmem:[#allocation2 + $0x48] sm:$0x1]
      %v476 = vsel %vm456, 0, %v475
      %477 = vst [vmem:[#allocation2 + $0x48] sm:$0x1] %v476
      %v478 = vld [vmem:[#allocation2 + $0x54] sm:$0x1]
      %v479 = vsel %vm456, 0, %v478
      %480 = vst [vmem:[#allocation2 + $0x54] sm:$0x1] %v479
      %v481 = vld [vmem:[#allocation2 + $0x60] sm:$0x1]
      %v482 = vsel %vm456, 0, %v481
      %483 = vst [vmem:[#allocation2 + $0x60] sm:$0x1] %v482
      %v484 = vld [vmem:[#allocation2 + $0x6c] sm:$0x1]
      %v485 = vsel %vm456, 0, %v484
      %486 = vst [vmem:[#allocation2 + $0x6c] sm:$0x1] %v485
      %v487 = vld [vmem:[#allocation2 + $0x78] sm:$0x1]
      %v488 = vsel %vm456, 0, %v487
      %489 = vst [vmem:[#allocation2 + $0x78] sm:$0x1] %v488
      %v490 = vld [vmem:[#allocation2 + $0x84] sm:$0x1]
      %v491 = vsel %vm456, 0, %v490
      %492 = vst [vmem:[#allocation2 + $0x84] sm:$0x1] %v491
      %v493 = vld [vmem:[#allocation2 + $0x90] sm:$0x1]
      %v494 = vsel %vm456, 0, %v493
      %495 = vst [vmem:[#allocation2 + $0x90] sm:$0x1] %v494
      %v496 = vld [vmem:[#allocation2 + $0x9c] sm:$0x1]
      %v497 = vsel %vm456, 0, %v496
      %498 = vst [vmem:[#allocation2 + $0x9c] sm:$0x1] %v497
      %v499 = vld [vmem:[#allocation2 + $0xa8] sm:$0x1]
      %v500 = vsel %vm456, 0, %v499
      %501 = vst [vmem:[#allocation2 + $0xa8] sm:$0x1] %v500
      %v502 = vld [vmem:[#allocation2 + $0xb4] sm:$0x1]
      %v503 = vsel %vm456, 0, %v502
      %504 = vst [vmem:[#allocation2 + $0xb4] sm:$0x1] %v503
      %v505 = vld [vmem:[#allocation2 + $0xc0] sm:$0x1]
      %v506 = vsel %vm456, 0, %v505
      %507 = vst [vmem:[#allocation2 + $0xc0] sm:$0x1] %v506
      %v508 = vld [vmem:[#allocation2 + $0xcc] sm:$0x1]
      %v509 = vsel %vm456, 0, %v508
      %510 = vst [vmem:[#allocation2 + $0xcc] sm:$0x1] %v509
      %vm511 = vsmask.f32 7938
      %vm512 = vmand %vm454, %vm511
      %v513 = vld [vmem:[#allocation2 + $0x8] sm:$0x1]
      %v514 = vsel %vm512, 0, %v513
      %515 = vst [vmem:[#allocation2 + $0x8] sm:$0x1] %v514
      %v516 = vld [vmem:[#allocation2 + $0x14] sm:$0x1]
      %v517 = vsel %vm512, 0, %v516
      %518 = vst [vmem:[#allocation2 + $0x14] sm:$0x1] %v517
      %v519 = vld [vmem:[#allocation2 + $0x20] sm:$0x1]
      %v520 = vsel %vm512, 0, %v519
      %521 = vst [vmem:[#allocation2 + $0x20] sm:$0x1] %v520
      %v522 = vld [vmem:[#allocation2 + $0x2c] sm:$0x1]
      %v523 = vsel %vm512, 0, %v522
      %524 = vst [vmem:[#allocation2 + $0x2c] sm:$0x1] %v523
      %v525 = vld [vmem:[#allocation2 + $0x38] sm:$0x1]
      %v526 = vsel %vm512, 0, %v525
      %527 = vst [vmem:[#allocation2 + $0x38] sm:$0x1] %v526
      %v528 = vld [vmem:[#allocation2 + $0x44] sm:$0x1]
      %v529 = vsel %vm512, 0, %v528
      %530 = vst [vmem:[#allocation2 + $0x44] sm:$0x1] %v529
      %v531 = vld [vmem:[#allocation2 + $0x50] sm:$0x1]
      %v532 = vsel %vm512, 0, %v531
      %533 = vst [vmem:[#allocation2 + $0x50] sm:$0x1] %v532
      %v534 = vld [vmem:[#allocation2 + $0x5c] sm:$0x1]
      %v535 = vsel %vm512, 0, %v534
      %536 = vst [vmem:[#allocation2 + $0x5c] sm:$0x1] %v535
      %v537 = vld [vmem:[#allocation2 + $0x68] sm:$0x1]
      %v538 = vsel %vm512, 0, %v537
      %539 = vst [vmem:[#allocation2 + $0x68] sm:$0x1] %v538
      %v540 = vld [vmem:[#allocation2 + $0x74] sm:$0x1]
      %v541 = vsel %vm512, 0, %v540
      %542 = vst [vmem:[#allocation2 + $0x74] sm:$0x1] %v541
      %v543 = vld [vmem:[#allocation2 + $0x80] sm:$0x1]
      %v544 = vsel %vm512, 0, %v543
      %545 = vst [vmem:[#allocation2 + $0x80] sm:$0x1] %v544
      %v546 = vld [vmem:[#allocation2 + $0x8c] sm:$0x1]
      %v547 = vsel %vm512, 0, %v546
      %548 = vst [vmem:[#allocation2 + $0x8c] sm:$0x1] %v547
      %v549 = vld [vmem:[#allocation2 + $0x98] sm:$0x1]
      %v550 = vsel %vm512, 0, %v549
      %551 = vst [vmem:[#allocation2 + $0x98] sm:$0x1] %v550
      %v552 = vld [vmem:[#allocation2 + $0xa4] sm:$0x1]
      %v553 = vsel %vm512, 0, %v552
      %554 = vst [vmem:[#allocation2 + $0xa4] sm:$0x1] %v553
      %v555 = vld [vmem:[#allocation2 + $0xb0] sm:$0x1]
      %v556 = vsel %vm512, 0, %v555
      %557 = vst [vmem:[#allocation2 + $0xb0] sm:$0x1] %v556
      %v558 = vld [vmem:[#allocation2 + $0xbc] sm:$0x1]
      %v559 = vsel %vm512, 0, %v558
      %560 = vst [vmem:[#allocation2 + $0xbc] sm:$0x1] %v559
      %v561 = vld [vmem:[#allocation2 + $0xc8] sm:$0x1]
      %v562 = vsel %vm512, 0, %v561
      %563 = vst [vmem:[#allocation2 + $0xc8] sm:$0x1] %v562
      %v564 = vld [vmem:[#allocation2 + $0xd4] sm:$0x1]
      %v565 = vsel %vm512, 0, %v564
      %566 = vst [vmem:[#allocation2 + $0xd4] sm:$0x1] %v565
      %vm567 = vsmask.f32 4368
      %vm568 = vmor %vm455, %vm567
      %v570 = vshrl.u32 %v413, 16
      %v572 = vrot.slane %v570, 7
      %v573 = vshll.u32 %v413, 16
      %v575 = vor.u32 %v572, %v573
      %v576 = vrot.slane %v572, 4
      %v578 = vshrl.u32 %v414, 16
      %v580 = vrot.slane %v578, 7
      %v581 = vshll.u32 %v414, 16
      %v583 = vor.u32 %v580, %v581
      %v584 = vsel %vm568, %v576, %v583
      %v585 = vrot.slane %v580, 4
      %v587 = vshrl.u32 %v415, 16
      %v589 = vrot.slane %v587, 7
      %v590 = vshll.u32 %v415, 16
      %v592 = vor.u32 %v589, %v590
      %v593 = vrot.slane %v589, 4
      %v595 = vshrl.u32 %v416, 16
      %v597 = vrot.slane %v595, 7
      %v598 = vshll.u32 %v416, 16
      %v600 = vor.u32 %v597, %v598
      %v601 = vsel %vm568, %v593, %v600
      %v602 = vrot.slane %v597, 4
      %v604 = vshrl.u32 %v417, 16
      %v606 = vrot.slane %v604, 7
      %v607 = vshll.u32 %v417, 16
      %v609 = vor.u32 %v606, %v607
      %v610 = vrot.slane %v606, 4
      %v612 = vshrl.u32 %v418, 16
      %v614 = vrot.slane %v612, 7
      %v615 = vshll.u32 %v418, 16
      %v617 = vor.u32 %v614, %v615
      %v618 = vsel %vm568, %v610, %v617
      %v619 = vrot.slane %v614, 4
      %v621 = vshrl.u32 %v419, 16
      %v623 = vrot.slane %v621, 7
      %v624 = vshll.u32 %v419, 16
      %v626 = vor.u32 %v623, %v624
      %v627 = vrot.slane %v623, 4
      %v629 = vshrl.u32 %v420, 16
      %v631 = vrot.slane %v629, 7
      %v632 = vshll.u32 %v420, 16
      %v634 = vor.u32 %v631, %v632
      %v635 = vsel %vm568, %v627, %v634
      %v636 = vrot.slane %v631, 4
      %v638 = vshrl.u32 %v421, 16
      %v640 = vrot.slane %v638, 7
      %v641 = vshll.u32 %v421, 16
      %v643 = vor.u32 %v640, %v641
      %v644 = vrot.slane %v640, 4
      %v646 = vshrl.u32 %v422, 16
      %v648 = vrot.slane %v646, 7
      %v649 = vshll.u32 %v422, 16
      %v651 = vor.u32 %v648, %v649
      %v652 = vsel %vm568, %v644, %v651
      %v653 = vrot.slane %v648, 4
      %v655 = vshrl.u32 %v423, 16
      %v657 = vrot.slane %v655, 7
      %v658 = vshll.u32 %v423, 16
      %v660 = vor.u32 %v657, %v658
      %v661 = vrot.slane %v657, 4
      %v663 = vshrl.u32 %v424, 16
      %v665 = vrot.slane %v663, 7
      %v666 = vshll.u32 %v424, 16
      %v668 = vor.u32 %v665, %v666
      %v669 = vsel %vm568, %v661, %v668
      %v670 = vrot.slane %v665, 4
      %v672 = vshrl.u32 %v425, 16
      %v674 = vrot.slane %v672, 7
      %v675 = vshll.u32 %v425, 16
      %v677 = vor.u32 %v674, %v675
      %v678 = vrot.slane %v674, 4
      %v680 = vshrl.u32 %v426, 16
      %v682 = vrot.slane %v680, 7
      %v683 = vshll.u32 %v426, 16
      %v685 = vor.u32 %v682, %v683
      %v686 = vsel %vm568, %v678, %v685
      %v687 = vrot.slane %v682, 4
      %v689 = vshrl.u32 %v427, 16
      %v691 = vrot.slane %v689, 7
      %v692 = vshll.u32 %v427, 16
      %v694 = vor.u32 %v691, %v692
      %v695 = vrot.slane %v691, 4
      %v697 = vshrl.u32 %v428, 16
      %v699 = vrot.slane %v697, 7
      %v700 = vshll.u32 %v428, 16
      %v702 = vor.u32 %v699, %v700
      %v703 = vsel %vm568, %v695, %v702
      %v704 = vrot.slane %v699, 4
      %v706 = vshrl.u32 %v429, 16
      %v708 = vrot.slane %v706, 7
      %v709 = vshll.u32 %v429, 16
      %v711 = vor.u32 %v708, %v709
      %v712 = vrot.slane %v708, 4
      %v714 = vshrl.u32 %v430, 16
      %v716 = vrot.slane %v714, 7
      %v717 = vshll.u32 %v430, 16
      %v719 = vor.u32 %v716, %v717
      %v720 = vsel %vm568, %v712, %v719
      %v721 = vrot.slane %v716, 4
      %v723 = vshrl.u32 %v431, 16
      %v725 = vrot.slane %v723, 7
      %v726 = vshll.u32 %v431, 16
      %v728 = vor.u32 %v725, %v726
      %v729 = vrot.slane %v725, 4
      %v731 = vshrl.u32 %v432, 16
      %v733 = vrot.slane %v731, 7
      %v734 = vshll.u32 %v432, 16
      %v736 = vor.u32 %v733, %v734
      %v737 = vsel %vm568, %v729, %v736
      %v738 = vrot.slane %v733, 4
      %v740 = vshrl.u32 %v433, 16
      %v742 = vrot.slane %v740, 7
      %v743 = vshll.u32 %v433, 16
      %v745 = vor.u32 %v742, %v743
      %v746 = vrot.slane %v742, 4
      %v748 = vshrl.u32 %v434, 16
      %v750 = vrot.slane %v748, 7
      %v751 = vshll.u32 %v434, 16
      %v753 = vor.u32 %v750, %v751
      %v754 = vsel %vm568, %v746, %v753
      %v755 = vrot.slane %v750, 4
      %v757 = vshrl.u32 %v435, 16
      %v759 = vrot.slane %v757, 7
      %v760 = vshll.u32 %v435, 16
      %v762 = vor.u32 %v759, %v760
      %v763 = vrot.slane %v759, 4
      %v765 = vshrl.u32 %v436, 16
      %v767 = vrot.slane %v765, 7
      %v768 = vshll.u32 %v436, 16
      %v770 = vor.u32 %v767, %v768
      %v771 = vsel %vm568, %v763, %v770
      %v772 = vrot.slane %v767, 4
      %v774 = vshrl.u32 %v437, 16
      %v776 = vrot.slane %v774, 7
      %v777 = vshll.u32 %v437, 16
      %v779 = vor.u32 %v776, %v777
      %v780 = vrot.slane %v776, 4
      %v782 = vshrl.u32 %v438, 16
      %v784 = vrot.slane %v782, 7
      %v785 = vshll.u32 %v438, 16
      %v787 = vor.u32 %v784, %v785
      %v788 = vsel %vm568, %v780, %v787
      %v789 = vrot.slane %v784, 4
      %v791 = vshrl.u32 %v439, 16
      %v793 = vrot.slane %v791, 7
      %v794 = vshll.u32 %v439, 16
      %v796 = vor.u32 %v793, %v794
      %v797 = vrot.slane %v793, 4
      %v799 = vshrl.u32 %v440, 16
      %v801 = vrot.slane %v799, 7
      %v802 = vshll.u32 %v440, 16
      %v804 = vor.u32 %v801, %v802
      %v805 = vsel %vm568, %v797, %v804
      %v806 = vrot.slane %v801, 4
      %v808 = vshrl.u32 %v441, 16
      %v810 = vrot.slane %v808, 7
      %v811 = vshll.u32 %v441, 16
      %v813 = vor.u32 %v810, %v811
      %v814 = vrot.slane %v810, 4
      %v816 = vshrl.u32 %v442, 16
      %v818 = vrot.slane %v816, 7
      %v819 = vshll.u32 %v442, 16
      %v821 = vor.u32 %v818, %v819
      %v822 = vsel %vm568, %v814, %v821
      %v823 = vrot.slane %v818, 4
      %v825 = vshrl.u32 %v443, 16
      %v827 = vrot.slane %v825, 7
      %v828 = vshll.u32 %v443, 16
      %v830 = vor.u32 %v827, %v828
      %v831 = vrot.slane %v827, 4
      %v833 = vshrl.u32 %v444, 16
      %v835 = vrot.slane %v833, 7
      %v836 = vshll.u32 %v444, 16
      %v838 = vor.u32 %v835, %v836
      %v839 = vsel %vm568, %v831, %v838
      %v840 = vrot.slane %v835, 4
      %s889 = scalar_lea.vmem [#allocation2], 12
      %vm890 = vcmask 27648
      %vm891 = vmand %vm890, %vm511
      %v892 = vld [vmem:[%s889] sm:$0xf]
      %v893 = vsel %vm891, %v575, %v892
      %894 = vst [vmem:[%s889] sm:$0xf] %v893
      %895 = vst.msk [vmem:[%s889 + $0x4] sm:$0xf] %vm445, %v584
      %v896 = vld [vmem:[%s889 + $0x8] sm:$0x1]
      %v897 = vsel %vm456, %v585, %v896
      %898 = vst [vmem:[%s889 + $0x8] sm:$0x1] %v897
      %v899 = vld [vmem:[%s889 + $0xc] sm:$0xf]
      %v900 = vsel %vm891, %v592, %v899
      %901 = vst [vmem:[%s889 + $0xc] sm:$0xf] %v900
      %902 = vst.msk [vmem:[%s889 + $0x10] sm:$0xf] %vm445, %v601
      %v903 = vld [vmem:[%s889 + $0x14] sm:$0x1]
      %v904 = vsel %vm456, %v602, %v903
      %905 = vst [vmem:[%s889 + $0x14] sm:$0x1] %v904
      %v906 = vld [vmem:[%s889 + $0x18] sm:$0xf]
      %v907 = vsel %vm891, %v609, %v906
      %908 = vst [vmem:[%s889 + $0x18] sm:$0xf] %v907
      %909 = vst.msk [vmem:[%s889 + $0x1c] sm:$0xf] %vm445, %v618
      %v910 = vld [vmem:[%s889 + $0x20] sm:$0x1]
      %v911 = vsel %vm456, %v619, %v910
      %912 = vst [vmem:[%s889 + $0x20] sm:$0x1] %v911
      %v913 = vld [vmem:[%s889 + $0x24] sm:$0xf]
      %v914 = vsel %vm891, %v626, %v913
      %915 = vst [vmem:[%s889 + $0x24] sm:$0xf] %v914
      %916 = vst.msk [vmem:[%s889 + $0x28] sm:$0xf] %vm445, %v635
      %v917 = vld [vmem:[%s889 + $0x2c] sm:$0x1]
      %v918 = vsel %vm456, %v636, %v917
      %919 = vst [vmem:[%s889 + $0x2c] sm:$0x1] %v918
      %v920 = vld [vmem:[%s889 + $0x30] sm:$0xf]
      %v921 = vsel %vm891, %v643, %v920
      %922 = vst [vmem:[%s889 + $0x30] sm:$0xf] %v921
      %923 = vst.msk [vmem:[%s889 + $0x34] sm:$0xf] %vm445, %v652
      %v924 = vld [vmem:[%s889 + $0x38] sm:$0x1]
      %v925 = vsel %vm456, %v653, %v924
      %926 = vst [vmem:[%s889 + $0x38] sm:$0x1] %v925
      %v927 = vld [vmem:[%s889 + $0x3c] sm:$0xf]
      %v928 = vsel %vm891, %v660, %v927
      %929 = vst [vmem:[%s889 + $0x3c] sm:$0xf] %v928
      %930 = vst.msk [vmem:[%s889 + $0x40] sm:$0xf] %vm445, %v669
      %v931 = vld [vmem:[%s889 + $0x44] sm:$0x1]
      %v932 = vsel %vm456, %v670, %v931
      %933 = vst [vmem:[%s889 + $0x44] sm:$0x1] %v932
      %v934 = vld [vmem:[%s889 + $0x48] sm:$0xf]
      %v935 = vsel %vm891, %v677, %v934
      %936 = vst [vmem:[%s889 + $0x48] sm:$0xf] %v935
      %937 = vst.msk [vmem:[%s889 + $0x4c] sm:$0xf] %vm445, %v686
      %v938 = vld [vmem:[%s889 + $0x50] sm:$0x1]
      %v939 = vsel %vm456, %v687, %v938
      %940 = vst [vmem:[%s889 + $0x50] sm:$0x1] %v939
      %v941 = vld [vmem:[%s889 + $0x54] sm:$0xf]
      %v942 = vsel %vm891, %v694, %v941
      %943 = vst [vmem:[%s889 + $0x54] sm:$0xf] %v942
      %944 = vst.msk [vmem:[%s889 + $0x58] sm:$0xf] %vm445, %v703
      %v945 = vld [vmem:[%s889 + $0x5c] sm:$0x1]
      %v946 = vsel %vm456, %v704, %v945
      %947 = vst [vmem:[%s889 + $0x5c] sm:$0x1] %v946
      %v948 = vld [vmem:[%s889 + $0x60] sm:$0xf]
      %v949 = vsel %vm891, %v711, %v948
      %950 = vst [vmem:[%s889 + $0x60] sm:$0xf] %v949
      %951 = vst.msk [vmem:[%s889 + $0x64] sm:$0xf] %vm445, %v720
      %v952 = vld [vmem:[%s889 + $0x68] sm:$0x1]
      %v953 = vsel %vm456, %v721, %v952
      %954 = vst [vmem:[%s889 + $0x68] sm:$0x1] %v953
      %v955 = vld [vmem:[%s889 + $0x6c] sm:$0xf]
      %v956 = vsel %vm891, %v728, %v955
      %957 = vst [vmem:[%s889 + $0x6c] sm:$0xf] %v956
      %958 = vst.msk [vmem:[%s889 + $0x70] sm:$0xf] %vm445, %v737
      %v959 = vld [vmem:[%s889 + $0x74] sm:$0x1]
      %v960 = vsel %vm456, %v738, %v959
      %961 = vst [vmem:[%s889 + $0x74] sm:$0x1] %v960
      %v962 = vld [vmem:[%s889 + $0x78] sm:$0xf]
      %v963 = vsel %vm891, %v745, %v962
      %964 = vst [vmem:[%s889 + $0x78] sm:$0xf] %v963
      %965 = vst.msk [vmem:[%s889 + $0x7c] sm:$0xf] %vm445, %v754
      %v966 = vld [vmem:[%s889 + $0x80] sm:$0x1]
      %v967 = vsel %vm456, %v755, %v966
      %968 = vst [vmem:[%s889 + $0x80] sm:$0x1] %v967
      %v969 = vld [vmem:[%s889 + $0x84] sm:$0xf]
      %v970 = vsel %vm891, %v762, %v969
      %971 = vst [vmem:[%s889 + $0x84] sm:$0xf] %v970
      %972 = vst.msk [vmem:[%s889 + $0x88] sm:$0xf] %vm445, %v771
      %v973 = vld [vmem:[%s889 + $0x8c] sm:$0x1]
      %v974 = vsel %vm456, %v772, %v973
      %975 = vst [vmem:[%s889 + $0x8c] sm:$0x1] %v974
      %v976 = vld [vmem:[%s889 + $0x90] sm:$0xf]
      %v977 = vsel %vm891, %v779, %v976
      %978 = vst [vmem:[%s889 + $0x90] sm:$0xf] %v977
      %979 = vst.msk [vmem:[%s889 + $0x94] sm:$0xf] %vm445, %v788
      %v980 = vld [vmem:[%s889 + $0x98] sm:$0x1]
      %v981 = vsel %vm456, %v789, %v980
      %982 = vst [vmem:[%s889 + $0x98] sm:$0x1] %v981
      %v983 = vld [vmem:[%s889 + $0x9c] sm:$0xf]
      %v984 = vsel %vm891, %v796, %v983
      %985 = vst [vmem:[%s889 + $0x9c] sm:$0xf] %v984
      %986 = vst.msk [vmem:[%s889 + $0xa0] sm:$0xf] %vm445, %v805
      %v987 = vld [vmem:[%s889 + $0xa4] sm:$0x1]
      %v988 = vsel %vm456, %v806, %v987
      %989 = vst [vmem:[%s889 + $0xa4] sm:$0x1] %v988
      %v990 = vld [vmem:[%s889 + $0xa8] sm:$0xf]
      %v991 = vsel %vm891, %v813, %v990
      %992 = vst [vmem:[%s889 + $0xa8] sm:$0xf] %v991
      %993 = vst.msk [vmem:[%s889 + $0xac] sm:$0xf] %vm445, %v822
      %v994 = vld [vmem:[%s889 + $0xb0] sm:$0x1]
      %v995 = vsel %vm456, %v823, %v994
      %996 = vst [vmem:[%s889 + $0xb0] sm:$0x1] %v995
      %v997 = vld [vmem:[%s889 + $0xb4] sm:$0xf]
      %v998 = vsel %vm891, %v830, %v997
      %999 = vst [vmem:[%s889 + $0xb4] sm:$0xf] %v998
      %1000 = vst.msk [vmem:[%s889 + $0xb8] sm:$0xf] %vm445, %v839
      %v1001 = vld [vmem:[%s889 + $0xbc] sm:$0x1]
      %v1002 = vsel %vm456, %v840, %v1001
      %1003 = vst [vmem:[%s889 + $0xbc] sm:$0x1] %v1002
      %v1004 = vld [vmem:[#allocation2] sm:$0xf]
      %v1005 = vld [vmem:[#allocation2 + $0x4] sm:$0xf]
      %v1006 = vld [vmem:[#allocation2 + $0xc] sm:$0xf]
      %v1007 = vld [vmem:[#allocation2 + $0x10] sm:$0xf]
      %v1008 = vld [vmem:[#allocation2 + $0x18] sm:$0xf]
      %v1009 = vld [vmem:[#allocation2 + $0x1c] sm:$0xf]
      %v1010 = vld [vmem:[#allocation2 + $0x24] sm:$0xf]
      %v1011 = vld [vmem:[#allocation2 + $0x28] sm:$0xf]
      %v1012 = vld [vmem:[#allocation2 + $0x30] sm:$0xf]
      %v1013 = vld [vmem:[#allocation2 + $0x34] sm:$0xf]
      %v1014 = vld [vmem:[#allocation2 + $0x3c] sm:$0xf]
      %v1015 = vld [vmem:[#allocation2 + $0x40] sm:$0xf]
      %v1016 = vld [vmem:[#allocation2 + $0x48] sm:$0xf]
      %v1017 = vld [vmem:[#allocation2 + $0x4c] sm:$0xf]
      %v1018 = vld [vmem:[#allocation2 + $0x54] sm:$0xf]
      %v1019 = vld [vmem:[#allocation2 + $0x58] sm:$0xf]
      %v1020 = vld [vmem:[#allocation2 + $0x60] sm:$0xf]
      %v1021 = vld [vmem:[#allocation2 + $0x64] sm:$0xf]
      %v1022 = vld [vmem:[#allocation2 + $0x6c] sm:$0xf]
      %v1023 = vld [vmem:[#allocation2 + $0x70] sm:$0xf]
      %v1024 = vld [vmem:[#allocation2 + $0x78] sm:$0xf]
      %v1025 = vld [vmem:[#allocation2 + $0x7c] sm:$0xf]
      %v1026 = vld [vmem:[#allocation2 + $0x84] sm:$0xf]
      %v1027 = vld [vmem:[#allocation2 + $0x88] sm:$0xf]
      %v1028 = vld [vmem:[#allocation2 + $0x90] sm:$0xf]
      %v1029 = vld [vmem:[#allocation2 + $0x94] sm:$0xf]
      %v1030 = vld [vmem:[#allocation2 + $0x9c] sm:$0xf]
      %v1031 = vld [vmem:[#allocation2 + $0xa0] sm:$0xf]
      %v1032 = vld [vmem:[#allocation2 + $0xa8] sm:$0xf]
      %v1033 = vld [vmem:[#allocation2 + $0xac] sm:$0xf]
      %v1034 = vld [vmem:[#allocation2 + $0xb4] sm:$0xf]
      %v1035 = vld [vmem:[#allocation2 + $0xb8] sm:$0xf]
      %v1036 = vld [vmem:[%s2] sm:$0xf]
      %v1037 = vld [vmem:[#allocation2 + $0x8] sm:$0x1]
      %v1038 = vld [vmem:[#allocation2 + $0x14] sm:$0x1]
      %v1039 = vld [vmem:[#allocation2 + $0x20] sm:$0x1]
      %v1040 = vld [vmem:[#allocation2 + $0x2c] sm:$0x1]
      %v1041 = vld [vmem:[#allocation2 + $0x38] sm:$0x1]
      %v1042 = vld [vmem:[#allocation2 + $0x44] sm:$0x1]
      %v1043 = vld [vmem:[#allocation2 + $0x50] sm:$0x1]
      %v1044 = vld [vmem:[#allocation2 + $0x5c] sm:$0x1]
      %v1045 = vld [vmem:[#allocation2 + $0x68] sm:$0x1]
      %v1046 = vld [vmem:[#allocation2 + $0x74] sm:$0x1]
      %v1047 = vld [vmem:[#allocation2 + $0x80] sm:$0x1]
      %v1048 = vld [vmem:[#allocation2 + $0x8c] sm:$0x1]
      %v1049 = vld [vmem:[#allocation2 + $0x98] sm:$0x1]
      %v1050 = vld [vmem:[#allocation2 + $0xa4] sm:$0x1]
      %v1051 = vld [vmem:[#allocation2 + $0xb0] sm:$0x1]
      %v1052 = vld [vmem:[#allocation2 + $0xbc] sm:$0x1]
      %vm1053 = vsmask.f32 3328
      %vm1054 = vsmask.f32 7440
      %vm1055 = vmor %vm1053, %vm1054
      %v1057 = vshrl.u32 %v1004, 16
      %v1059 = vrot.slane %v1057, 4
      %v1060 = vshll.u32 %v1004, 16
      %v1062 = vrot.slane %v1060, 5
      %v1063 = vor.u32 %v1059, %v1062
      %v1064 = vrot.slane %v1063, 4
      %v1066 = vshll.u32 %v1005, 16
      %v1068 = vrot.slane %v1066, 5
      %v1069 = vsel %vm1055, %v1064, %v1068
      %v1070 = vshrl.u32 %v1005, 16
      %v1072 = vrot.slane %v1070, 4
      %v1073 = vor.u32 %v1072, %v1068
      %v1074 = vrot.slane %v1073, 4
      %v1076 = vshll.u32 %v1037, 16
      %v1078 = vrot.slane %v1076, 5
      %v1079 = vsel %vm1055, %v1074, %v1078
      %v1081 = vshrl.u32 %v1006, 16
      %v1083 = vrot.slane %v1081, 4
      %v1084 = vshll.u32 %v1006, 16
      %v1086 = vrot.slane %v1084, 5
      %v1087 = vor.u32 %v1083, %v1086
      %v1088 = vrot.slane %v1087, 4
      %v1090 = vshll.u32 %v1007, 16
      %v1092 = vrot.slane %v1090, 5
      %v1093 = vsel %vm1055, %v1088, %v1092
      %v1094 = vshrl.u32 %v1007, 16
      %v1096 = vrot.slane %v1094, 4
      %v1097 = vor.u32 %v1096, %v1092
      %v1098 = vrot.slane %v1097, 4
      %v1100 = vshll.u32 %v1038, 16
      %v1102 = vrot.slane %v1100, 5
      %v1103 = vsel %vm1055, %v1098, %v1102
      %v1105 = vshrl.u32 %v1008, 16
      %v1107 = vrot.slane %v1105, 4
      %v1108 = vshll.u32 %v1008, 16
      %v1110 = vrot.slane %v1108, 5
      %v1111 = vor.u32 %v1107, %v1110
      %v1112 = vrot.slane %v1111, 4
      %v1114 = vshll.u32 %v1009, 16
      %v1116 = vrot.slane %v1114, 5
      %v1117 = vsel %vm1055, %v1112, %v1116
      %v1118 = vshrl.u32 %v1009, 16
      %v1120 = vrot.slane %v1118, 4
      %v1121 = vor.u32 %v1120, %v1116
      %v1122 = vrot.slane %v1121, 4
      %v1124 = vshll.u32 %v1039, 16
      %v1126 = vrot.slane %v1124, 5
      %v1127 = vsel %vm1055, %v1122, %v1126
      %v1129 = vshrl.u32 %v1010, 16
      %v1131 = vrot.slane %v1129, 4
      %v1132 = vshll.u32 %v1010, 16
      %v1134 = vrot.slane %v1132, 5
      %v1135 = vor.u32 %v1131, %v1134
      %v1136 = vrot.slane %v1135, 4
      %v1138 = vshll.u32 %v1011, 16
      %v1140 = vrot.slane %v1138, 5
      %v1141 = vsel %vm1055, %v1136, %v1140
      %v1142 = vshrl.u32 %v1011, 16
      %v1144 = vrot.slane %v1142, 4
      %v1145 = vor.u32 %v1144, %v1140
      %v1146 = vrot.slane %v1145, 4
      %v1148 = vshll.u32 %v1040, 16
      %v1150 = vrot.slane %v1148, 5
      %v1151 = vsel %vm1055, %v1146, %v1150
      %v1153 = vshrl.u32 %v1012, 16
      %v1155 = vrot.slane %v1153, 4
      %v1156 = vshll.u32 %v1012, 16
      %v1158 = vrot.slane %v1156, 5
      %v1159 = vor.u32 %v1155, %v1158
      %v1160 = vrot.slane %v1159, 4
      %v1162 = vshll.u32 %v1013, 16
      %v1164 = vrot.slane %v1162, 5
      %v1165 = vsel %vm1055, %v1160, %v1164
      %v1166 = vshrl.u32 %v1013, 16
      %v1168 = vrot.slane %v1166, 4
      %v1169 = vor.u32 %v1168, %v1164
      %v1170 = vrot.slane %v1169, 4
      %v1172 = vshll.u32 %v1041, 16
      %v1174 = vrot.slane %v1172, 5
      %v1175 = vsel %vm1055, %v1170, %v1174
      %v1177 = vshrl.u32 %v1014, 16
      %v1179 = vrot.slane %v1177, 4
      %v1180 = vshll.u32 %v1014, 16
      %v1182 = vrot.slane %v1180, 5
      %v1183 = vor.u32 %v1179, %v1182
      %v1184 = vrot.slane %v1183, 4
      %v1186 = vshll.u32 %v1015, 16
      %v1188 = vrot.slane %v1186, 5
      %v1189 = vsel %vm1055, %v1184, %v1188
      %v1190 = vshrl.u32 %v1015, 16
      %v1192 = vrot.slane %v1190, 4
      %v1193 = vor.u32 %v1192, %v1188
      %v1194 = vrot.slane %v1193, 4
      %v1196 = vshll.u32 %v1042, 16
      %v1198 = vrot.slane %v1196, 5
      %v1199 = vsel %vm1055, %v1194, %v1198
      %v1201 = vshrl.u32 %v1016, 16
      %v1203 = vrot.slane %v1201, 4
      %v1204 = vshll.u32 %v1016, 16
      %v1206 = vrot.slane %v1204, 5
      %v1207 = vor.u32 %v1203, %v1206
      %v1208 = vrot.slane %v1207, 4
      %v1210 = vshll.u32 %v1017, 16
      %v1212 = vrot.slane %v1210, 5
      %v1213 = vsel %vm1055, %v1208, %v1212
      %v1214 = vshrl.u32 %v1017, 16
      %v1216 = vrot.slane %v1214, 4
      %v1217 = vor.u32 %v1216, %v1212
      %v1218 = vrot.slane %v1217, 4
      %v1220 = vshll.u32 %v1043, 16
      %v1222 = vrot.slane %v1220, 5
      %v1223 = vsel %vm1055, %v1218, %v1222
      %v1225 = vshrl.u32 %v1018, 16
      %v1227 = vrot.slane %v1225, 4
      %v1228 = vshll.u32 %v1018, 16
      %v1230 = vrot.slane %v1228, 5
      %v1231 = vor.u32 %v1227, %v1230
      %v1232 = vrot.slane %v1231, 4
      %v1234 = vshll.u32 %v1019, 16
      %v1236 = vrot.slane %v1234, 5
      %v1237 = vsel %vm1055, %v1232, %v1236
      %v1238 = vshrl.u32 %v1019, 16
      %v1240 = vrot.slane %v1238, 4
      %v1241 = vor.u32 %v1240, %v1236
      %v1242 = vrot.slane %v1241, 4
      %v1244 = vshll.u32 %v1044, 16
      %v1246 = vrot.slane %v1244, 5
      %v1247 = vsel %vm1055, %v1242, %v1246
      %v1249 = vshrl.u32 %v1020, 16
      %v1251 = vrot.slane %v1249, 4
      %v1252 = vshll.u32 %v1020, 16
      %v1254 = vrot.slane %v1252, 5
      %v1255 = vor.u32 %v1251, %v1254
      %v1256 = vrot.slane %v1255, 4
      %v1258 = vshll.u32 %v1021, 16
      %v1260 = vrot.slane %v1258, 5
      %v1261 = vsel %vm1055, %v1256, %v1260
      %v1262 = vshrl.u32 %v1021, 16
      %v1264 = vrot.slane %v1262, 4
      %v1265 = vor.u32 %v1264, %v1260
      %v1266 = vrot.slane %v1265, 4
      %v1268 = vshll.u32 %v1045, 16
      %v1270 = vrot.slane %v1268, 5
      %v1271 = vsel %vm1055, %v1266, %v1270
      %v1273 = vshrl.u32 %v1022, 16
      %v1275 = vrot.slane %v1273, 4
      %v1276 = vshll.u32 %v1022, 16
      %v1278 = vrot.slane %v1276, 5
      %v1279 = vor.u32 %v1275, %v1278
      %v1280 = vrot.slane %v1279, 4
      %v1282 = vshll.u32 %v1023, 16
      %v1284 = vrot.slane %v1282, 5
      %v1285 = vsel %vm1055, %v1280, %v1284
      %v1286 = vshrl.u32 %v1023, 16
      %v1288 = vrot.slane %v1286, 4
      %v1289 = vor.u32 %v1288, %v1284
      %v1290 = vrot.slane %v1289, 4
      %v1292 = vshll.u32 %v1046, 16
      %v1294 = vrot.slane %v1292, 5
      %v1295 = vsel %vm1055, %v1290, %v1294
      %v1297 = vshrl.u32 %v1024, 16
      %v1299 = vrot.slane %v1297, 4
      %v1300 = vshll.u32 %v1024, 16
      %v1302 = vrot.slane %v1300, 5
      %v1303 = vor.u32 %v1299, %v1302
      %v1304 = vrot.slane %v1303, 4
      %v1306 = vshll.u32 %v1025, 16
      %v1308 = vrot.slane %v1306, 5
      %v1309 = vsel %vm1055, %v1304, %v1308
      %v1310 = vshrl.u32 %v1025, 16
      %v1312 = vrot.slane %v1310, 4
      %v1313 = vor.u32 %v1312, %v1308
      %v1314 = vrot.slane %v1313, 4
      %v1316 = vshll.u32 %v1047, 16
      %v1318 = vrot.slane %v1316, 5
      %v1319 = vsel %vm1055, %v1314, %v1318
      %v1321 = vshrl.u32 %v1026, 16
      %v1323 = vrot.slane %v1321, 4
      %v1324 = vshll.u32 %v1026, 16
      %v1326 = vrot.slane %v1324, 5
      %v1327 = vor.u32 %v1323, %v1326
      %v1328 = vrot.slane %v1327, 4
      %v1330 = vshll.u32 %v1027, 16
      %v1332 = vrot.slane %v1330, 5
      %v1333 = vsel %vm1055, %v1328, %v1332
      %v1334 = vshrl.u32 %v1027, 16
      %v1336 = vrot.slane %v1334, 4
      %v1337 = vor.u32 %v1336, %v1332
      %v1338 = vrot.slane %v1337, 4
      %v1340 = vshll.u32 %v1048, 16
      %v1342 = vrot.slane %v1340, 5
      %v1343 = vsel %vm1055, %v1338, %v1342
      %v1345 = vshrl.u32 %v1028, 16
      %v1347 = vrot.slane %v1345, 4
      %v1348 = vshll.u32 %v1028, 16
      %v1350 = vrot.slane %v1348, 5
      %v1351 = vor.u32 %v1347, %v1350
      %v1352 = vrot.slane %v1351, 4
      %v1354 = vshll.u32 %v1029, 16
      %v1356 = vrot.slane %v1354, 5
      %v1357 = vsel %vm1055, %v1352, %v1356
      %v1358 = vshrl.u32 %v1029, 16
      %v1360 = vrot.slane %v1358, 4
      %v1361 = vor.u32 %v1360, %v1356
      %v1362 = vrot.slane %v1361, 4
      %v1364 = vshll.u32 %v1049, 16
      %v1366 = vrot.slane %v1364, 5
      %v1367 = vsel %vm1055, %v1362, %v1366
      %v1369 = vshrl.u32 %v1030, 16
      %v1371 = vrot.slane %v1369, 4
      %v1372 = vshll.u32 %v1030, 16
      %v1374 = vrot.slane %v1372, 5
      %v1375 = vor.u32 %v1371, %v1374
      %v1376 = vrot.slane %v1375, 4
      %v1378 = vshll.u32 %v1031, 16
      %v1380 = vrot.slane %v1378, 5
      %v1381 = vsel %vm1055, %v1376, %v1380
      %v1382 = vshrl.u32 %v1031, 16
      %v1384 = vrot.slane %v1382, 4
      %v1385 = vor.u32 %v1384, %v1380
      %v1386 = vrot.slane %v1385, 4
      %v1388 = vshll.u32 %v1050, 16
      %v1390 = vrot.slane %v1388, 5
      %v1391 = vsel %vm1055, %v1386, %v1390
      %v1393 = vshrl.u32 %v1032, 16
      %v1395 = vrot.slane %v1393, 4
      %v1396 = vshll.u32 %v1032, 16
      %v1398 = vrot.slane %v1396, 5
      %v1399 = vor.u32 %v1395, %v1398
      %v1400 = vrot.slane %v1399, 4
      %v1402 = vshll.u32 %v1033, 16
      %v1404 = vrot.slane %v1402, 5
      %v1405 = vsel %vm1055, %v1400, %v1404
      %v1406 = vshrl.u32 %v1033, 16
      %v1408 = vrot.slane %v1406, 4
      %v1409 = vor.u32 %v1408, %v1404
      %v1410 = vrot.slane %v1409, 4
      %v1412 = vshll.u32 %v1051, 16
      %v1414 = vrot.slane %v1412, 5
      %v1415 = vsel %vm1055, %v1410, %v1414
      %v1417 = vshrl.u32 %v1034, 16
      %v1419 = vrot.slane %v1417, 4
      %v1420 = vshll.u32 %v1034, 16
      %v1422 = vrot.slane %v1420, 5
      %v1423 = vor.u32 %v1419, %v1422
      %v1424 = vrot.slane %v1423, 4
      %v1426 = vshll.u32 %v1035, 16
      %v1428 = vrot.slane %v1426, 5
      %v1429 = vsel %vm1055, %v1424, %v1428
      %v1430 = vshrl.u32 %v1035, 16
      %v1432 = vrot.slane %v1430, 4
      %v1433 = vor.u32 %v1432, %v1428
      %v1434 = vrot.slane %v1433, 4
      %v1436 = vshll.u32 %v1052, 16
      %v1438 = vrot.slane %v1436, 5
      %v1439 = vsel %vm1055, %v1434, %v1438
      %s1440 = scalar_lea.vmem %s2, 4
      %v1441 = vld [vmem:[%s1440] sm:$0xf]
      %v1442 = vunpack.c.l.b16 %v1069
      %v1443 = vunpack.c.l.b16 %v1079
      %v1444 = vunpack.c.l.b16 %v1093
      %v1445 = vunpack.c.l.b16 %v1103
      %v1446 = vunpack.c.l.b16 %v1117
      %v1447 = vunpack.c.l.b16 %v1127
      %v1448 = vunpack.c.l.b16 %v1141
      %v1449 = vunpack.c.l.b16 %v1151
      %v1450 = vunpack.c.l.b16 %v1165
      %v1451 = vunpack.c.l.b16 %v1175
      %v1452 = vunpack.c.l.b16 %v1189
      %v1453 = vunpack.c.l.b16 %v1199
      %v1454 = vunpack.c.l.b16 %v1213
      %v1455 = vunpack.c.l.b16 %v1223
      %v1456 = vunpack.c.l.b16 %v1237
      %v1457 = vunpack.c.l.b16 %v1247
      %v1458 = vunpack.c.l.b16 %v1261
      %v1459 = vunpack.c.l.b16 %v1271
      %v1460 = vunpack.c.l.b16 %v1285
      %v1461 = vunpack.c.l.b16 %v1295
      %v1462 = vunpack.c.l.b16 %v1309
      %v1463 = vunpack.c.l.b16 %v1319
      %v1464 = vunpack.c.l.b16 %v1333
      %v1465 = vunpack.c.l.b16 %v1343
      %v1466 = vunpack.c.l.b16 %v1357
      %v1467 = vunpack.c.l.b16 %v1367
      %v1468 = vunpack.c.l.b16 %v1381
      %v1469 = vunpack.c.l.b16 %v1391
      %v1470 = vunpack.c.l.b16 %v1405
      %v1471 = vunpack.c.l.b16 %v1415
      %v1472 = vunpack.c.l.b16 %v1429
      %v1473 = vunpack.c.l.b16 %v1439
      %v1474 = vpack.c.b16 %v1443, %v1442
      %v1475 = vpack.c.b16 %v1445, %v1444
      %v1476 = vpack.c.b16 %v1447, %v1446
      %v1477 = vpack.c.b16 %v1449, %v1448
      %v1478 = vpack.c.b16 %v1451, %v1450
      %v1479 = vpack.c.b16 %v1453, %v1452
      %v1480 = vpack.c.b16 %v1455, %v1454
      %v1481 = vpack.c.b16 %v1457, %v1456
      %v1482 = vpack.c.b16 %v1459, %v1458
      %v1483 = vpack.c.b16 %v1461, %v1460
      %v1484 = vpack.c.b16 %v1463, %v1462
      %v1485 = vpack.c.b16 %v1465, %v1464
      %v1486 = vpack.c.b16 %v1467, %v1466
      %v1487 = vpack.c.b16 %v1469, %v1468
      %v1488 = vpack.c.b16 %v1471, %v1470
      %v1489 = vpack.c.b16 %v1473, %v1472
      %1491 = vst [vmem:[#allocation1] ss:$4 sm:$0xff] %v1441
      %v1492 = vld.sshfl [vmem:[#allocation1] sm:$0xff pattern:$0x73625140]
      %v1493 = vld.sshfl [vmem:[#allocation1 + $0x8] sm:$0xff pattern:$0x73625140]
      %vm1494 = vcmask 31744
      %v1496 = vsel %vm1494, %v1474, 0
      %v1499 = vsel %vm1494, %v1475, 0
      %v1502 = vsel %vm1494, %v1476, 0
      %v1505 = vsel %vm1494, %v1477, 0
      %v1508 = vsel %vm1494, %v1478, 0
      %v1511 = vsel %vm1494, %v1479, 0
      %v1514 = vsel %vm1494, %v1480, 0
      %v1517 = vsel %vm1494, %v1481, 0
      %v1520 = vsel %vm1494, %v1482, 0
      %v1523 = vsel %vm1494, %v1483, 0
      %v1526 = vsel %vm1494, %v1484, 0
      %v1529 = vsel %vm1494, %v1485, 0
      %v1532 = vsel %vm1494, %v1486, 0
      %v1535 = vsel %vm1494, %v1487, 0
      %v1538 = vsel %vm1494, %v1488, 0
      %v1541 = vsel %vm1494, %v1489, 0
      %vm1543 = vcmask 1041408
      %v1544 = vsel %vm1543, %v1492, 0
      %v1546 = vsel %vm1543, %v1493, 0
      %1548 = vmatpush.bf16.msra.mxu0 0
      %1549 = vmatpush.bf16.msra.mxu0 0
      %1550 = vmatpush.bf16.msra.mxu0 0
      %1551 = vmatpush.bf16.msra.mxu0 0
      %1552 = vmatpush.bf16.msra.mxu0 0
      %1553 = vmatpush.bf16.msra.mxu0 0
      %1554 = vmatpush.bf16.msra.mxu0 0
      %1555 = vmatpush.bf16.msra.mxu0 %v1544
      %1556 = vmatmul.bf16.gmra.mxu0 %v1496
      %v1557 = vpop.f32.mrf.mxu0
      %v1558 = vadd.f32 0.0, %v1557
      %v1559 = vpop.f32.mrf.mxu0
      %v1560 = vadd.f32 0.0, %v1559
      %1561 = vmatmul.bf16.gmra.mxu0 %v1499
      %v1562 = vpop.f32.mrf.mxu0
      %v1563 = vadd.f32 0.0, %v1562
      %v1564 = vpop.f32.mrf.mxu0
      %v1565 = vadd.f32 0.0, %v1564
      %1566 = vmatmul.bf16.gmra.mxu0 %v1502
      %v1567 = vpop.f32.mrf.mxu0
      %v1568 = vadd.f32 0.0, %v1567
      %v1569 = vpop.f32.mrf.mxu0
      %v1570 = vadd.f32 0.0, %v1569
      %1571 = vmatmul.bf16.gmra.mxu0 %v1505
      %v1572 = vpop.f32.mrf.mxu0
      %v1573 = vadd.f32 0.0, %v1572
      %v1574 = vpop.f32.mrf.mxu0
      %v1575 = vadd.f32 0.0, %v1574
      %1576 = vmatmul.bf16.gmra.mxu0 %v1508
      %v1577 = vpop.f32.mrf.mxu0
      %v1578 = vadd.f32 0.0, %v1577
      %v1579 = vpop.f32.mrf.mxu0
      %v1580 = vadd.f32 0.0, %v1579
      %1581 = vmatmul.bf16.gmra.mxu0 %v1511
      %v1582 = vpop.f32.mrf.mxu0
      %v1583 = vadd.f32 0.0, %v1582
      %v1584 = vpop.f32.mrf.mxu0
      %v1585 = vadd.f32 0.0, %v1584
      %1586 = vmatmul.bf16.gmra.mxu0 %v1514
      %v1587 = vpop.f32.mrf.mxu0
      %v1588 = vadd.f32 0.0, %v1587
      %v1589 = vpop.f32.mrf.mxu0
      %v1590 = vadd.f32 0.0, %v1589
      %1591 = vmatmul.bf16.gmra.mxu0 %v1517
      %v1592 = vpop.f32.mrf.mxu0
      %v1593 = vadd.f32 0.0, %v1592
      %v1594 = vpop.f32.mrf.mxu0
      %v1595 = vadd.f32 0.0, %v1594
      %1596 = vmatmul.bf16.gmra.mxu0 %v1520
      %v1597 = vpop.f32.mrf.mxu0
      %v1598 = vadd.f32 0.0, %v1597
      %v1599 = vpop.f32.mrf.mxu0
      %v1600 = vadd.f32 0.0, %v1599
      %1601 = vmatmul.bf16.gmra.mxu0 %v1523
      %v1602 = vpop.f32.mrf.mxu0
      %v1603 = vadd.f32 0.0, %v1602
      %v1604 = vpop.f32.mrf.mxu0
      %v1605 = vadd.f32 0.0, %v1604
      %1606 = vmatmul.bf16.gmra.mxu0 %v1526
      %v1607 = vpop.f32.mrf.mxu0
      %v1608 = vadd.f32 0.0, %v1607
      %v1609 = vpop.f32.mrf.mxu0
      %v1610 = vadd.f32 0.0, %v1609
      %1611 = vmatmul.bf16.gmra.mxu0 %v1529
      %v1612 = vpop.f32.mrf.mxu0
      %v1613 = vadd.f32 0.0, %v1612
      %v1614 = vpop.f32.mrf.mxu0
      %v1615 = vadd.f32 0.0, %v1614
      %1616 = vmatmul.bf16.gmra.mxu0 %v1532
      %v1617 = vpop.f32.mrf.mxu0
      %v1618 = vadd.f32 0.0, %v1617
      %v1619 = vpop.f32.mrf.mxu0
      %v1620 = vadd.f32 0.0, %v1619
      %1621 = vmatmul.bf16.gmra.mxu0 %v1535
      %v1622 = vpop.f32.mrf.mxu0
      %v1623 = vadd.f32 0.0, %v1622
      %v1624 = vpop.f32.mrf.mxu0
      %v1625 = vadd.f32 0.0, %v1624
      %1626 = vmatmul.bf16.gmra.mxu0 %v1538
      %v1627 = vpop.f32.mrf.mxu0
      %v1628 = vadd.f32 0.0, %v1627
      %v1629 = vpop.f32.mrf.mxu0
      %v1630 = vadd.f32 0.0, %v1629
      %1631 = vmatmul.bf16.gmra.mxu0 %v1541
      %v1632 = vpop.f32.mrf.mxu0
      %v1633 = vadd.f32 0.0, %v1632
      %v1634 = vpop.f32.mrf.mxu0
      %v1635 = vadd.f32 0.0, %v1634
      %1636 = vdwg.mxu0
      %1637 = vmatpush.bf16.msra.mxu0 0
      %1638 = vmatpush.bf16.msra.mxu0 0
      %1639 = vmatpush.bf16.msra.mxu0 0
      %1640 = vmatpush.bf16.msra.mxu0 0
      %1641 = vmatpush.bf16.msra.mxu0 0
      %1642 = vmatpush.bf16.msra.mxu0 0
      %1643 = vmatpush.bf16.msra.mxu0 0
      %1644 = vmatpush.bf16.msra.mxu0 %v1546
      %1645 = vmatmul.bf16.gmra.mxu0 %v1496
      %v1646 = vpop.f32.mrf.mxu0
      %v1647 = vadd.f32 0.0, %v1646
      %v1648 = vpop.f32.mrf.mxu0
      %v1649 = vadd.f32 0.0, %v1648
      %1650 = vmatmul.bf16.gmra.mxu0 %v1499
      %v1651 = vpop.f32.mrf.mxu0
      %v1652 = vadd.f32 0.0, %v1651
      %v1653 = vpop.f32.mrf.mxu0
      %v1654 = vadd.f32 0.0, %v1653
      %1655 = vmatmul.bf16.gmra.mxu0 %v1502
      %v1656 = vpop.f32.mrf.mxu0
      %v1657 = vadd.f32 0.0, %v1656
      %v1658 = vpop.f32.mrf.mxu0
      %v1659 = vadd.f32 0.0, %v1658
      %1660 = vmatmul.bf16.gmra.mxu0 %v1505
      %v1661 = vpop.f32.mrf.mxu0
      %v1662 = vadd.f32 0.0, %v1661
      %v1663 = vpop.f32.mrf.mxu0
      %v1664 = vadd.f32 0.0, %v1663
      %1665 = vmatmul.bf16.gmra.mxu0 %v1508
      %v1666 = vpop.f32.mrf.mxu0
      %v1667 = vadd.f32 0.0, %v1666
      %v1668 = vpop.f32.mrf.mxu0
      %v1669 = vadd.f32 0.0, %v1668
      %1670 = vmatmul.bf16.gmra.mxu0 %v1511
      %v1671 = vpop.f32.mrf.mxu0
      %v1672 = vadd.f32 0.0, %v1671
      %v1673 = vpop.f32.mrf.mxu0
      %v1674 = vadd.f32 0.0, %v1673
      %1675 = vmatmul.bf16.gmra.mxu0 %v1514
      %v1676 = vpop.f32.mrf.mxu0
      %v1677 = vadd.f32 0.0, %v1676
      %v1678 = vpop.f32.mrf.mxu0
      %v1679 = vadd.f32 0.0, %v1678
      %1680 = vmatmul.bf16.gmra.mxu0 %v1517
      %v1681 = vpop.f32.mrf.mxu0
      %v1682 = vadd.f32 0.0, %v1681
      %v1683 = vpop.f32.mrf.mxu0
      %v1684 = vadd.f32 0.0, %v1683
      %1685 = vmatmul.bf16.gmra.mxu0 %v1520
      %v1686 = vpop.f32.mrf.mxu0
      %v1687 = vadd.f32 0.0, %v1686
      %v1688 = vpop.f32.mrf.mxu0
      %v1689 = vadd.f32 0.0, %v1688
      %1690 = vmatmul.bf16.gmra.mxu0 %v1523
      %v1691 = vpop.f32.mrf.mxu0
      %v1692 = vadd.f32 0.0, %v1691
      %v1693 = vpop.f32.mrf.mxu0
      %v1694 = vadd.f32 0.0, %v1693
      %1695 = vmatmul.bf16.gmra.mxu0 %v1526
      %v1696 = vpop.f32.mrf.mxu0
      %v1697 = vadd.f32 0.0, %v1696
      %v1698 = vpop.f32.mrf.mxu0
      %v1699 = vadd.f32 0.0, %v1698
      %1700 = vmatmul.bf16.gmra.mxu0 %v1529
      %v1701 = vpop.f32.mrf.mxu0
      %v1702 = vadd.f32 0.0, %v1701
      %v1703 = vpop.f32.mrf.mxu0
      %v1704 = vadd.f32 0.0, %v1703
      %1705 = vmatmul.bf16.gmra.mxu0 %v1532
      %v1706 = vpop.f32.mrf.mxu0
      %v1707 = vadd.f32 0.0, %v1706
      %v1708 = vpop.f32.mrf.mxu0
      %v1709 = vadd.f32 0.0, %v1708
      %1710 = vmatmul.bf16.gmra.mxu0 %v1535
      %v1711 = vpop.f32.mrf.mxu0
      %v1712 = vadd.f32 0.0, %v1711
      %v1713 = vpop.f32.mrf.mxu0
      %v1714 = vadd.f32 0.0, %v1713
      %1715 = vmatmul.bf16.gmra.mxu0 %v1538
      %v1716 = vpop.f32.mrf.mxu0
      %v1717 = vadd.f32 0.0, %v1716
      %v1718 = vpop.f32.mrf.mxu0
      %v1719 = vadd.f32 0.0, %v1718
      %1720 = vmatmul.bf16.gmra.mxu0 %v1541
      %v1721 = vpop.f32.mrf.mxu0
      %v1722 = vadd.f32 0.0, %v1721
      %v1723 = vpop.f32.mrf.mxu0
      %v1724 = vadd.f32 0.0, %v1723
      %1725 = vdwg.mxu0
      %v1758 = vunpack.c.l.b16 %v1004
      %v1759 = vunpack.c.l.b16 %v1005
      %v1760 = vunpack.c.l.b16 %v1006
      %v1761 = vunpack.c.l.b16 %v1007
      %v1762 = vunpack.c.l.b16 %v1008
      %v1763 = vunpack.c.l.b16 %v1009
      %v1764 = vunpack.c.l.b16 %v1010
      %v1765 = vunpack.c.l.b16 %v1011
      %v1766 = vunpack.c.l.b16 %v1012
      %v1767 = vunpack.c.l.b16 %v1013
      %v1768 = vunpack.c.l.b16 %v1014
      %v1769 = vunpack.c.l.b16 %v1015
      %v1770 = vunpack.c.l.b16 %v1016
      %v1771 = vunpack.c.l.b16 %v1017
      %v1772 = vunpack.c.l.b16 %v1018
      %v1773 = vunpack.c.l.b16 %v1019
      %v1774 = vunpack.c.l.b16 %v1020
      %v1775 = vunpack.c.l.b16 %v1021
      %v1776 = vunpack.c.l.b16 %v1022
      %v1777 = vunpack.c.l.b16 %v1023
      %v1778 = vunpack.c.l.b16 %v1024
      %v1779 = vunpack.c.l.b16 %v1025
      %v1780 = vunpack.c.l.b16 %v1026
      %v1781 = vunpack.c.l.b16 %v1027
      %v1782 = vunpack.c.l.b16 %v1028
      %v1783 = vunpack.c.l.b16 %v1029
      %v1784 = vunpack.c.l.b16 %v1030
      %v1785 = vunpack.c.l.b16 %v1031
      %v1786 = vunpack.c.l.b16 %v1032
      %v1787 = vunpack.c.l.b16 %v1033
      %v1788 = vunpack.c.l.b16 %v1034
      %v1789 = vunpack.c.l.b16 %v1035
      %v1790 = vpack.c.b16 %v1759, %v1758
      %v1791 = vpack.c.b16 %v1761, %v1760
      %v1792 = vpack.c.b16 %v1763, %v1762
      %v1793 = vpack.c.b16 %v1765, %v1764
      %v1794 = vpack.c.b16 %v1767, %v1766
      %v1795 = vpack.c.b16 %v1769, %v1768
      %v1796 = vpack.c.b16 %v1771, %v1770
      %v1797 = vpack.c.b16 %v1773, %v1772
      %v1798 = vpack.c.b16 %v1775, %v1774
      %v1799 = vpack.c.b16 %v1777, %v1776
      %v1800 = vpack.c.b16 %v1779, %v1778
      %v1801 = vpack.c.b16 %v1781, %v1780
      %v1802 = vpack.c.b16 %v1783, %v1782
      %v1803 = vpack.c.b16 %v1785, %v1784
      %v1804 = vpack.c.b16 %v1787, %v1786
      %v1805 = vpack.c.b16 %v1789, %v1788
      %1807 = vst [vmem:[#allocation1] ss:$4 sm:$0xff] %v1036
      %v1808 = vld.sshfl [vmem:[#allocation1] sm:$0xff pattern:$0x73625140]
      %v1809 = vld.sshfl [vmem:[#allocation1 + $0x8] sm:$0xff pattern:$0x73625140]
      %v1811 = vsel %vm1494, %v1790, 0
      %v1814 = vsel %vm1494, %v1791, 0
      %v1817 = vsel %vm1494, %v1792, 0
      %v1820 = vsel %vm1494, %v1793, 0
      %v1823 = vsel %vm1494, %v1794, 0
      %v1826 = vsel %vm1494, %v1795, 0
      %v1829 = vsel %vm1494, %v1796, 0
      %v1832 = vsel %vm1494, %v1797, 0
      %v1835 = vsel %vm1494, %v1798, 0
      %v1838 = vsel %vm1494, %v1799, 0
      %v1841 = vsel %vm1494, %v1800, 0
      %v1844 = vsel %vm1494, %v1801, 0
      %v1847 = vsel %vm1494, %v1802, 0
      %v1850 = vsel %vm1494, %v1803, 0
      %v1853 = vsel %vm1494, %v1804, 0
      %v1856 = vsel %vm1494, %v1805, 0
      %v1858 = vsel %vm1543, %v1808, 0
      %v1860 = vsel %vm1543, %v1809, 0
      %1862 = vmatpush.bf16.msra.mxu0 0
      %1863 = vmatpush.bf16.msra.mxu0 0
      %1864 = vmatpush.bf16.msra.mxu0 0
      %1865 = vmatpush.bf16.msra.mxu0 0
      %1866 = vmatpush.bf16.msra.mxu0 0
      %1867 = vmatpush.bf16.msra.mxu0 0
      %1868 = vmatpush.bf16.msra.mxu0 0
      %1869 = vmatpush.bf16.msra.mxu0 %v1858
      %1870 = vmatmul.bf16.gmra.mxu0 %v1811
      %v1871 = vpop.f32.mrf.mxu0
      %v1872 = vadd.f32 %v1558, %v1871
      %v1873 = vpop.f32.mrf.mxu0
      %v1874 = vadd.f32 %v1560, %v1873
      %1875 = vmatmul.bf16.gmra.mxu0 %v1814
      %v1876 = vpop.f32.mrf.mxu0
      %v1877 = vadd.f32 %v1563, %v1876
      %v1878 = vpop.f32.mrf.mxu0
      %v1879 = vadd.f32 %v1565, %v1878
      %1880 = vmatmul.bf16.gmra.mxu0 %v1817
      %v1881 = vpop.f32.mrf.mxu0
      %v1882 = vadd.f32 %v1568, %v1881
      %v1883 = vpop.f32.mrf.mxu0
      %v1884 = vadd.f32 %v1570, %v1883
      %1885 = vmatmul.bf16.gmra.mxu0 %v1820
      %v1886 = vpop.f32.mrf.mxu0
      %v1887 = vadd.f32 %v1573, %v1886
      %v1888 = vpop.f32.mrf.mxu0
      %v1889 = vadd.f32 %v1575, %v1888
      %1890 = vmatmul.bf16.gmra.mxu0 %v1823
      %v1891 = vpop.f32.mrf.mxu0
      %v1892 = vadd.f32 %v1578, %v1891
      %v1893 = vpop.f32.mrf.mxu0
      %v1894 = vadd.f32 %v1580, %v1893
      %1895 = vmatmul.bf16.gmra.mxu0 %v1826
      %v1896 = vpop.f32.mrf.mxu0
      %v1897 = vadd.f32 %v1583, %v1896
      %v1898 = vpop.f32.mrf.mxu0
      %v1899 = vadd.f32 %v1585, %v1898
      %1900 = vmatmul.bf16.gmra.mxu0 %v1829
      %v1901 = vpop.f32.mrf.mxu0
      %v1902 = vadd.f32 %v1588, %v1901
      %v1903 = vpop.f32.mrf.mxu0
      %v1904 = vadd.f32 %v1590, %v1903
      %1905 = vmatmul.bf16.gmra.mxu0 %v1832
      %v1906 = vpop.f32.mrf.mxu0
      %v1907 = vadd.f32 %v1593, %v1906
      %v1908 = vpop.f32.mrf.mxu0
      %v1909 = vadd.f32 %v1595, %v1908
      %1910 = vmatmul.bf16.gmra.mxu0 %v1835
      %v1911 = vpop.f32.mrf.mxu0
      %v1912 = vadd.f32 %v1598, %v1911
      %v1913 = vpop.f32.mrf.mxu0
      %v1914 = vadd.f32 %v1600, %v1913
      %1915 = vmatmul.bf16.gmra.mxu0 %v1838
      %v1916 = vpop.f32.mrf.mxu0
      %v1917 = vadd.f32 %v1603, %v1916
      %v1918 = vpop.f32.mrf.mxu0
      %v1919 = vadd.f32 %v1605, %v1918
      %1920 = vmatmul.bf16.gmra.mxu0 %v1841
      %v1921 = vpop.f32.mrf.mxu0
      %v1922 = vadd.f32 %v1608, %v1921
      %v1923 = vpop.f32.mrf.mxu0
      %v1924 = vadd.f32 %v1610, %v1923
      %1925 = vmatmul.bf16.gmra.mxu0 %v1844
      %v1926 = vpop.f32.mrf.mxu0
      %v1927 = vadd.f32 %v1613, %v1926
      %v1928 = vpop.f32.mrf.mxu0
      %v1929 = vadd.f32 %v1615, %v1928
      %1930 = vmatmul.bf16.gmra.mxu0 %v1847
      %v1931 = vpop.f32.mrf.mxu0
      %v1932 = vadd.f32 %v1618, %v1931
      %v1933 = vpop.f32.mrf.mxu0
      %v1934 = vadd.f32 %v1620, %v1933
      %1935 = vmatmul.bf16.gmra.mxu0 %v1850
      %v1936 = vpop.f32.mrf.mxu0
      %v1937 = vadd.f32 %v1623, %v1936
      %v1938 = vpop.f32.mrf.mxu0
      %v1939 = vadd.f32 %v1625, %v1938
      %1940 = vmatmul.bf16.gmra.mxu0 %v1853
      %v1941 = vpop.f32.mrf.mxu0
      %v1942 = vadd.f32 %v1628, %v1941
      %v1943 = vpop.f32.mrf.mxu0
      %v1944 = vadd.f32 %v1630, %v1943
      %1945 = vmatmul.bf16.gmra.mxu0 %v1856
      %v1946 = vpop.f32.mrf.mxu0
      %v1947 = vadd.f32 %v1633, %v1946
      %v1948 = vpop.f32.mrf.mxu0
      %v1949 = vadd.f32 %v1635, %v1948
      %1950 = vdwg.mxu0
      %1951 = vmatpush.bf16.msra.mxu0 0
      %1952 = vmatpush.bf16.msra.mxu0 0
      %1953 = vmatpush.bf16.msra.mxu0 0
      %1954 = vmatpush.bf16.msra.mxu0 0
      %1955 = vmatpush.bf16.msra.mxu0 0
      %1956 = vmatpush.bf16.msra.mxu0 0
      %1957 = vmatpush.bf16.msra.mxu0 0
      %1958 = vmatpush.bf16.msra.mxu0 %v1860
      %1959 = vmatmul.bf16.gmra.mxu0 %v1811
      %v1960 = vpop.f32.mrf.mxu0
      %v1961 = vadd.f32 %v1647, %v1960
      %v1962 = vpop.f32.mrf.mxu0
      %v1963 = vadd.f32 %v1649, %v1962
      %1964 = vmatmul.bf16.gmra.mxu0 %v1814
      %v1965 = vpop.f32.mrf.mxu0
      %v1966 = vadd.f32 %v1652, %v1965
      %v1967 = vpop.f32.mrf.mxu0
      %v1968 = vadd.f32 %v1654, %v1967
      %1969 = vmatmul.bf16.gmra.mxu0 %v1817
      %v1970 = vpop.f32.mrf.mxu0
      %v1971 = vadd.f32 %v1657, %v1970
      %v1972 = vpop.f32.mrf.mxu0
      %v1973 = vadd.f32 %v1659, %v1972
      %1974 = vmatmul.bf16.gmra.mxu0 %v1820
      %v1975 = vpop.f32.mrf.mxu0
      %v1976 = vadd.f32 %v1662, %v1975
      %v1977 = vpop.f32.mrf.mxu0
      %v1978 = vadd.f32 %v1664, %v1977
      %1979 = vmatmul.bf16.gmra.mxu0 %v1823
      %v1980 = vpop.f32.mrf.mxu0
      %v1981 = vadd.f32 %v1667, %v1980
      %v1982 = vpop.f32.mrf.mxu0
      %v1983 = vadd.f32 %v1669, %v1982
      %1984 = vmatmul.bf16.gmra.mxu0 %v1826
      %v1985 = vpop.f32.mrf.mxu0
      %v1986 = vadd.f32 %v1672, %v1985
      %v1987 = vpop.f32.mrf.mxu0
      %v1988 = vadd.f32 %v1674, %v1987
      %1989 = vmatmul.bf16.gmra.mxu0 %v1829
      %v1990 = vpop.f32.mrf.mxu0
      %v1991 = vadd.f32 %v1677, %v1990
      %v1992 = vpop.f32.mrf.mxu0
      %v1993 = vadd.f32 %v1679, %v1992
      %1994 = vmatmul.bf16.gmra.mxu0 %v1832
      %v1995 = vpop.f32.mrf.mxu0
      %v1996 = vadd.f32 %v1682, %v1995
      %v1997 = vpop.f32.mrf.mxu0
      %v1998 = vadd.f32 %v1684, %v1997
      %1999 = vmatmul.bf16.gmra.mxu0 %v1835
      %v2000 = vpop.f32.mrf.mxu0
      %v2001 = vadd.f32 %v1687, %v2000
      %v2002 = vpop.f32.mrf.mxu0
      %v2003 = vadd.f32 %v1689, %v2002
      %2004 = vmatmul.bf16.gmra.mxu0 %v1838
      %v2005 = vpop.f32.mrf.mxu0
      %v2006 = vadd.f32 %v1692, %v2005
      %v2007 = vpop.f32.mrf.mxu0
      %v2008 = vadd.f32 %v1694, %v2007
      %2009 = vmatmul.bf16.gmra.mxu0 %v1841
      %v2010 = vpop.f32.mrf.mxu0
      %v2011 = vadd.f32 %v1697, %v2010
      %v2012 = vpop.f32.mrf.mxu0
      %v2013 = vadd.f32 %v1699, %v2012
      %2014 = vmatmul.bf16.gmra.mxu0 %v1844
      %v2015 = vpop.f32.mrf.mxu0
      %v2016 = vadd.f32 %v1702, %v2015
      %v2017 = vpop.f32.mrf.mxu0
      %v2018 = vadd.f32 %v1704, %v2017
      %2019 = vmatmul.bf16.gmra.mxu0 %v1847
      %v2020 = vpop.f32.mrf.mxu0
      %v2021 = vadd.f32 %v1707, %v2020
      %v2022 = vpop.f32.mrf.mxu0
      %v2023 = vadd.f32 %v1709, %v2022
      %2024 = vmatmul.bf16.gmra.mxu0 %v1850
      %v2025 = vpop.f32.mrf.mxu0
      %v2026 = vadd.f32 %v1712, %v2025
      %v2027 = vpop.f32.mrf.mxu0
      %v2028 = vadd.f32 %v1714, %v2027
      %2029 = vmatmul.bf16.gmra.mxu0 %v1853
      %v2030 = vpop.f32.mrf.mxu0
      %v2031 = vadd.f32 %v1717, %v2030
      %v2032 = vpop.f32.mrf.mxu0
      %v2033 = vadd.f32 %v1719, %v2032
      %2034 = vmatmul.bf16.gmra.mxu0 %v1856
      %v2035 = vpop.f32.mrf.mxu0
      %v2036 = vadd.f32 %v1722, %v2035
      %v2037 = vpop.f32.mrf.mxu0
      %v2038 = vadd.f32 %v1724, %v2037
      %2039 = vdwg.mxu0
      %v2040 = vld [vmem:[#allocation2] sm:$0xe]
      %v2041 = vld [vmem:[#allocation2 + $0x4] sm:$0xf]
      %v2042 = vld [vmem:[#allocation2 + $0x8] sm:$0x1]
      %v2043 = vld [vmem:[#allocation2 + $0xc] sm:$0xe]
      %v2044 = vld [vmem:[#allocation2 + $0x10] sm:$0xf]
      %v2045 = vld [vmem:[#allocation2 + $0x14] sm:$0x1]
      %v2046 = vld [vmem:[#allocation2 + $0x18] sm:$0xe]
      %v2047 = vld [vmem:[#allocation2 + $0x1c] sm:$0xf]
      %v2048 = vld [vmem:[#allocation2 + $0x20] sm:$0x1]
      %v2049 = vld [vmem:[#allocation2 + $0x24] sm:$0xe]
      %v2050 = vld [vmem:[#allocation2 + $0x28] sm:$0xf]
      %v2051 = vld [vmem:[#allocation2 + $0x2c] sm:$0x1]
      %v2052 = vld [vmem:[#allocation2 + $0x30] sm:$0xe]
      %v2053 = vld [vmem:[#allocation2 + $0x34] sm:$0xf]
      %v2054 = vld [vmem:[#allocation2 + $0x38] sm:$0x1]
      %v2055 = vld [vmem:[#allocation2 + $0x3c] sm:$0xe]
      %v2056 = vld [vmem:[#allocation2 + $0x40] sm:$0xf]
      %v2057 = vld [vmem:[#allocation2 + $0x44] sm:$0x1]
      %v2058 = vld [vmem:[#allocation2 + $0x48] sm:$0xe]
      %v2059 = vld [vmem:[#allocation2 + $0x4c] sm:$0xf]
      %v2060 = vld [vmem:[#allocation2 + $0x50] sm:$0x1]
      %v2061 = vld [vmem:[#allocation2 + $0x54] sm:$0xe]
      %v2062 = vld [vmem:[#allocation2 + $0x58] sm:$0xf]
      %v2063 = vld [vmem:[#allocation2 + $0x5c] sm:$0x1]
      %v2064 = vld [vmem:[#allocation2 + $0x60] sm:$0xe]
      %v2065 = vld [vmem:[#allocation2 + $0x64] sm:$0xf]
      %v2066 = vld [vmem:[#allocation2 + $0x68] sm:$0x1]
      %v2067 = vld [vmem:[#allocation2 + $0x6c] sm:$0xe]
      %v2068 = vld [vmem:[#allocation2 + $0x70] sm:$0xf]
      %v2069 = vld [vmem:[#allocation2 + $0x74] sm:$0x1]
      %v2070 = vld [vmem:[#allocation2 + $0x78] sm:$0xe]
      %v2071 = vld [vmem:[#allocation2 + $0x7c] sm:$0xf]
      %v2072 = vld [vmem:[#allocation2 + $0x80] sm:$0x1]
      %v2073 = vld [vmem:[#allocation2 + $0x84] sm:$0xe]
      %v2074 = vld [vmem:[#allocation2 + $0x88] sm:$0xf]
      %v2075 = vld [vmem:[#allocation2 + $0x8c] sm:$0x1]
      %v2076 = vld [vmem:[#allocation2 + $0x90] sm:$0xe]
      %v2077 = vld [vmem:[#allocation2 + $0x94] sm:$0xf]
      %v2078 = vld [vmem:[#allocation2 + $0x98] sm:$0x1]
      %v2079 = vld [vmem:[#allocation2 + $0x9c] sm:$0xe]
      %v2080 = vld [vmem:[#allocation2 + $0xa0] sm:$0xf]
      %v2081 = vld [vmem:[#allocation2 + $0xa4] sm:$0x1]
      %v2082 = vld [vmem:[#allocation2 + $0xa8] sm:$0xe]
      %v2083 = vld [vmem:[#allocation2 + $0xac] sm:$0xf]
      %v2084 = vld [vmem:[#allocation2 + $0xb0] sm:$0x1]
      %v2085 = vld [vmem:[#allocation2 + $0xb4] sm:$0xe]
      %v2086 = vld [vmem:[#allocation2 + $0xb8] sm:$0xf]
      %v2087 = vld [vmem:[#allocation2 + $0xbc] sm:$0x1]
      %vm2136 = vcmask 1042432
      %vm2137 = vcmask 1046532
      %vm2138 = vmor %vm2136, %vm2137
      %v2139 = vrot.slane %v2040, 5
      %v2140 = vrot.slane %v2139, 4
      %v2141 = vrot.slane %v2041, 5
      %v2142 = vsel %vm2138, %v2140, %v2141
      %v2143 = vrot.slane %v2141, 4
      %v2144 = vrot.slane %v2042, 5
      %v2145 = vsel %vm2138, %v2143, %v2144
      %v2146 = vrot.slane %v2043, 5
      %v2147 = vrot.slane %v2146, 4
      %v2148 = vrot.slane %v2044, 5
      %v2149 = vsel %vm2138, %v2147, %v2148
      %v2150 = vrot.slane %v2148, 4
      %v2151 = vrot.slane %v2045, 5
      %v2152 = vsel %vm2138, %v2150, %v2151
      %v2153 = vrot.slane %v2046, 5
      %v2154 = vrot.slane %v2153, 4
      %v2155 = vrot.slane %v2047, 5
      %v2156 = vsel %vm2138, %v2154, %v2155
      %v2157 = vrot.slane %v2155, 4
      %v2158 = vrot.slane %v2048, 5
      %v2159 = vsel %vm2138, %v2157, %v2158
      %v2160 = vrot.slane %v2049, 5
      %v2161 = vrot.slane %v2160, 4
      %v2162 = vrot.slane %v2050, 5
      %v2163 = vsel %vm2138, %v2161, %v2162
      %v2164 = vrot.slane %v2162, 4
      %v2165 = vrot.slane %v2051, 5
      %v2166 = vsel %vm2138, %v2164, %v2165
      %v2167 = vrot.slane %v2052, 5
      %v2168 = vrot.slane %v2167, 4
      %v2169 = vrot.slane %v2053, 5
      %v2170 = vsel %vm2138, %v2168, %v2169
      %v2171 = vrot.slane %v2169, 4
      %v2172 = vrot.slane %v2054, 5
      %v2173 = vsel %vm2138, %v2171, %v2172
      %v2174 = vrot.slane %v2055, 5
      %v2175 = vrot.slane %v2174, 4
      %v2176 = vrot.slane %v2056, 5
      %v2177 = vsel %vm2138, %v2175, %v2176
      %v2178 = vrot.slane %v2176, 4
      %v2179 = vrot.slane %v2057, 5
      %v2180 = vsel %vm2138, %v2178, %v2179
      %v2181 = vrot.slane %v2058, 5
      %v2182 = vrot.slane %v2181, 4
      %v2183 = vrot.slane %v2059, 5
      %v2184 = vsel %vm2138, %v2182, %v2183
      %v2185 = vrot.slane %v2183, 4
      %v2186 = vrot.slane %v2060, 5
      %v2187 = vsel %vm2138, %v2185, %v2186
      %v2188 = vrot.slane %v2061, 5
      %v2189 = vrot.slane %v2188, 4
      %v2190 = vrot.slane %v2062, 5
      %v2191 = vsel %vm2138, %v2189, %v2190
      %v2192 = vrot.slane %v2190, 4
      %v2193 = vrot.slane %v2063, 5
      %v2194 = vsel %vm2138, %v2192, %v2193
      %v2195 = vrot.slane %v2064, 5
      %v2196 = vrot.slane %v2195, 4
      %v2197 = vrot.slane %v2065, 5
      %v2198 = vsel %vm2138, %v2196, %v2197
      %v2199 = vrot.slane %v2197, 4
      %v2200 = vrot.slane %v2066, 5
      %v2201 = vsel %vm2138, %v2199, %v2200
      %v2202 = vrot.slane %v2067, 5
      %v2203 = vrot.slane %v2202, 4
      %v2204 = vrot.slane %v2068, 5
      %v2205 = vsel %vm2138, %v2203, %v2204
      %v2206 = vrot.slane %v2204, 4
      %v2207 = vrot.slane %v2069, 5
      %v2208 = vsel %vm2138, %v2206, %v2207
      %v2209 = vrot.slane %v2070, 5
      %v2210 = vrot.slane %v2209, 4
      %v2211 = vrot.slane %v2071, 5
      %v2212 = vsel %vm2138, %v2210, %v2211
      %v2213 = vrot.slane %v2211, 4
      %v2214 = vrot.slane %v2072, 5
      %v2215 = vsel %vm2138, %v2213, %v2214
      %v2216 = vrot.slane %v2073, 5
      %v2217 = vrot.slane %v2216, 4
      %v2218 = vrot.slane %v2074, 5
      %v2219 = vsel %vm2138, %v2217, %v2218
      %v2220 = vrot.slane %v2218, 4
      %v2221 = vrot.slane %v2075, 5
      %v2222 = vsel %vm2138, %v2220, %v2221
      %v2223 = vrot.slane %v2076, 5
      %v2224 = vrot.slane %v2223, 4
      %v2225 = vrot.slane %v2077, 5
      %v2226 = vsel %vm2138, %v2224, %v2225
      %v2227 = vrot.slane %v2225, 4
      %v2228 = vrot.slane %v2078, 5
      %v2229 = vsel %vm2138, %v2227, %v2228
      %v2230 = vrot.slane %v2079, 5
      %v2231 = vrot.slane %v2230, 4
      %v2232 = vrot.slane %v2080, 5
      %v2233 = vsel %vm2138, %v2231, %v2232
      %v2234 = vrot.slane %v2232, 4
      %v2235 = vrot.slane %v2081, 5
      %v2236 = vsel %vm2138, %v2234, %v2235
      %v2237 = vrot.slane %v2082, 5
      %v2238 = vrot.slane %v2237, 4
      %v2239 = vrot.slane %v2083, 5
      %v2240 = vsel %vm2138, %v2238, %v2239
      %v2241 = vrot.slane %v2239, 4
      %v2242 = vrot.slane %v2084, 5
      %v2243 = vsel %vm2138, %v2241, %v2242
      %v2244 = vrot.slane %v2085, 5
      %v2245 = vrot.slane %v2244, 4
      %v2246 = vrot.slane %v2086, 5
      %v2247 = vsel %vm2138, %v2245, %v2246
      %v2248 = vrot.slane %v2246, 4
      %v2249 = vrot.slane %v2087, 5
      %v2250 = vsel %vm2138, %v2248, %v2249
      %s2251 = scalar_lea.vmem %s2, 8
      %v2252 = vld [vmem:[%s2251] sm:$0xf]
      %v2253 = vunpack.c.l.b16 %v2142
      %v2254 = vunpack.c.l.b16 %v2145
      %v2255 = vunpack.c.l.b16 %v2149
      %v2256 = vunpack.c.l.b16 %v2152
      %v2257 = vunpack.c.l.b16 %v2156
      %v2258 = vunpack.c.l.b16 %v2159
      %v2259 = vunpack.c.l.b16 %v2163
      %v2260 = vunpack.c.l.b16 %v2166
      %v2261 = vunpack.c.l.b16 %v2170
      %v2262 = vunpack.c.l.b16 %v2173
      %v2263 = vunpack.c.l.b16 %v2177
      %v2264 = vunpack.c.l.b16 %v2180
      %v2265 = vunpack.c.l.b16 %v2184
      %v2266 = vunpack.c.l.b16 %v2187
      %v2267 = vunpack.c.l.b16 %v2191
      %v2268 = vunpack.c.l.b16 %v2194
      %v2269 = vunpack.c.l.b16 %v2198
      %v2270 = vunpack.c.l.b16 %v2201
      %v2271 = vunpack.c.l.b16 %v2205
      %v2272 = vunpack.c.l.b16 %v2208
      %v2273 = vunpack.c.l.b16 %v2212
      %v2274 = vunpack.c.l.b16 %v2215
      %v2275 = vunpack.c.l.b16 %v2219
      %v2276 = vunpack.c.l.b16 %v2222
      %v2277 = vunpack.c.l.b16 %v2226
      %v2278 = vunpack.c.l.b16 %v2229
      %v2279 = vunpack.c.l.b16 %v2233
      %v2280 = vunpack.c.l.b16 %v2236
      %v2281 = vunpack.c.l.b16 %v2240
      %v2282 = vunpack.c.l.b16 %v2243
      %v2283 = vunpack.c.l.b16 %v2247
      %v2284 = vunpack.c.l.b16 %v2250
      %v2285 = vpack.c.b16 %v2254, %v2253
      %v2286 = vpack.c.b16 %v2256, %v2255
      %v2287 = vpack.c.b16 %v2258, %v2257
      %v2288 = vpack.c.b16 %v2260, %v2259
      %v2289 = vpack.c.b16 %v2262, %v2261
      %v2290 = vpack.c.b16 %v2264, %v2263
      %v2291 = vpack.c.b16 %v2266, %v2265
      %v2292 = vpack.c.b16 %v2268, %v2267
      %v2293 = vpack.c.b16 %v2270, %v2269
      %v2294 = vpack.c.b16 %v2272, %v2271
      %v2295 = vpack.c.b16 %v2274, %v2273
      %v2296 = vpack.c.b16 %v2276, %v2275
      %v2297 = vpack.c.b16 %v2278, %v2277
      %v2298 = vpack.c.b16 %v2280, %v2279
      %v2299 = vpack.c.b16 %v2282, %v2281
      %v2300 = vpack.c.b16 %v2284, %v2283
      %2302 = vst [vmem:[#allocation1] ss:$4 sm:$0xff] %v2252
      %v2303 = vld.sshfl [vmem:[#allocation1] sm:$0xff pattern:$0x73625140]
      %v2304 = vld.sshfl [vmem:[#allocation1 + $0x8] sm:$0xff pattern:$0x73625140]
      %v2306 = vsel %vm1494, %v2285, 0
      %v2309 = vsel %vm1494, %v2286, 0
      %v2312 = vsel %vm1494, %v2287, 0
      %v2315 = vsel %vm1494, %v2288, 0
      %v2318 = vsel %vm1494, %v2289, 0
      %v2321 = vsel %vm1494, %v2290, 0
      %v2324 = vsel %vm1494, %v2291, 0
      %v2327 = vsel %vm1494, %v2292, 0
      %v2330 = vsel %vm1494, %v2293, 0
      %v2333 = vsel %vm1494, %v2294, 0
      %v2336 = vsel %vm1494, %v2295, 0
      %v2339 = vsel %vm1494, %v2296, 0
      %v2342 = vsel %vm1494, %v2297, 0
      %v2345 = vsel %vm1494, %v2298, 0
      %v2348 = vsel %vm1494, %v2299, 0
      %v2351 = vsel %vm1494, %v2300, 0
      %v2353 = vsel %vm1543, %v2303, 0
      %v2355 = vsel %vm1543, %v2304, 0
      %2357 = vmatpush.bf16.msra.mxu0 0
      %2358 = vmatpush.bf16.msra.mxu0 0
      %2359 = vmatpush.bf16.msra.mxu0 0
      %2360 = vmatpush.bf16.msra.mxu0 0
      %2361 = vmatpush.bf16.msra.mxu0 0
      %2362 = vmatpush.bf16.msra.mxu0 0
      %2363 = vmatpush.bf16.msra.mxu0 0
      %2364 = vmatpush.bf16.msra.mxu0 %v2353
      %2365 = vmatmul.bf16.gmra.mxu0 %v2306
      %v2366 = vpop.f32.mrf.mxu0
      %v2367 = vadd.f32 0.0, %v2366
      %v2368 = vpop.f32.mrf.mxu0
      %v2369 = vadd.f32 0.0, %v2368
      %2370 = vmatmul.bf16.gmra.mxu0 %v2309
      %v2371 = vpop.f32.mrf.mxu0
      %v2372 = vadd.f32 0.0, %v2371
      %v2373 = vpop.f32.mrf.mxu0
      %v2374 = vadd.f32 0.0, %v2373
      %2375 = vmatmul.bf16.gmra.mxu0 %v2312
      %v2376 = vpop.f32.mrf.mxu0
      %v2377 = vadd.f32 0.0, %v2376
      %v2378 = vpop.f32.mrf.mxu0
      %v2379 = vadd.f32 0.0, %v2378
      %2380 = vmatmul.bf16.gmra.mxu0 %v2315
      %v2381 = vpop.f32.mrf.mxu0
      %v2382 = vadd.f32 0.0, %v2381
      %v2383 = vpop.f32.mrf.mxu0
      %v2384 = vadd.f32 0.0, %v2383
      %2385 = vmatmul.bf16.gmra.mxu0 %v2318
      %v2386 = vpop.f32.mrf.mxu0
      %v2387 = vadd.f32 0.0, %v2386
      %v2388 = vpop.f32.mrf.mxu0
      %v2389 = vadd.f32 0.0, %v2388
      %2390 = vmatmul.bf16.gmra.mxu0 %v2321
      %v2391 = vpop.f32.mrf.mxu0
      %v2392 = vadd.f32 0.0, %v2391
      %v2393 = vpop.f32.mrf.mxu0
      %v2394 = vadd.f32 0.0, %v2393
      %2395 = vmatmul.bf16.gmra.mxu0 %v2324
      %v2396 = vpop.f32.mrf.mxu0
      %v2397 = vadd.f32 0.0, %v2396
      %v2398 = vpop.f32.mrf.mxu0
      %v2399 = vadd.f32 0.0, %v2398
      %2400 = vmatmul.bf16.gmra.mxu0 %v2327
      %v2401 = vpop.f32.mrf.mxu0
      %v2402 = vadd.f32 0.0, %v2401
      %v2403 = vpop.f32.mrf.mxu0
      %v2404 = vadd.f32 0.0, %v2403
      %2405 = vmatmul.bf16.gmra.mxu0 %v2330
      %v2406 = vpop.f32.mrf.mxu0
      %v2407 = vadd.f32 0.0, %v2406
      %v2408 = vpop.f32.mrf.mxu0
      %v2409 = vadd.f32 0.0, %v2408
      %2410 = vmatmul.bf16.gmra.mxu0 %v2333
      %v2411 = vpop.f32.mrf.mxu0
      %v2412 = vadd.f32 0.0, %v2411
      %v2413 = vpop.f32.mrf.mxu0
      %v2414 = vadd.f32 0.0, %v2413
      %2415 = vmatmul.bf16.gmra.mxu0 %v2336
      %v2416 = vpop.f32.mrf.mxu0
      %v2417 = vadd.f32 0.0, %v2416
      %v2418 = vpop.f32.mrf.mxu0
      %v2419 = vadd.f32 0.0, %v2418
      %2420 = vmatmul.bf16.gmra.mxu0 %v2339
      %v2421 = vpop.f32.mrf.mxu0
      %v2422 = vadd.f32 0.0, %v2421
      %v2423 = vpop.f32.mrf.mxu0
      %v2424 = vadd.f32 0.0, %v2423
      %2425 = vmatmul.bf16.gmra.mxu0 %v2342
      %v2426 = vpop.f32.mrf.mxu0
      %v2427 = vadd.f32 0.0, %v2426
      %v2428 = vpop.f32.mrf.mxu0
      %v2429 = vadd.f32 0.0, %v2428
      %2430 = vmatmul.bf16.gmra.mxu0 %v2345
      %v2431 = vpop.f32.mrf.mxu0
      %v2432 = vadd.f32 0.0, %v2431
      %v2433 = vpop.f32.mrf.mxu0
      %v2434 = vadd.f32 0.0, %v2433
      %2435 = vmatmul.bf16.gmra.mxu0 %v2348
      %v2436 = vpop.f32.mrf.mxu0
      %v2437 = vadd.f32 0.0, %v2436
      %v2438 = vpop.f32.mrf.mxu0
      %v2439 = vadd.f32 0.0, %v2438
      %2440 = vmatmul.bf16.gmra.mxu0 %v2351
      %v2441 = vpop.f32.mrf.mxu0
      %v2442 = vadd.f32 0.0, %v2441
      %v2443 = vpop.f32.mrf.mxu0
      %v2444 = vadd.f32 0.0, %v2443
      %2445 = vdwg.mxu0
      %2446 = vmatpush.bf16.msra.mxu0 0
      %2447 = vmatpush.bf16.msra.mxu0 0
      %2448 = vmatpush.bf16.msra.mxu0 0
      %2449 = vmatpush.bf16.msra.mxu0 0
      %2450 = vmatpush.bf16.msra.mxu0 0
      %2451 = vmatpush.bf16.msra.mxu0 0
      %2452 = vmatpush.bf16.msra.mxu0 0
      %2453 = vmatpush.bf16.msra.mxu0 %v2355
      %2454 = vmatmul.bf16.gmra.mxu0 %v2306
      %v2455 = vpop.f32.mrf.mxu0
      %v2456 = vadd.f32 0.0, %v2455
      %v2457 = vpop.f32.mrf.mxu0
      %v2458 = vadd.f32 0.0, %v2457
      %2459 = vmatmul.bf16.gmra.mxu0 %v2309
      %v2460 = vpop.f32.mrf.mxu0
      %v2461 = vadd.f32 0.0, %v2460
      %v2462 = vpop.f32.mrf.mxu0
      %v2463 = vadd.f32 0.0, %v2462
      %2464 = vmatmul.bf16.gmra.mxu0 %v2312
      %v2465 = vpop.f32.mrf.mxu0
      %v2466 = vadd.f32 0.0, %v2465
      %v2467 = vpop.f32.mrf.mxu0
      %v2468 = vadd.f32 0.0, %v2467
      %2469 = vmatmul.bf16.gmra.mxu0 %v2315
      %v2470 = vpop.f32.mrf.mxu0
      %v2471 = vadd.f32 0.0, %v2470
      %v2472 = vpop.f32.mrf.mxu0
      %v2473 = vadd.f32 0.0, %v2472
      %2474 = vmatmul.bf16.gmra.mxu0 %v2318
      %v2475 = vpop.f32.mrf.mxu0
      %v2476 = vadd.f32 0.0, %v2475
      %v2477 = vpop.f32.mrf.mxu0
      %v2478 = vadd.f32 0.0, %v2477
      %2479 = vmatmul.bf16.gmra.mxu0 %v2321
      %v2480 = vpop.f32.mrf.mxu0
      %v2481 = vadd.f32 0.0, %v2480
      %v2482 = vpop.f32.mrf.mxu0
      %v2483 = vadd.f32 0.0, %v2482
      %2484 = vmatmul.bf16.gmra.mxu0 %v2324
      %v2485 = vpop.f32.mrf.mxu0
      %v2486 = vadd.f32 0.0, %v2485
      %v2487 = vpop.f32.mrf.mxu0
      %v2488 = vadd.f32 0.0, %v2487
      %2489 = vmatmul.bf16.gmra.mxu0 %v2327
      %v2490 = vpop.f32.mrf.mxu0
      %v2491 = vadd.f32 0.0, %v2490
      %v2492 = vpop.f32.mrf.mxu0
      %v2493 = vadd.f32 0.0, %v2492
      %2494 = vmatmul.bf16.gmra.mxu0 %v2330
      %v2495 = vpop.f32.mrf.mxu0
      %v2496 = vadd.f32 0.0, %v2495
      %v2497 = vpop.f32.mrf.mxu0
      %v2498 = vadd.f32 0.0, %v2497
      %2499 = vmatmul.bf16.gmra.mxu0 %v2333
      %v2500 = vpop.f32.mrf.mxu0
      %v2501 = vadd.f32 0.0, %v2500
      %v2502 = vpop.f32.mrf.mxu0
      %v2503 = vadd.f32 0.0, %v2502
      %2504 = vmatmul.bf16.gmra.mxu0 %v2336
      %v2505 = vpop.f32.mrf.mxu0
      %v2506 = vadd.f32 0.0, %v2505
      %v2507 = vpop.f32.mrf.mxu0
      %v2508 = vadd.f32 0.0, %v2507
      %2509 = vmatmul.bf16.gmra.mxu0 %v2339
      %v2510 = vpop.f32.mrf.mxu0
      %v2511 = vadd.f32 0.0, %v2510
      %v2512 = vpop.f32.mrf.mxu0
      %v2513 = vadd.f32 0.0, %v2512
      %2514 = vmatmul.bf16.gmra.mxu0 %v2342
      %v2515 = vpop.f32.mrf.mxu0
      %v2516 = vadd.f32 0.0, %v2515
      %v2517 = vpop.f32.mrf.mxu0
      %v2518 = vadd.f32 0.0, %v2517
      %2519 = vmatmul.bf16.gmra.mxu0 %v2345
      %v2520 = vpop.f32.mrf.mxu0
      %v2521 = vadd.f32 0.0, %v2520
      %v2522 = vpop.f32.mrf.mxu0
      %v2523 = vadd.f32 0.0, %v2522
      %2524 = vmatmul.bf16.gmra.mxu0 %v2348
      %v2525 = vpop.f32.mrf.mxu0
      %v2526 = vadd.f32 0.0, %v2525
      %v2527 = vpop.f32.mrf.mxu0
      %v2528 = vadd.f32 0.0, %v2527
      %2529 = vmatmul.bf16.gmra.mxu0 %v2351
      %v2530 = vpop.f32.mrf.mxu0
      %v2531 = vadd.f32 0.0, %v2530
      %v2532 = vpop.f32.mrf.mxu0
      %v2533 = vadd.f32 0.0, %v2532
      %2534 = vdwg.mxu0
      %v2535 = vadd.f32 %v1872, %v2367
      %v2536 = vadd.f32 %v1961, %v2456
      %v2537 = vadd.f32 %v1874, %v2369
      %v2538 = vadd.f32 %v1963, %v2458
      %v2539 = vadd.f32 %v1877, %v2372
      %v2540 = vadd.f32 %v1966, %v2461
      %v2541 = vadd.f32 %v1879, %v2374
      %v2542 = vadd.f32 %v1968, %v2463
      %v2543 = vadd.f32 %v1882, %v2377
      %v2544 = vadd.f32 %v1971, %v2466
      %v2545 = vadd.f32 %v1884, %v2379
      %v2546 = vadd.f32 %v1973, %v2468
      %v2547 = vadd.f32 %v1887, %v2382
      %v2548 = vadd.f32 %v1976, %v2471
      %v2549 = vadd.f32 %v1889, %v2384
      %v2550 = vadd.f32 %v1978, %v2473
      %v2551 = vadd.f32 %v1892, %v2387
      %v2552 = vadd.f32 %v1981, %v2476
      %v2553 = vadd.f32 %v1894, %v2389
      %v2554 = vadd.f32 %v1983, %v2478
      %v2555 = vadd.f32 %v1897, %v2392
      %v2556 = vadd.f32 %v1986, %v2481
      %v2557 = vadd.f32 %v1899, %v2394
      %v2558 = vadd.f32 %v1988, %v2483
      %v2559 = vadd.f32 %v1902, %v2397
      %v2560 = vadd.f32 %v1991, %v2486
      %v2561 = vadd.f32 %v1904, %v2399
      %v2562 = vadd.f32 %v1993, %v2488
      %v2563 = vadd.f32 %v1907, %v2402
      %v2564 = vadd.f32 %v1996, %v2491
      %v2565 = vadd.f32 %v1909, %v2404
      %v2566 = vadd.f32 %v1998, %v2493
      %v2567 = vadd.f32 %v1912, %v2407
      %v2568 = vadd.f32 %v2001, %v2496
      %v2569 = vadd.f32 %v1914, %v2409
      %v2570 = vadd.f32 %v2003, %v2498
      %v2571 = vadd.f32 %v1917, %v2412
      %v2572 = vadd.f32 %v2006, %v2501
      %v2573 = vadd.f32 %v1919, %v2414
      %v2574 = vadd.f32 %v2008, %v2503
      %v2575 = vadd.f32 %v1922, %v2417
      %v2576 = vadd.f32 %v2011, %v2506
      %v2577 = vadd.f32 %v1924, %v2419
      %v2578 = vadd.f32 %v2013, %v2508
      %v2579 = vadd.f32 %v1927, %v2422
      %v2580 = vadd.f32 %v2016, %v2511
      %v2581 = vadd.f32 %v1929, %v2424
      %v2582 = vadd.f32 %v2018, %v2513
      %v2583 = vadd.f32 %v1932, %v2427
      %v2584 = vadd.f32 %v2021, %v2516
      %v2585 = vadd.f32 %v1934, %v2429
      %v2586 = vadd.f32 %v2023, %v2518
      %v2587 = vadd.f32 %v1937, %v2432
      %v2588 = vadd.f32 %v2026, %v2521
      %v2589 = vadd.f32 %v1939, %v2434
      %v2590 = vadd.f32 %v2028, %v2523
      %v2591 = vadd.f32 %v1942, %v2437
      %v2592 = vadd.f32 %v2031, %v2526
      %v2593 = vadd.f32 %v1944, %v2439
      %v2594 = vadd.f32 %v2033, %v2528
      %v2595 = vadd.f32 %v1947, %v2442
      %v2596 = vadd.f32 %v2036, %v2531
      %v2597 = vadd.f32 %v1949, %v2444
      %v2598 = vadd.f32 %v2038, %v2533
      %v2599 = vld [vmem:[%s889] sm:$0xf]
      %v2600 = vld [vmem:[%s889 + $0x4] sm:$0xf]
      %v2601 = vld [vmem:[%s889 + $0xc] sm:$0xf]
      %v2602 = vld [vmem:[%s889 + $0x10] sm:$0xf]
      %v2603 = vld [vmem:[%s889 + $0x18] sm:$0xf]
      %v2604 = vld [vmem:[%s889 + $0x1c] sm:$0xf]
      %v2605 = vld [vmem:[%s889 + $0x24] sm:$0xf]
      %v2606 = vld [vmem:[%s889 + $0x28] sm:$0xf]
      %v2607 = vld [vmem:[%s889 + $0x30] sm:$0xf]
      %v2608 = vld [vmem:[%s889 + $0x34] sm:$0xf]
      %v2609 = vld [vmem:[%s889 + $0x3c] sm:$0xf]
      %v2610 = vld [vmem:[%s889 + $0x40] sm:$0xf]
      %v2611 = vld [vmem:[%s889 + $0x48] sm:$0xf]
      %v2612 = vld [vmem:[%s889 + $0x4c] sm:$0xf]
      %v2613 = vld [vmem:[%s889 + $0x54] sm:$0xf]
      %v2614 = vld [vmem:[%s889 + $0x58] sm:$0xf]
      %v2615 = vld [vmem:[%s889 + $0x60] sm:$0xf]
      %v2616 = vld [vmem:[%s889 + $0x64] sm:$0xf]
      %v2617 = vld [vmem:[%s889 + $0x6c] sm:$0xf]
      %v2618 = vld [vmem:[%s889 + $0x70] sm:$0xf]
      %v2619 = vld [vmem:[%s889 + $0x78] sm:$0xf]
      %v2620 = vld [vmem:[%s889 + $0x7c] sm:$0xf]
      %v2621 = vld [vmem:[%s889 + $0x84] sm:$0xf]
      %v2622 = vld [vmem:[%s889 + $0x88] sm:$0xf]
      %v2623 = vld [vmem:[%s889 + $0x90] sm:$0xf]
      %v2624 = vld [vmem:[%s889 + $0x94] sm:$0xf]
      %v2625 = vld [vmem:[%s889 + $0x9c] sm:$0xf]
      %v2626 = vld [vmem:[%s889 + $0xa0] sm:$0xf]
      %v2627 = vld [vmem:[%s889 + $0xa8] sm:$0xf]
      %v2628 = vld [vmem:[%s889 + $0xac] sm:$0xf]
      %v2629 = vld [vmem:[%s889 + $0xb4] sm:$0xf]
      %v2630 = vld [vmem:[%s889 + $0xb8] sm:$0xf]
      %s2631 = scalar_lea.vmem %s2, 12
      %v2632 = vld [vmem:[%s2631] sm:$0xf]
      %v2665 = vunpack.c.l.b16 %v2599
      %v2666 = vunpack.c.l.b16 %v2600
      %v2667 = vunpack.c.l.b16 %v2601
      %v2668 = vunpack.c.l.b16 %v2602
      %v2669 = vunpack.c.l.b16 %v2603
      %v2670 = vunpack.c.l.b16 %v2604
      %v2671 = vunpack.c.l.b16 %v2605
      %v2672 = vunpack.c.l.b16 %v2606
      %v2673 = vunpack.c.l.b16 %v2607
      %v2674 = vunpack.c.l.b16 %v2608
      %v2675 = vunpack.c.l.b16 %v2609
      %v2676 = vunpack.c.l.b16 %v2610
      %v2677 = vunpack.c.l.b16 %v2611
      %v2678 = vunpack.c.l.b16 %v2612
      %v2679 = vunpack.c.l.b16 %v2613
      %v2680 = vunpack.c.l.b16 %v2614
      %v2681 = vunpack.c.l.b16 %v2615
      %v2682 = vunpack.c.l.b16 %v2616
      %v2683 = vunpack.c.l.b16 %v2617
      %v2684 = vunpack.c.l.b16 %v2618
      %v2685 = vunpack.c.l.b16 %v2619
      %v2686 = vunpack.c.l.b16 %v2620
      %v2687 = vunpack.c.l.b16 %v2621
      %v2688 = vunpack.c.l.b16 %v2622
      %v2689 = vunpack.c.l.b16 %v2623
      %v2690 = vunpack.c.l.b16 %v2624
      %v2691 = vunpack.c.l.b16 %v2625
      %v2692 = vunpack.c.l.b16 %v2626
      %v2693 = vunpack.c.l.b16 %v2627
      %v2694 = vunpack.c.l.b16 %v2628
      %v2695 = vunpack.c.l.b16 %v2629
      %v2696 = vunpack.c.l.b16 %v2630
      %v2697 = vpack.c.b16 %v2666, %v2665
      %v2698 = vpack.c.b16 %v2668, %v2667
      %v2699 = vpack.c.b16 %v2670, %v2669
      %v2700 = vpack.c.b16 %v2672, %v2671
      %v2701 = vpack.c.b16 %v2674, %v2673
      %v2702 = vpack.c.b16 %v2676, %v2675
      %v2703 = vpack.c.b16 %v2678, %v2677
      %v2704 = vpack.c.b16 %v2680, %v2679
      %v2705 = vpack.c.b16 %v2682, %v2681
      %v2706 = vpack.c.b16 %v2684, %v2683
      %v2707 = vpack.c.b16 %v2686, %v2685
      %v2708 = vpack.c.b16 %v2688, %v2687
      %v2709 = vpack.c.b16 %v2690, %v2689
      %v2710 = vpack.c.b16 %v2692, %v2691
      %v2711 = vpack.c.b16 %v2694, %v2693
      %v2712 = vpack.c.b16 %v2696, %v2695
      %2714 = vst [vmem:[#allocation1] ss:$4 sm:$0xff] %v2632
      %v2715 = vld.sshfl [vmem:[#allocation1] sm:$0xff pattern:$0x73625140]
      %v2716 = vld.sshfl [vmem:[#allocation1 + $0x8] sm:$0xff pattern:$0x73625140]
      %v2718 = vsel %vm1494, %v2697, 0
      %v2721 = vsel %vm1494, %v2698, 0
      %v2724 = vsel %vm1494, %v2699, 0
      %v2727 = vsel %vm1494, %v2700, 0
      %v2730 = vsel %vm1494, %v2701, 0
      %v2733 = vsel %vm1494, %v2702, 0
      %v2736 = vsel %vm1494, %v2703, 0
      %v2739 = vsel %vm1494, %v2704, 0
      %v2742 = vsel %vm1494, %v2705, 0
      %v2745 = vsel %vm1494, %v2706, 0
      %v2748 = vsel %vm1494, %v2707, 0
      %v2751 = vsel %vm1494, %v2708, 0
      %v2754 = vsel %vm1494, %v2709, 0
      %v2757 = vsel %vm1494, %v2710, 0
      %v2760 = vsel %vm1494, %v2711, 0
      %v2763 = vsel %vm1494, %v2712, 0
      %v2765 = vsel %vm1543, %v2715, 0
      %v2767 = vsel %vm1543, %v2716, 0
      %2769 = vmatpush.bf16.msra.mxu0 0
      %2770 = vmatpush.bf16.msra.mxu0 0
      %2771 = vmatpush.bf16.msra.mxu0 0
      %2772 = vmatpush.bf16.msra.mxu0 0
      %2773 = vmatpush.bf16.msra.mxu0 0
      %2774 = vmatpush.bf16.msra.mxu0 0
      %2775 = vmatpush.bf16.msra.mxu0 0
      %2776 = vmatpush.bf16.msra.mxu0 %v2765
      %2777 = vmatmul.bf16.gmra.mxu0 %v2718
      %v2778 = vpop.f32.mrf.mxu0
      %v2779 = vadd.f32 0.0, %v2778
      %v2780 = vpop.f32.mrf.mxu0
      %v2781 = vadd.f32 0.0, %v2780
      %2782 = vmatmul.bf16.gmra.mxu0 %v2721
      %v2783 = vpop.f32.mrf.mxu0
      %v2784 = vadd.f32 0.0, %v2783
      %v2785 = vpop.f32.mrf.mxu0
      %v2786 = vadd.f32 0.0, %v2785
      %2787 = vmatmul.bf16.gmra.mxu0 %v2724
      %v2788 = vpop.f32.mrf.mxu0
      %v2789 = vadd.f32 0.0, %v2788
      %v2790 = vpop.f32.mrf.mxu0
      %v2791 = vadd.f32 0.0, %v2790
      %2792 = vmatmul.bf16.gmra.mxu0 %v2727
      %v2793 = vpop.f32.mrf.mxu0
      %v2794 = vadd.f32 0.0, %v2793
      %v2795 = vpop.f32.mrf.mxu0
      %v2796 = vadd.f32 0.0, %v2795
      %2797 = vmatmul.bf16.gmra.mxu0 %v2730
      %v2798 = vpop.f32.mrf.mxu0
      %v2799 = vadd.f32 0.0, %v2798
      %v2800 = vpop.f32.mrf.mxu0
      %v2801 = vadd.f32 0.0, %v2800
      %2802 = vmatmul.bf16.gmra.mxu0 %v2733
      %v2803 = vpop.f32.mrf.mxu0
      %v2804 = vadd.f32 0.0, %v2803
      %v2805 = vpop.f32.mrf.mxu0
      %v2806 = vadd.f32 0.0, %v2805
      %2807 = vmatmul.bf16.gmra.mxu0 %v2736
      %v2808 = vpop.f32.mrf.mxu0
      %v2809 = vadd.f32 0.0, %v2808
      %v2810 = vpop.f32.mrf.mxu0
      %v2811 = vadd.f32 0.0, %v2810
      %2812 = vmatmul.bf16.gmra.mxu0 %v2739
      %v2813 = vpop.f32.mrf.mxu0
      %v2814 = vadd.f32 0.0, %v2813
      %v2815 = vpop.f32.mrf.mxu0
      %v2816 = vadd.f32 0.0, %v2815
      %2817 = vmatmul.bf16.gmra.mxu0 %v2742
      %v2818 = vpop.f32.mrf.mxu0
      %v2819 = vadd.f32 0.0, %v2818
      %v2820 = vpop.f32.mrf.mxu0
      %v2821 = vadd.f32 0.0, %v2820
      %2822 = vmatmul.bf16.gmra.mxu0 %v2745
      %v2823 = vpop.f32.mrf.mxu0
      %v2824 = vadd.f32 0.0, %v2823
      %v2825 = vpop.f32.mrf.mxu0
      %v2826 = vadd.f32 0.0, %v2825
      %2827 = vmatmul.bf16.gmra.mxu0 %v2748
      %v2828 = vpop.f32.mrf.mxu0
      %v2829 = vadd.f32 0.0, %v2828
      %v2830 = vpop.f32.mrf.mxu0
      %v2831 = vadd.f32 0.0, %v2830
      %2832 = vmatmul.bf16.gmra.mxu0 %v2751
      %v2833 = vpop.f32.mrf.mxu0
      %v2834 = vadd.f32 0.0, %v2833
      %v2835 = vpop.f32.mrf.mxu0
      %v2836 = vadd.f32 0.0, %v2835
      %2837 = vmatmul.bf16.gmra.mxu0 %v2754
      %v2838 = vpop.f32.mrf.mxu0
      %v2839 = vadd.f32 0.0, %v2838
      %v2840 = vpop.f32.mrf.mxu0
      %v2841 = vadd.f32 0.0, %v2840
      %2842 = vmatmul.bf16.gmra.mxu0 %v2757
      %v2843 = vpop.f32.mrf.mxu0
      %v2844 = vadd.f32 0.0, %v2843
      %v2845 = vpop.f32.mrf.mxu0
      %v2846 = vadd.f32 0.0, %v2845
      %2847 = vmatmul.bf16.gmra.mxu0 %v2760
      %v2848 = vpop.f32.mrf.mxu0
      %v2849 = vadd.f32 0.0, %v2848
      %v2850 = vpop.f32.mrf.mxu0
      %v2851 = vadd.f32 0.0, %v2850
      %2852 = vmatmul.bf16.gmra.mxu0 %v2763
      %v2853 = vpop.f32.mrf.mxu0
      %v2854 = vadd.f32 0.0, %v2853
      %v2855 = vpop.f32.mrf.mxu0
      %v2856 = vadd.f32 0.0, %v2855
      %2857 = vdwg.mxu0
      %2858 = vmatpush.bf16.msra.mxu0 0
      %2859 = vmatpush.bf16.msra.mxu0 0
      %2860 = vmatpush.bf16.msra.mxu0 0
      %2861 = vmatpush.bf16.msra.mxu0 0
      %2862 = vmatpush.bf16.msra.mxu0 0
      %2863 = vmatpush.bf16.msra.mxu0 0
      %2864 = vmatpush.bf16.msra.mxu0 0
      %2865 = vmatpush.bf16.msra.mxu0 %v2767
      %2866 = vmatmul.bf16.gmra.mxu0 %v2718
      %v2867 = vpop.f32.mrf.mxu0
      %v2868 = vadd.f32 0.0, %v2867
      %v2869 = vpop.f32.mrf.mxu0
      %v2870 = vadd.f32 0.0, %v2869
      %2871 = vmatmul.bf16.gmra.mxu0 %v2721
      %v2872 = vpop.f32.mrf.mxu0
      %v2873 = vadd.f32 0.0, %v2872
      %v2874 = vpop.f32.mrf.mxu0
      %v2875 = vadd.f32 0.0, %v2874
      %2876 = vmatmul.bf16.gmra.mxu0 %v2724
      %v2877 = vpop.f32.mrf.mxu0
      %v2878 = vadd.f32 0.0, %v2877
      %v2879 = vpop.f32.mrf.mxu0
      %v2880 = vadd.f32 0.0, %v2879
      %2881 = vmatmul.bf16.gmra.mxu0 %v2727
      %v2882 = vpop.f32.mrf.mxu0
      %v2883 = vadd.f32 0.0, %v2882
      %v2884 = vpop.f32.mrf.mxu0
      %v2885 = vadd.f32 0.0, %v2884
      %2886 = vmatmul.bf16.gmra.mxu0 %v2730
      %v2887 = vpop.f32.mrf.mxu0
      %v2888 = vadd.f32 0.0, %v2887
      %v2889 = vpop.f32.mrf.mxu0
      %v2890 = vadd.f32 0.0, %v2889
      %2891 = vmatmul.bf16.gmra.mxu0 %v2733
      %v2892 = vpop.f32.mrf.mxu0
      %v2893 = vadd.f32 0.0, %v2892
      %v2894 = vpop.f32.mrf.mxu0
      %v2895 = vadd.f32 0.0, %v2894
      %2896 = vmatmul.bf16.gmra.mxu0 %v2736
      %v2897 = vpop.f32.mrf.mxu0
      %v2898 = vadd.f32 0.0, %v2897
      %v2899 = vpop.f32.mrf.mxu0
      %v2900 = vadd.f32 0.0, %v2899
      %2901 = vmatmul.bf16.gmra.mxu0 %v2739
      %v2902 = vpop.f32.mrf.mxu0
      %v2903 = vadd.f32 0.0, %v2902
      %v2904 = vpop.f32.mrf.mxu0
      %v2905 = vadd.f32 0.0, %v2904
      %2906 = vmatmul.bf16.gmra.mxu0 %v2742
      %v2907 = vpop.f32.mrf.mxu0
      %v2908 = vadd.f32 0.0, %v2907
      %v2909 = vpop.f32.mrf.mxu0
      %v2910 = vadd.f32 0.0, %v2909
      %2911 = vmatmul.bf16.gmra.mxu0 %v2745
      %v2912 = vpop.f32.mrf.mxu0
      %v2913 = vadd.f32 0.0, %v2912
      %v2914 = vpop.f32.mrf.mxu0
      %v2915 = vadd.f32 0.0, %v2914
      %2916 = vmatmul.bf16.gmra.mxu0 %v2748
      %v2917 = vpop.f32.mrf.mxu0
      %v2918 = vadd.f32 0.0, %v2917
      %v2919 = vpop.f32.mrf.mxu0
      %v2920 = vadd.f32 0.0, %v2919
      %2921 = vmatmul.bf16.gmra.mxu0 %v2751
      %v2922 = vpop.f32.mrf.mxu0
      %v2923 = vadd.f32 0.0, %v2922
      %v2924 = vpop.f32.mrf.mxu0
      %v2925 = vadd.f32 0.0, %v2924
      %2926 = vmatmul.bf16.gmra.mxu0 %v2754
      %v2927 = vpop.f32.mrf.mxu0
      %v2928 = vadd.f32 0.0, %v2927
      %v2929 = vpop.f32.mrf.mxu0
      %v2930 = vadd.f32 0.0, %v2929
      %2931 = vmatmul.bf16.gmra.mxu0 %v2757
      %v2932 = vpop.f32.mrf.mxu0
      %v2933 = vadd.f32 0.0, %v2932
      %v2934 = vpop.f32.mrf.mxu0
      %v2935 = vadd.f32 0.0, %v2934
      %2936 = vmatmul.bf16.gmra.mxu0 %v2760
      %v2937 = vpop.f32.mrf.mxu0
      %v2938 = vadd.f32 0.0, %v2937
      %v2939 = vpop.f32.mrf.mxu0
      %v2940 = vadd.f32 0.0, %v2939
      %2941 = vmatmul.bf16.gmra.mxu0 %v2763
      %v2942 = vpop.f32.mrf.mxu0
      %v2943 = vadd.f32 0.0, %v2942
      %v2944 = vpop.f32.mrf.mxu0
      %v2945 = vadd.f32 0.0, %v2944
      %2946 = vdwg.mxu0
      %v2947 = vadd.f32 %v2535, %v2779
      %v2948 = vadd.f32 %v2536, %v2868
      %v2949 = vadd.f32 %v2537, %v2781
      %v2950 = vadd.f32 %v2538, %v2870
      %v2951 = vadd.f32 %v2539, %v2784
      %v2952 = vadd.f32 %v2540, %v2873
      %v2953 = vadd.f32 %v2541, %v2786
      %v2954 = vadd.f32 %v2542, %v2875
      %v2955 = vadd.f32 %v2543, %v2789
      %v2956 = vadd.f32 %v2544, %v2878
      %v2957 = vadd.f32 %v2545, %v2791
      %v2958 = vadd.f32 %v2546, %v2880
      %v2959 = vadd.f32 %v2547, %v2794
      %v2960 = vadd.f32 %v2548, %v2883
      %v2961 = vadd.f32 %v2549, %v2796
      %v2962 = vadd.f32 %v2550, %v2885
      %v2963 = vadd.f32 %v2551, %v2799
      %v2964 = vadd.f32 %v2552, %v2888
      %v2965 = vadd.f32 %v2553, %v2801
      %v2966 = vadd.f32 %v2554, %v2890
      %v2967 = vadd.f32 %v2555, %v2804
      %v2968 = vadd.f32 %v2556, %v2893
      %v2969 = vadd.f32 %v2557, %v2806
      %v2970 = vadd.f32 %v2558, %v2895
      %v2971 = vadd.f32 %v2559, %v2809
      %v2972 = vadd.f32 %v2560, %v2898
      %v2973 = vadd.f32 %v2561, %v2811
      %v2974 = vadd.f32 %v2562, %v2900
      %v2975 = vadd.f32 %v2563, %v2814
      %v2976 = vadd.f32 %v2564, %v2903
      %v2977 = vadd.f32 %v2565, %v2816
      %v2978 = vadd.f32 %v2566, %v2905
      %v2979 = vadd.f32 %v2567, %v2819
      %v2980 = vadd.f32 %v2568, %v2908
      %v2981 = vadd.f32 %v2569, %v2821
      %v2982 = vadd.f32 %v2570, %v2910
      %v2983 = vadd.f32 %v2571, %v2824
      %v2984 = vadd.f32 %v2572, %v2913
      %v2985 = vadd.f32 %v2573, %v2826
      %v2986 = vadd.f32 %v2574, %v2915
      %v2987 = vadd.f32 %v2575, %v2829
      %v2988 = vadd.f32 %v2576, %v2918
      %v2989 = vadd.f32 %v2577, %v2831
      %v2990 = vadd.f32 %v2578, %v2920
      %v2991 = vadd.f32 %v2579, %v2834
      %v2992 = vadd.f32 %v2580, %v2923
      %v2993 = vadd.f32 %v2581, %v2836
      %v2994 = vadd.f32 %v2582, %v2925
      %v2995 = vadd.f32 %v2583, %v2839
      %v2996 = vadd.f32 %v2584, %v2928
      %v2997 = vadd.f32 %v2585, %v2841
      %v2998 = vadd.f32 %v2586, %v2930
      %v2999 = vadd.f32 %v2587, %v2844
      %v3000 = vadd.f32 %v2588, %v2933
      %v3001 = vadd.f32 %v2589, %v2846
      %v3002 = vadd.f32 %v2590, %v2935
      %v3003 = vadd.f32 %v2591, %v2849
      %v3004 = vadd.f32 %v2592, %v2938
      %v3005 = vadd.f32 %v2593, %v2851
      %v3006 = vadd.f32 %v2594, %v2940
      %v3007 = vadd.f32 %v2595, %v2854
      %v3008 = vadd.f32 %v2596, %v2943
      %v3009 = vadd.f32 %v2597, %v2856
      %v3010 = vadd.f32 %v2598, %v2945
      %v3011 = vld [vmem:[%s889] sm:$0xf]
      %v3012 = vld [vmem:[%s889 + $0x4] sm:$0xf]
      %v3013 = vld [vmem:[%s889 + $0x8] sm:$0x1]
      %v3014 = vld [vmem:[%s889 + $0xc] sm:$0xf]
      %v3015 = vld [vmem:[%s889 + $0x10] sm:$0xf]
      %v3016 = vld [vmem:[%s889 + $0x14] sm:$0x1]
      %v3017 = vld [vmem:[%s889 + $0x18] sm:$0xf]
      %v3018 = vld [vmem:[%s889 + $0x1c] sm:$0xf]
      %v3019 = vld [vmem:[%s889 + $0x20] sm:$0x1]
      %v3020 = vld [vmem:[%s889 + $0x24] sm:$0xf]
      %v3021 = vld [vmem:[%s889 + $0x28] sm:$0xf]
      %v3022 = vld [vmem:[%s889 + $0x2c] sm:$0x1]
      %v3023 = vld [vmem:[%s889 + $0x30] sm:$0xf]
      %v3024 = vld [vmem:[%s889 + $0x34] sm:$0xf]
      %v3025 = vld [vmem:[%s889 + $0x38] sm:$0x1]
      %v3026 = vld [vmem:[%s889 + $0x3c] sm:$0xf]
      %v3027 = vld [vmem:[%s889 + $0x40] sm:$0xf]
      %v3028 = vld [vmem:[%s889 + $0x44] sm:$0x1]
      %v3029 = vld [vmem:[%s889 + $0x48] sm:$0xf]
      %v3030 = vld [vmem:[%s889 + $0x4c] sm:$0xf]
      %v3031 = vld [vmem:[%s889 + $0x50] sm:$0x1]
      %v3032 = vld [vmem:[%s889 + $0x54] sm:$0xf]
      %v3033 = vld [vmem:[%s889 + $0x58] sm:$0xf]
      %v3034 = vld [vmem:[%s889 + $0x5c] sm:$0x1]
      %v3035 = vld [vmem:[%s889 + $0x60] sm:$0xf]
      %v3036 = vld [vmem:[%s889 + $0x64] sm:$0xf]
      %v3037 = vld [vmem:[%s889 + $0x68] sm:$0x1]
      %v3038 = vld [vmem:[%s889 + $0x6c] sm:$0xf]
      %v3039 = vld [vmem:[%s889 + $0x70] sm:$0xf]
      %v3040 = vld [vmem:[%s889 + $0x74] sm:$0x1]
      %v3041 = vld [vmem:[%s889 + $0x78] sm:$0xf]
      %v3042 = vld [vmem:[%s889 + $0x7c] sm:$0xf]
      %v3043 = vld [vmem:[%s889 + $0x80] sm:$0x1]
      %v3044 = vld [vmem:[%s889 + $0x84] sm:$0xf]
      %v3045 = vld [vmem:[%s889 + $0x88] sm:$0xf]
      %v3046 = vld [vmem:[%s889 + $0x8c] sm:$0x1]
      %v3047 = vld [vmem:[%s889 + $0x90] sm:$0xf]
      %v3048 = vld [vmem:[%s889 + $0x94] sm:$0xf]
      %v3049 = vld [vmem:[%s889 + $0x98] sm:$0x1]
      %v3050 = vld [vmem:[%s889 + $0x9c] sm:$0xf]
      %v3051 = vld [vmem:[%s889 + $0xa0] sm:$0xf]
      %v3052 = vld [vmem:[%s889 + $0xa4] sm:$0x1]
      %v3053 = vld [vmem:[%s889 + $0xa8] sm:$0xf]
      %v3054 = vld [vmem:[%s889 + $0xac] sm:$0xf]
      %v3055 = vld [vmem:[%s889 + $0xb0] sm:$0x1]
      %v3056 = vld [vmem:[%s889 + $0xb4] sm:$0xf]
      %v3057 = vld [vmem:[%s889 + $0xb8] sm:$0xf]
      %v3058 = vld [vmem:[%s889 + $0xbc] sm:$0x1]
      %v3060 = vshrl.u32 %v3011, 16
      %v3062 = vrot.slane %v3060, 4
      %v3063 = vshll.u32 %v3011, 16
      %v3065 = vrot.slane %v3063, 5
      %v3066 = vor.u32 %v3062, %v3065
      %v3067 = vrot.slane %v3066, 4
      %v3069 = vshll.u32 %v3012, 16
      %v3071 = vrot.slane %v3069, 5
      %v3072 = vsel %vm1055, %v3067, %v3071
      %v3073 = vshrl.u32 %v3012, 16
      %v3075 = vrot.slane %v3073, 4
      %v3076 = vor.u32 %v3075, %v3071
      %v3077 = vrot.slane %v3076, 4
      %v3079 = vshll.u32 %v3013, 16
      %v3081 = vrot.slane %v3079, 5
      %v3082 = vsel %vm1055, %v3077, %v3081
      %v3084 = vshrl.u32 %v3014, 16
      %v3086 = vrot.slane %v3084, 4
      %v3087 = vshll.u32 %v3014, 16
      %v3089 = vrot.slane %v3087, 5
      %v3090 = vor.u32 %v3086, %v3089
      %v3091 = vrot.slane %v3090, 4
      %v3093 = vshll.u32 %v3015, 16
      %v3095 = vrot.slane %v3093, 5
      %v3096 = vsel %vm1055, %v3091, %v3095
      %v3097 = vshrl.u32 %v3015, 16
      %v3099 = vrot.slane %v3097, 4
      %v3100 = vor.u32 %v3099, %v3095
      %v3101 = vrot.slane %v3100, 4
      %v3103 = vshll.u32 %v3016, 16
      %v3105 = vrot.slane %v3103, 5
      %v3106 = vsel %vm1055, %v3101, %v3105
      %v3108 = vshrl.u32 %v3017, 16
      %v3110 = vrot.slane %v3108, 4
      %v3111 = vshll.u32 %v3017, 16
      %v3113 = vrot.slane %v3111, 5
      %v3114 = vor.u32 %v3110, %v3113
      %v3115 = vrot.slane %v3114, 4
      %v3117 = vshll.u32 %v3018, 16
      %v3119 = vrot.slane %v3117, 5
      %v3120 = vsel %vm1055, %v3115, %v3119
      %v3121 = vshrl.u32 %v3018, 16
      %v3123 = vrot.slane %v3121, 4
      %v3124 = vor.u32 %v3123, %v3119
      %v3125 = vrot.slane %v3124, 4
      %v3127 = vshll.u32 %v3019, 16
      %v3129 = vrot.slane %v3127, 5
      %v3130 = vsel %vm1055, %v3125, %v3129
      %v3132 = vshrl.u32 %v3020, 16
      %v3134 = vrot.slane %v3132, 4
      %v3135 = vshll.u32 %v3020, 16
      %v3137 = vrot.slane %v3135, 5
      %v3138 = vor.u32 %v3134, %v3137
      %v3139 = vrot.slane %v3138, 4
      %v3141 = vshll.u32 %v3021, 16
      %v3143 = vrot.slane %v3141, 5
      %v3144 = vsel %vm1055, %v3139, %v3143
      %v3145 = vshrl.u32 %v3021, 16
      %v3147 = vrot.slane %v3145, 4
      %v3148 = vor.u32 %v3147, %v3143
      %v3149 = vrot.slane %v3148, 4
      %v3151 = vshll.u32 %v3022, 16
      %v3153 = vrot.slane %v3151, 5
      %v3154 = vsel %vm1055, %v3149, %v3153
      %v3156 = vshrl.u32 %v3023, 16
      %v3158 = vrot.slane %v3156, 4
      %v3159 = vshll.u32 %v3023, 16
      %v3161 = vrot.slane %v3159, 5
      %v3162 = vor.u32 %v3158, %v3161
      %v3163 = vrot.slane %v3162, 4
      %v3165 = vshll.u32 %v3024, 16
      %v3167 = vrot.slane %v3165, 5
      %v3168 = vsel %vm1055, %v3163, %v3167
      %v3169 = vshrl.u32 %v3024, 16
      %v3171 = vrot.slane %v3169, 4
      %v3172 = vor.u32 %v3171, %v3167
      %v3173 = vrot.slane %v3172, 4
      %v3175 = vshll.u32 %v3025, 16
      %v3177 = vrot.slane %v3175, 5
      %v3178 = vsel %vm1055, %v3173, %v3177
      %v3180 = vshrl.u32 %v3026, 16
      %v3182 = vrot.slane %v3180, 4
      %v3183 = vshll.u32 %v3026, 16
      %v3185 = vrot.slane %v3183, 5
      %v3186 = vor.u32 %v3182, %v3185
      %v3187 = vrot.slane %v3186, 4
      %v3189 = vshll.u32 %v3027, 16
      %v3191 = vrot.slane %v3189, 5
      %v3192 = vsel %vm1055, %v3187, %v3191
      %v3193 = vshrl.u32 %v3027, 16
      %v3195 = vrot.slane %v3193, 4
      %v3196 = vor.u32 %v3195, %v3191
      %v3197 = vrot.slane %v3196, 4
      %v3199 = vshll.u32 %v3028, 16
      %v3201 = vrot.slane %v3199, 5
      %v3202 = vsel %vm1055, %v3197, %v3201
      %v3204 = vshrl.u32 %v3029, 16
      %v3206 = vrot.slane %v3204, 4
      %v3207 = vshll.u32 %v3029, 16
      %v3209 = vrot.slane %v3207, 5
      %v3210 = vor.u32 %v3206, %v3209
      %v3211 = vrot.slane %v3210, 4
      %v3213 = vshll.u32 %v3030, 16
      %v3215 = vrot.slane %v3213, 5
      %v3216 = vsel %vm1055, %v3211, %v3215
      %v3217 = vshrl.u32 %v3030, 16
      %v3219 = vrot.slane %v3217, 4
      %v3220 = vor.u32 %v3219, %v3215
      %v3221 = vrot.slane %v3220, 4
      %v3223 = vshll.u32 %v3031, 16
      %v3225 = vrot.slane %v3223, 5
      %v3226 = vsel %vm1055, %v3221, %v3225
      %v3228 = vshrl.u32 %v3032, 16
      %v3230 = vrot.slane %v3228, 4
      %v3231 = vshll.u32 %v3032, 16
      %v3233 = vrot.slane %v3231, 5
      %v3234 = vor.u32 %v3230, %v3233
      %v3235 = vrot.slane %v3234, 4
      %v3237 = vshll.u32 %v3033, 16
      %v3239 = vrot.slane %v3237, 5
      %v3240 = vsel %vm1055, %v3235, %v3239
      %v3241 = vshrl.u32 %v3033, 16
      %v3243 = vrot.slane %v3241, 4
      %v3244 = vor.u32 %v3243, %v3239
      %v3245 = vrot.slane %v3244, 4
      %v3247 = vshll.u32 %v3034, 16
      %v3249 = vrot.slane %v3247, 5
      %v3250 = vsel %vm1055, %v3245, %v3249
      %v3252 = vshrl.u32 %v3035, 16
      %v3254 = vrot.slane %v3252, 4
      %v3255 = vshll.u32 %v3035, 16
      %v3257 = vrot.slane %v3255, 5
      %v3258 = vor.u32 %v3254, %v3257
      %v3259 = vrot.slane %v3258, 4
      %v3261 = vshll.u32 %v3036, 16
      %v3263 = vrot.slane %v3261, 5
      %v3264 = vsel %vm1055, %v3259, %v3263
      %v3265 = vshrl.u32 %v3036, 16
      %v3267 = vrot.slane %v3265, 4
      %v3268 = vor.u32 %v3267, %v3263
      %v3269 = vrot.slane %v3268, 4
      %v3271 = vshll.u32 %v3037, 16
      %v3273 = vrot.slane %v3271, 5
      %v3274 = vsel %vm1055, %v3269, %v3273
      %v3276 = vshrl.u32 %v3038, 16
      %v3278 = vrot.slane %v3276, 4
      %v3279 = vshll.u32 %v3038, 16
      %v3281 = vrot.slane %v3279, 5
      %v3282 = vor.u32 %v3278, %v3281
      %v3283 = vrot.slane %v3282, 4
      %v3285 = vshll.u32 %v3039, 16
      %v3287 = vrot.slane %v3285, 5
      %v3288 = vsel %vm1055, %v3283, %v3287
      %v3289 = vshrl.u32 %v3039, 16
      %v3291 = vrot.slane %v3289, 4
      %v3292 = vor.u32 %v3291, %v3287
      %v3293 = vrot.slane %v3292, 4
      %v3295 = vshll.u32 %v3040, 16
      %v3297 = vrot.slane %v3295, 5
      %v3298 = vsel %vm1055, %v3293, %v3297
      %v3300 = vshrl.u32 %v3041, 16
      %v3302 = vrot.slane %v3300, 4
      %v3303 = vshll.u32 %v3041, 16
      %v3305 = vrot.slane %v3303, 5
      %v3306 = vor.u32 %v3302, %v3305
      %v3307 = vrot.slane %v3306, 4
      %v3309 = vshll.u32 %v3042, 16
      %v3311 = vrot.slane %v3309, 5
      %v3312 = vsel %vm1055, %v3307, %v3311
      %v3313 = vshrl.u32 %v3042, 16
      %v3315 = vrot.slane %v3313, 4
      %v3316 = vor.u32 %v3315, %v3311
      %v3317 = vrot.slane %v3316, 4
      %v3319 = vshll.u32 %v3043, 16
      %v3321 = vrot.slane %v3319, 5
      %v3322 = vsel %vm1055, %v3317, %v3321
      %v3324 = vshrl.u32 %v3044, 16
      %v3326 = vrot.slane %v3324, 4
      %v3327 = vshll.u32 %v3044, 16
      %v3329 = vrot.slane %v3327, 5
      %v3330 = vor.u32 %v3326, %v3329
      %v3331 = vrot.slane %v3330, 4
      %v3333 = vshll.u32 %v3045, 16
      %v3335 = vrot.slane %v3333, 5
      %v3336 = vsel %vm1055, %v3331, %v3335
      %v3337 = vshrl.u32 %v3045, 16
      %v3339 = vrot.slane %v3337, 4
      %v3340 = vor.u32 %v3339, %v3335
      %v3341 = vrot.slane %v3340, 4
      %v3343 = vshll.u32 %v3046, 16
      %v3345 = vrot.slane %v3343, 5
      %v3346 = vsel %vm1055, %v3341, %v3345
      %v3348 = vshrl.u32 %v3047, 16
      %v3350 = vrot.slane %v3348, 4
      %v3351 = vshll.u32 %v3047, 16
      %v3353 = vrot.slane %v3351, 5
      %v3354 = vor.u32 %v3350, %v3353
      %v3355 = vrot.slane %v3354, 4
      %v3357 = vshll.u32 %v3048, 16
      %v3359 = vrot.slane %v3357, 5
      %v3360 = vsel %vm1055, %v3355, %v3359
      %v3361 = vshrl.u32 %v3048, 16
      %v3363 = vrot.slane %v3361, 4
      %v3364 = vor.u32 %v3363, %v3359
      %v3365 = vrot.slane %v3364, 4
      %v3367 = vshll.u32 %v3049, 16
      %v3369 = vrot.slane %v3367, 5
      %v3370 = vsel %vm1055, %v3365, %v3369
      %v3372 = vshrl.u32 %v3050, 16
      %v3374 = vrot.slane %v3372, 4
      %v3375 = vshll.u32 %v3050, 16
      %v3377 = vrot.slane %v3375, 5
      %v3378 = vor.u32 %v3374, %v3377
      %v3379 = vrot.slane %v3378, 4
      %v3381 = vshll.u32 %v3051, 16
      %v3383 = vrot.slane %v3381, 5
      %v3384 = vsel %vm1055, %v3379, %v3383
      %v3385 = vshrl.u32 %v3051, 16
      %v3387 = vrot.slane %v3385, 4
      %v3388 = vor.u32 %v3387, %v3383
      %v3389 = vrot.slane %v3388, 4
      %v3391 = vshll.u32 %v3052, 16
      %v3393 = vrot.slane %v3391, 5
      %v3394 = vsel %vm1055, %v3389, %v3393
      %v3396 = vshrl.u32 %v3053, 16
      %v3398 = vrot.slane %v3396, 4
      %v3399 = vshll.u32 %v3053, 16
      %v3401 = vrot.slane %v3399, 5
      %v3402 = vor.u32 %v3398, %v3401
      %v3403 = vrot.slane %v3402, 4
      %v3405 = vshll.u32 %v3054, 16
      %v3407 = vrot.slane %v3405, 5
      %v3408 = vsel %vm1055, %v3403, %v3407
      %v3409 = vshrl.u32 %v3054, 16
      %v3411 = vrot.slane %v3409, 4
      %v3412 = vor.u32 %v3411, %v3407
      %v3413 = vrot.slane %v3412, 4
      %v3415 = vshll.u32 %v3055, 16
      %v3417 = vrot.slane %v3415, 5
      %v3418 = vsel %vm1055, %v3413, %v3417
      %v3420 = vshrl.u32 %v3056, 16
      %v3422 = vrot.slane %v3420, 4
      %v3423 = vshll.u32 %v3056, 16
      %v3425 = vrot.slane %v3423, 5
      %v3426 = vor.u32 %v3422, %v3425
      %v3427 = vrot.slane %v3426, 4
      %v3429 = vshll.u32 %v3057, 16
      %v3431 = vrot.slane %v3429, 5
      %v3432 = vsel %vm1055, %v3427, %v3431
      %v3433 = vshrl.u32 %v3057, 16
      %v3435 = vrot.slane %v3433, 4
      %v3436 = vor.u32 %v3435, %v3431
      %v3437 = vrot.slane %v3436, 4
      %v3439 = vshll.u32 %v3058, 16
      %v3441 = vrot.slane %v3439, 5
      %v3442 = vsel %vm1055, %v3437, %v3441
      %s3443 = scalar_lea.vmem %s2, 16
      %v3444 = vld [vmem:[%s3443] sm:$0xf]
      %v3445 = vunpack.c.l.b16 %v3072
      %v3446 = vunpack.c.l.b16 %v3082
      %v3447 = vunpack.c.l.b16 %v3096
      %v3448 = vunpack.c.l.b16 %v3106
      %v3449 = vunpack.c.l.b16 %v3120
      %v3450 = vunpack.c.l.b16 %v3130
      %v3451 = vunpack.c.l.b16 %v3144
      %v3452 = vunpack.c.l.b16 %v3154
      %v3453 = vunpack.c.l.b16 %v3168
      %v3454 = vunpack.c.l.b16 %v3178
      %v3455 = vunpack.c.l.b16 %v3192
      %v3456 = vunpack.c.l.b16 %v3202
      %v3457 = vunpack.c.l.b16 %v3216
      %v3458 = vunpack.c.l.b16 %v3226
      %v3459 = vunpack.c.l.b16 %v3240
      %v3460 = vunpack.c.l.b16 %v3250
      %v3461 = vunpack.c.l.b16 %v3264
      %v3462 = vunpack.c.l.b16 %v3274
      %v3463 = vunpack.c.l.b16 %v3288
      %v3464 = vunpack.c.l.b16 %v3298
      %v3465 = vunpack.c.l.b16 %v3312
      %v3466 = vunpack.c.l.b16 %v3322
      %v3467 = vunpack.c.l.b16 %v3336
      %v3468 = vunpack.c.l.b16 %v3346
      %v3469 = vunpack.c.l.b16 %v3360
      %v3470 = vunpack.c.l.b16 %v3370
      %v3471 = vunpack.c.l.b16 %v3384
      %v3472 = vunpack.c.l.b16 %v3394
      %v3473 = vunpack.c.l.b16 %v3408
      %v3474 = vunpack.c.l.b16 %v3418
      %v3475 = vunpack.c.l.b16 %v3432
      %v3476 = vunpack.c.l.b16 %v3442
      %v3477 = vpack.c.b16 %v3446, %v3445
      %v3478 = vpack.c.b16 %v3448, %v3447
      %v3479 = vpack.c.b16 %v3450, %v3449
      %v3480 = vpack.c.b16 %v3452, %v3451
      %v3481 = vpack.c.b16 %v3454, %v3453
      %v3482 = vpack.c.b16 %v3456, %v3455
      %v3483 = vpack.c.b16 %v3458, %v3457
      %v3484 = vpack.c.b16 %v3460, %v3459
      %v3485 = vpack.c.b16 %v3462, %v3461
      %v3486 = vpack.c.b16 %v3464, %v3463
      %v3487 = vpack.c.b16 %v3466, %v3465
      %v3488 = vpack.c.b16 %v3468, %v3467
      %v3489 = vpack.c.b16 %v3470, %v3469
      %v3490 = vpack.c.b16 %v3472, %v3471
      %v3491 = vpack.c.b16 %v3474, %v3473
      %v3492 = vpack.c.b16 %v3476, %v3475
      %3494 = vst [vmem:[#allocation1] ss:$4 sm:$0xff] %v3444
      %v3495 = vld.sshfl [vmem:[#allocation1] sm:$0xff pattern:$0x73625140]
      %v3496 = vld.sshfl [vmem:[#allocation1 + $0x8] sm:$0xff pattern:$0x73625140]
      %v3498 = vsel %vm1494, %v3477, 0
      %v3501 = vsel %vm1494, %v3478, 0
      %v3504 = vsel %vm1494, %v3479, 0
      %v3507 = vsel %vm1494, %v3480, 0
      %v3510 = vsel %vm1494, %v3481, 0
      %v3513 = vsel %vm1494, %v3482, 0
      %v3516 = vsel %vm1494, %v3483, 0
      %v3519 = vsel %vm1494, %v3484, 0
      %v3522 = vsel %vm1494, %v3485, 0
      %v3525 = vsel %vm1494, %v3486, 0
      %v3528 = vsel %vm1494, %v3487, 0
      %v3531 = vsel %vm1494, %v3488, 0
      %v3534 = vsel %vm1494, %v3489, 0
      %v3537 = vsel %vm1494, %v3490, 0
      %v3540 = vsel %vm1494, %v3491, 0
      %v3543 = vsel %vm1494, %v3492, 0
      %v3545 = vsel %vm1543, %v3495, 0
      %v3547 = vsel %vm1543, %v3496, 0
      %3549 = vmatpush.bf16.msra.mxu0 0
      %3550 = vmatpush.bf16.msra.mxu0 0
      %3551 = vmatpush.bf16.msra.mxu0 0
      %3552 = vmatpush.bf16.msra.mxu0 0
      %3553 = vmatpush.bf16.msra.mxu0 0
      %3554 = vmatpush.bf16.msra.mxu0 0
      %3555 = vmatpush.bf16.msra.mxu0 0
      %3556 = vmatpush.bf16.msra.mxu0 %v3545
      %3557 = vmatmul.bf16.gmra.mxu0 %v3498
      %v3558 = vpop.f32.mrf.mxu0
      %v3559 = vadd.f32 0.0, %v3558
      %v3560 = vpop.f32.mrf.mxu0
      %v3561 = vadd.f32 0.0, %v3560
      %3562 = vmatmul.bf16.gmra.mxu0 %v3501
      %v3563 = vpop.f32.mrf.mxu0
      %v3564 = vadd.f32 0.0, %v3563
      %v3565 = vpop.f32.mrf.mxu0
      %v3566 = vadd.f32 0.0, %v3565
      %3567 = vmatmul.bf16.gmra.mxu0 %v3504
      %v3568 = vpop.f32.mrf.mxu0
      %v3569 = vadd.f32 0.0, %v3568
      %v3570 = vpop.f32.mrf.mxu0
      %v3571 = vadd.f32 0.0, %v3570
      %3572 = vmatmul.bf16.gmra.mxu0 %v3507
      %v3573 = vpop.f32.mrf.mxu0
      %v3574 = vadd.f32 0.0, %v3573
      %v3575 = vpop.f32.mrf.mxu0
      %v3576 = vadd.f32 0.0, %v3575
      %3577 = vmatmul.bf16.gmra.mxu0 %v3510
      %v3578 = vpop.f32.mrf.mxu0
      %v3579 = vadd.f32 0.0, %v3578
      %v3580 = vpop.f32.mrf.mxu0
      %v3581 = vadd.f32 0.0, %v3580
      %3582 = vmatmul.bf16.gmra.mxu0 %v3513
      %v3583 = vpop.f32.mrf.mxu0
      %v3584 = vadd.f32 0.0, %v3583
      %v3585 = vpop.f32.mrf.mxu0
      %v3586 = vadd.f32 0.0, %v3585
      %3587 = vmatmul.bf16.gmra.mxu0 %v3516
      %v3588 = vpop.f32.mrf.mxu0
      %v3589 = vadd.f32 0.0, %v3588
      %v3590 = vpop.f32.mrf.mxu0
      %v3591 = vadd.f32 0.0, %v3590
      %3592 = vmatmul.bf16.gmra.mxu0 %v3519
      %v3593 = vpop.f32.mrf.mxu0
      %v3594 = vadd.f32 0.0, %v3593
      %v3595 = vpop.f32.mrf.mxu0
      %v3596 = vadd.f32 0.0, %v3595
      %3597 = vmatmul.bf16.gmra.mxu0 %v3522
      %v3598 = vpop.f32.mrf.mxu0
      %v3599 = vadd.f32 0.0, %v3598
      %v3600 = vpop.f32.mrf.mxu0
      %v3601 = vadd.f32 0.0, %v3600
      %3602 = vmatmul.bf16.gmra.mxu0 %v3525
      %v3603 = vpop.f32.mrf.mxu0
      %v3604 = vadd.f32 0.0, %v3603
      %v3605 = vpop.f32.mrf.mxu0
      %v3606 = vadd.f32 0.0, %v3605
      %3607 = vmatmul.bf16.gmra.mxu0 %v3528
      %v3608 = vpop.f32.mrf.mxu0
      %v3609 = vadd.f32 0.0, %v3608
      %v3610 = vpop.f32.mrf.mxu0
      %v3611 = vadd.f32 0.0, %v3610
      %3612 = vmatmul.bf16.gmra.mxu0 %v3531
      %v3613 = vpop.f32.mrf.mxu0
      %v3614 = vadd.f32 0.0, %v3613
      %v3615 = vpop.f32.mrf.mxu0
      %v3616 = vadd.f32 0.0, %v3615
      %3617 = vmatmul.bf16.gmra.mxu0 %v3534
      %v3618 = vpop.f32.mrf.mxu0
      %v3619 = vadd.f32 0.0, %v3618
      %v3620 = vpop.f32.mrf.mxu0
      %v3621 = vadd.f32 0.0, %v3620
      %3622 = vmatmul.bf16.gmra.mxu0 %v3537
      %v3623 = vpop.f32.mrf.mxu0
      %v3624 = vadd.f32 0.0, %v3623
      %v3625 = vpop.f32.mrf.mxu0
      %v3626 = vadd.f32 0.0, %v3625
      %3627 = vmatmul.bf16.gmra.mxu0 %v3540
      %v3628 = vpop.f32.mrf.mxu0
      %v3629 = vadd.f32 0.0, %v3628
      %v3630 = vpop.f32.mrf.mxu0
      %v3631 = vadd.f32 0.0, %v3630
      %3632 = vmatmul.bf16.gmra.mxu0 %v3543
      %v3633 = vpop.f32.mrf.mxu0
      %v3634 = vadd.f32 0.0, %v3633
      %v3635 = vpop.f32.mrf.mxu0
      %v3636 = vadd.f32 0.0, %v3635
      %3637 = vdwg.mxu0
      %3638 = vmatpush.bf16.msra.mxu0 0
      %3639 = vmatpush.bf16.msra.mxu0 0
      %3640 = vmatpush.bf16.msra.mxu0 0
      %3641 = vmatpush.bf16.msra.mxu0 0
      %3642 = vmatpush.bf16.msra.mxu0 0
      %3643 = vmatpush.bf16.msra.mxu0 0
      %3644 = vmatpush.bf16.msra.mxu0 0
      %3645 = vmatpush.bf16.msra.mxu0 %v3547
      %3646 = vmatmul.bf16.gmra.mxu0 %v3498
      %v3647 = vpop.f32.mrf.mxu0
      %v3648 = vadd.f32 0.0, %v3647
      %v3649 = vpop.f32.mrf.mxu0
      %v3650 = vadd.f32 0.0, %v3649
      %3651 = vmatmul.bf16.gmra.mxu0 %v3501
      %v3652 = vpop.f32.mrf.mxu0
      %v3653 = vadd.f32 0.0, %v3652
      %v3654 = vpop.f32.mrf.mxu0
      %v3655 = vadd.f32 0.0, %v3654
      %3656 = vmatmul.bf16.gmra.mxu0 %v3504
      %v3657 = vpop.f32.mrf.mxu0
      %v3658 = vadd.f32 0.0, %v3657
      %v3659 = vpop.f32.mrf.mxu0
      %v3660 = vadd.f32 0.0, %v3659
      %3661 = vmatmul.bf16.gmra.mxu0 %v3507
      %v3662 = vpop.f32.mrf.mxu0
      %v3663 = vadd.f32 0.0, %v3662
      %v3664 = vpop.f32.mrf.mxu0
      %v3665 = vadd.f32 0.0, %v3664
      %3666 = vmatmul.bf16.gmra.mxu0 %v3510
      %v3667 = vpop.f32.mrf.mxu0
      %v3668 = vadd.f32 0.0, %v3667
      %v3669 = vpop.f32.mrf.mxu0
      %v3670 = vadd.f32 0.0, %v3669
      %3671 = vmatmul.bf16.gmra.mxu0 %v3513
      %v3672 = vpop.f32.mrf.mxu0
      %v3673 = vadd.f32 0.0, %v3672
      %v3674 = vpop.f32.mrf.mxu0
      %v3675 = vadd.f32 0.0, %v3674
      %3676 = vmatmul.bf16.gmra.mxu0 %v3516
      %v3677 = vpop.f32.mrf.mxu0
      %v3678 = vadd.f32 0.0, %v3677
      %v3679 = vpop.f32.mrf.mxu0
      %v3680 = vadd.f32 0.0, %v3679
      %3681 = vmatmul.bf16.gmra.mxu0 %v3519
      %v3682 = vpop.f32.mrf.mxu0
      %v3683 = vadd.f32 0.0, %v3682
      %v3684 = vpop.f32.mrf.mxu0
      %v3685 = vadd.f32 0.0, %v3684
      %3686 = vmatmul.bf16.gmra.mxu0 %v3522
      %v3687 = vpop.f32.mrf.mxu0
      %v3688 = vadd.f32 0.0, %v3687
      %v3689 = vpop.f32.mrf.mxu0
      %v3690 = vadd.f32 0.0, %v3689
      %3691 = vmatmul.bf16.gmra.mxu0 %v3525
      %v3692 = vpop.f32.mrf.mxu0
      %v3693 = vadd.f32 0.0, %v3692
      %v3694 = vpop.f32.mrf.mxu0
      %v3695 = vadd.f32 0.0, %v3694
      %3696 = vmatmul.bf16.gmra.mxu0 %v3528
      %v3697 = vpop.f32.mrf.mxu0
      %v3698 = vadd.f32 0.0, %v3697
      %v3699 = vpop.f32.mrf.mxu0
      %v3700 = vadd.f32 0.0, %v3699
      %3701 = vmatmul.bf16.gmra.mxu0 %v3531
      %v3702 = vpop.f32.mrf.mxu0
      %v3703 = vadd.f32 0.0, %v3702
      %v3704 = vpop.f32.mrf.mxu0
      %v3705 = vadd.f32 0.0, %v3704
      %3706 = vmatmul.bf16.gmra.mxu0 %v3534
      %v3707 = vpop.f32.mrf.mxu0
      %v3708 = vadd.f32 0.0, %v3707
      %v3709 = vpop.f32.mrf.mxu0
      %v3710 = vadd.f32 0.0, %v3709
      %3711 = vmatmul.bf16.gmra.mxu0 %v3537
      %v3712 = vpop.f32.mrf.mxu0
      %v3713 = vadd.f32 0.0, %v3712
      %v3714 = vpop.f32.mrf.mxu0
      %v3715 = vadd.f32 0.0, %v3714
      %3716 = vmatmul.bf16.gmra.mxu0 %v3540
      %v3717 = vpop.f32.mrf.mxu0
      %v3718 = vadd.f32 0.0, %v3717
      %v3719 = vpop.f32.mrf.mxu0
      %v3720 = vadd.f32 0.0, %v3719
      %3721 = vmatmul.bf16.gmra.mxu0 %v3543
      %v3722 = vpop.f32.mrf.mxu0
      %v3723 = vadd.f32 0.0, %v3722
      %v3724 = vpop.f32.mrf.mxu0
      %v3725 = vadd.f32 0.0, %v3724
      %3726 = vdwg.mxu0
      %v3727 = vadd.f32 %v2947, %v3559
      %v3728 = vadd.f32 %v2948, %v3648
      %v3729 = vadd.f32 %v2949, %v3561
      %v3730 = vadd.f32 %v2950, %v3650
      %v3731 = vadd.f32 %v2951, %v3564
      %v3732 = vadd.f32 %v2952, %v3653
      %v3733 = vadd.f32 %v2953, %v3566
      %v3734 = vadd.f32 %v2954, %v3655
      %v3735 = vadd.f32 %v2955, %v3569
      %v3736 = vadd.f32 %v2956, %v3658
      %v3737 = vadd.f32 %v2957, %v3571
      %v3738 = vadd.f32 %v2958, %v3660
      %v3739 = vadd.f32 %v2959, %v3574
      %v3740 = vadd.f32 %v2960, %v3663
      %v3741 = vadd.f32 %v2961, %v3576
      %v3742 = vadd.f32 %v2962, %v3665
      %v3743 = vadd.f32 %v2963, %v3579
      %v3744 = vadd.f32 %v2964, %v3668
      %v3745 = vadd.f32 %v2965, %v3581
      %v3746 = vadd.f32 %v2966, %v3670
      %v3747 = vadd.f32 %v2967, %v3584
      %v3748 = vadd.f32 %v2968, %v3673
      %v3749 = vadd.f32 %v2969, %v3586
      %v3750 = vadd.f32 %v2970, %v3675
      %v3751 = vadd.f32 %v2971, %v3589
      %v3752 = vadd.f32 %v2972, %v3678
      %v3753 = vadd.f32 %v2973, %v3591
      %v3754 = vadd.f32 %v2974, %v3680
      %v3755 = vadd.f32 %v2975, %v3594
      %v3756 = vadd.f32 %v2976, %v3683
      %v3757 = vadd.f32 %v2977, %v3596
      %v3758 = vadd.f32 %v2978, %v3685
      %v3759 = vadd.f32 %v2979, %v3599
      %v3760 = vadd.f32 %v2980, %v3688
      %v3761 = vadd.f32 %v2981, %v3601
      %v3762 = vadd.f32 %v2982, %v3690
      %v3763 = vadd.f32 %v2983, %v3604
      %v3764 = vadd.f32 %v2984, %v3693
      %v3765 = vadd.f32 %v2985, %v3606
      %v3766 = vadd.f32 %v2986, %v3695
      %v3767 = vadd.f32 %v2987, %v3609
      %v3768 = vadd.f32 %v2988, %v3698
      %v3769 = vadd.f32 %v2989, %v3611
      %v3770 = vadd.f32 %v2990, %v3700
      %v3771 = vadd.f32 %v2991, %v3614
      %v3772 = vadd.f32 %v2992, %v3703
      %v3773 = vadd.f32 %v2993, %v3616
      %v3774 = vadd.f32 %v2994, %v3705
      %v3775 = vadd.f32 %v2995, %v3619
      %v3776 = vadd.f32 %v2996, %v3708
      %v3777 = vadd.f32 %v2997, %v3621
      %v3778 = vadd.f32 %v2998, %v3710
      %v3779 = vadd.f32 %v2999, %v3624
      %v3780 = vadd.f32 %v3000, %v3713
      %v3781 = vadd.f32 %v3001, %v3626
      %v3782 = vadd.f32 %v3002, %v3715
      %v3783 = vadd.f32 %v3003, %v3629
      %v3784 = vadd.f32 %v3004, %v3718
      %v3785 = vadd.f32 %v3005, %v3631
      %v3786 = vadd.f32 %v3006, %v3720
      %v3787 = vadd.f32 %v3007, %v3634
      %v3788 = vadd.f32 %v3008, %v3723
      %v3789 = vadd.f32 %v3009, %v3636
      %v3790 = vadd.f32 %v3010, %v3725
      %v3791 = vld [vmem:[%s889] sm:$0xe]
      %v3792 = vld [vmem:[%s889 + $0x4] sm:$0xf]
      %v3793 = vld [vmem:[%s889 + $0x8] sm:$0x1]
      %v3794 = vld [vmem:[%s889 + $0xc] sm:$0xe]
      %v3795 = vld [vmem:[%s889 + $0x10] sm:$0xf]
      %v3796 = vld [vmem:[%s889 + $0x14] sm:$0x1]
      %v3797 = vld [vmem:[%s889 + $0x18] sm:$0xe]
      %v3798 = vld [vmem:[%s889 + $0x1c] sm:$0xf]
      %v3799 = vld [vmem:[%s889 + $0x20] sm:$0x1]
      %v3800 = vld [vmem:[%s889 + $0x24] sm:$0xe]
      %v3801 = vld [vmem:[%s889 + $0x28] sm:$0xf]
      %v3802 = vld [vmem:[%s889 + $0x2c] sm:$0x1]
      %v3803 = vld [vmem:[%s889 + $0x30] sm:$0xe]
      %v3804 = vld [vmem:[%s889 + $0x34] sm:$0xf]
      %v3805 = vld [vmem:[%s889 + $0x38] sm:$0x1]
      %v3806 = vld [vmem:[%s889 + $0x3c] sm:$0xe]
      %v3807 = vld [vmem:[%s889 + $0x40] sm:$0xf]
      %v3808 = vld [vmem:[%s889 + $0x44] sm:$0x1]
      %v3809 = vld [vmem:[%s889 + $0x48] sm:$0xe]
      %v3810 = vld [vmem:[%s889 + $0x4c] sm:$0xf]
      %v3811 = vld [vmem:[%s889 + $0x50] sm:$0x1]
      %v3812 = vld [vmem:[%s889 + $0x54] sm:$0xe]
      %v3813 = vld [vmem:[%s889 + $0x58] sm:$0xf]
      %v3814 = vld [vmem:[%s889 + $0x5c] sm:$0x1]
      %v3815 = vld [vmem:[%s889 + $0x60] sm:$0xe]
      %v3816 = vld [vmem:[%s889 + $0x64] sm:$0xf]
      %v3817 = vld [vmem:[%s889 + $0x68] sm:$0x1]
      %v3818 = vld [vmem:[%s889 + $0x6c] sm:$0xe]
      %v3819 = vld [vmem:[%s889 + $0x70] sm:$0xf]
      %v3820 = vld [vmem:[%s889 + $0x74] sm:$0x1]
      %v3821 = vld [vmem:[%s889 + $0x78] sm:$0xe]
      %v3822 = vld [vmem:[%s889 + $0x7c] sm:$0xf]
      %v3823 = vld [vmem:[%s889 + $0x80] sm:$0x1]
      %v3824 = vld [vmem:[%s889 + $0x84] sm:$0xe]
      %v3825 = vld [vmem:[%s889 + $0x88] sm:$0xf]
      %v3826 = vld [vmem:[%s889 + $0x8c] sm:$0x1]
      %v3827 = vld [vmem:[%s889 + $0x90] sm:$0xe]
      %v3828 = vld [vmem:[%s889 + $0x94] sm:$0xf]
      %v3829 = vld [vmem:[%s889 + $0x98] sm:$0x1]
      %v3830 = vld [vmem:[%s889 + $0x9c] sm:$0xe]
      %v3831 = vld [vmem:[%s889 + $0xa0] sm:$0xf]
      %v3832 = vld [vmem:[%s889 + $0xa4] sm:$0x1]
      %v3833 = vld [vmem:[%s889 + $0xa8] sm:$0xe]
      %v3834 = vld [vmem:[%s889 + $0xac] sm:$0xf]
      %v3835 = vld [vmem:[%s889 + $0xb0] sm:$0x1]
      %v3836 = vld [vmem:[%s889 + $0xb4] sm:$0xe]
      %v3837 = vld [vmem:[%s889 + $0xb8] sm:$0xf]
      %v3838 = vld [vmem:[%s889 + $0xbc] sm:$0x1]
      %v3887 = vrot.slane %v3791, 5
      %v3888 = vrot.slane %v3887, 4
      %v3889 = vrot.slane %v3792, 5
      %v3890 = vsel %vm2138, %v3888, %v3889
      %v3891 = vrot.slane %v3889, 4
      %v3892 = vrot.slane %v3793, 5
      %v3893 = vsel %vm2138, %v3891, %v3892
      %v3894 = vrot.slane %v3794, 5
      %v3895 = vrot.slane %v3894, 4
      %v3896 = vrot.slane %v3795, 5
      %v3897 = vsel %vm2138, %v3895, %v3896
      %v3898 = vrot.slane %v3896, 4
      %v3899 = vrot.slane %v3796, 5
      %v3900 = vsel %vm2138, %v3898, %v3899
      %v3901 = vrot.slane %v3797, 5
      %v3902 = vrot.slane %v3901, 4
      %v3903 = vrot.slane %v3798, 5
      %v3904 = vsel %vm2138, %v3902, %v3903
      %v3905 = vrot.slane %v3903, 4
      %v3906 = vrot.slane %v3799, 5
      %v3907 = vsel %vm2138, %v3905, %v3906
      %v3908 = vrot.slane %v3800, 5
      %v3909 = vrot.slane %v3908, 4
      %v3910 = vrot.slane %v3801, 5
      %v3911 = vsel %vm2138, %v3909, %v3910
      %v3912 = vrot.slane %v3910, 4
      %v3913 = vrot.slane %v3802, 5
      %v3914 = vsel %vm2138, %v3912, %v3913
      %v3915 = vrot.slane %v3803, 5
      %v3916 = vrot.slane %v3915, 4
      %v3917 = vrot.slane %v3804, 5
      %v3918 = vsel %vm2138, %v3916, %v3917
      %v3919 = vrot.slane %v3917, 4
      %v3920 = vrot.slane %v3805, 5
      %v3921 = vsel %vm2138, %v3919, %v3920
      %v3922 = vrot.slane %v3806, 5
      %v3923 = vrot.slane %v3922, 4
      %v3924 = vrot.slane %v3807, 5
      %v3925 = vsel %vm2138, %v3923, %v3924
      %v3926 = vrot.slane %v3924, 4
      %v3927 = vrot.slane %v3808, 5
      %v3928 = vsel %vm2138, %v3926, %v3927
      %v3929 = vrot.slane %v3809, 5
      %v3930 = vrot.slane %v3929, 4
      %v3931 = vrot.slane %v3810, 5
      %v3932 = vsel %vm2138, %v3930, %v3931
      %v3933 = vrot.slane %v3931, 4
      %v3934 = vrot.slane %v3811, 5
      %v3935 = vsel %vm2138, %v3933, %v3934
      %v3936 = vrot.slane %v3812, 5
      %v3937 = vrot.slane %v3936, 4
      %v3938 = vrot.slane %v3813, 5
      %v3939 = vsel %vm2138, %v3937, %v3938
      %v3940 = vrot.slane %v3938, 4
      %v3941 = vrot.slane %v3814, 5
      %v3942 = vsel %vm2138, %v3940, %v3941
      %v3943 = vrot.slane %v3815, 5
      %v3944 = vrot.slane %v3943, 4
      %v3945 = vrot.slane %v3816, 5
      %v3946 = vsel %vm2138, %v3944, %v3945
      %v3947 = vrot.slane %v3945, 4
      %v3948 = vrot.slane %v3817, 5
      %v3949 = vsel %vm2138, %v3947, %v3948
      %v3950 = vrot.slane %v3818, 5
      %v3951 = vrot.slane %v3950, 4
      %v3952 = vrot.slane %v3819, 5
      %v3953 = vsel %vm2138, %v3951, %v3952
      %v3954 = vrot.slane %v3952, 4
      %v3955 = vrot.slane %v3820, 5
      %v3956 = vsel %vm2138, %v3954, %v3955
      %v3957 = vrot.slane %v3821, 5
      %v3958 = vrot.slane %v3957, 4
      %v3959 = vrot.slane %v3822, 5
      %v3960 = vsel %vm2138, %v3958, %v3959
      %v3961 = vrot.slane %v3959, 4
      %v3962 = vrot.slane %v3823, 5
      %v3963 = vsel %vm2138, %v3961, %v3962
      %v3964 = vrot.slane %v3824, 5
      %v3965 = vrot.slane %v3964, 4
      %v3966 = vrot.slane %v3825, 5
      %v3967 = vsel %vm2138, %v3965, %v3966
      %v3968 = vrot.slane %v3966, 4
      %v3969 = vrot.slane %v3826, 5
      %v3970 = vsel %vm2138, %v3968, %v3969
      %v3971 = vrot.slane %v3827, 5
      %v3972 = vrot.slane %v3971, 4
      %v3973 = vrot.slane %v3828, 5
      %v3974 = vsel %vm2138, %v3972, %v3973
      %v3975 = vrot.slane %v3973, 4
      %v3976 = vrot.slane %v3829, 5
      %v3977 = vsel %vm2138, %v3975, %v3976
      %v3978 = vrot.slane %v3830, 5
      %v3979 = vrot.slane %v3978, 4
      %v3980 = vrot.slane %v3831, 5
      %v3981 = vsel %vm2138, %v3979, %v3980
      %v3982 = vrot.slane %v3980, 4
      %v3983 = vrot.slane %v3832, 5
      %v3984 = vsel %vm2138, %v3982, %v3983
      %v3985 = vrot.slane %v3833, 5
      %v3986 = vrot.slane %v3985, 4
      %v3987 = vrot.slane %v3834, 5
      %v3988 = vsel %vm2138, %v3986, %v3987
      %v3989 = vrot.slane %v3987, 4
      %v3990 = vrot.slane %v3835, 5
      %v3991 = vsel %vm2138, %v3989, %v3990
      %v3992 = vrot.slane %v3836, 5
      %v3993 = vrot.slane %v3992, 4
      %v3994 = vrot.slane %v3837, 5
      %v3995 = vsel %vm2138, %v3993, %v3994
      %v3996 = vrot.slane %v3994, 4
      %v3997 = vrot.slane %v3838, 5
      %v3998 = vsel %vm2138, %v3996, %v3997
      %s3999 = scalar_lea.vmem %s2, 20
      %v4000 = vld [vmem:[%s3999] sm:$0xf]
      %v4001 = vunpack.c.l.b16 %v3890
      %v4002 = vunpack.c.l.b16 %v3893
      %v4003 = vunpack.c.l.b16 %v3897
      %v4004 = vunpack.c.l.b16 %v3900
      %v4005 = vunpack.c.l.b16 %v3904
      %v4006 = vunpack.c.l.b16 %v3907
      %v4007 = vunpack.c.l.b16 %v3911
      %v4008 = vunpack.c.l.b16 %v3914
      %v4009 = vunpack.c.l.b16 %v3918
      %v4010 = vunpack.c.l.b16 %v3921
      %v4011 = vunpack.c.l.b16 %v3925
      %v4012 = vunpack.c.l.b16 %v3928
      %v4013 = vunpack.c.l.b16 %v3932
      %v4014 = vunpack.c.l.b16 %v3935
      %v4015 = vunpack.c.l.b16 %v3939
      %v4016 = vunpack.c.l.b16 %v3942
      %v4017 = vunpack.c.l.b16 %v3946
      %v4018 = vunpack.c.l.b16 %v3949
      %v4019 = vunpack.c.l.b16 %v3953
      %v4020 = vunpack.c.l.b16 %v3956
      %v4021 = vunpack.c.l.b16 %v3960
      %v4022 = vunpack.c.l.b16 %v3963
      %v4023 = vunpack.c.l.b16 %v3967
      %v4024 = vunpack.c.l.b16 %v3970
      %v4025 = vunpack.c.l.b16 %v3974
      %v4026 = vunpack.c.l.b16 %v3977
      %v4027 = vunpack.c.l.b16 %v3981
      %v4028 = vunpack.c.l.b16 %v3984
      %v4029 = vunpack.c.l.b16 %v3988
      %v4030 = vunpack.c.l.b16 %v3991
      %v4031 = vunpack.c.l.b16 %v3995
      %v4032 = vunpack.c.l.b16 %v3998
      %v4033 = vpack.c.b16 %v4002, %v4001
      %v4034 = vpack.c.b16 %v4004, %v4003
      %v4035 = vpack.c.b16 %v4006, %v4005
      %v4036 = vpack.c.b16 %v4008, %v4007
      %v4037 = vpack.c.b16 %v4010, %v4009
      %v4038 = vpack.c.b16 %v4012, %v4011
      %v4039 = vpack.c.b16 %v4014, %v4013
      %v4040 = vpack.c.b16 %v4016, %v4015
      %v4041 = vpack.c.b16 %v4018, %v4017
      %v4042 = vpack.c.b16 %v4020, %v4019
      %v4043 = vpack.c.b16 %v4022, %v4021
      %v4044 = vpack.c.b16 %v4024, %v4023
      %v4045 = vpack.c.b16 %v4026, %v4025
      %v4046 = vpack.c.b16 %v4028, %v4027
      %v4047 = vpack.c.b16 %v4030, %v4029
      %v4048 = vpack.c.b16 %v4032, %v4031
      %4050 = vst [vmem:[#allocation1] ss:$4 sm:$0xff] %v4000
      %v4051 = vld.sshfl [vmem:[#allocation1] sm:$0xff pattern:$0x73625140]
      %v4052 = vld.sshfl [vmem:[#allocation1 + $0x8] sm:$0xff pattern:$0x73625140]
      %v4054 = vsel %vm1494, %v4033, 0
      %v4057 = vsel %vm1494, %v4034, 0
      %v4060 = vsel %vm1494, %v4035, 0
      %v4063 = vsel %vm1494, %v4036, 0
      %v4066 = vsel %vm1494, %v4037, 0
      %v4069 = vsel %vm1494, %v4038, 0
      %v4072 = vsel %vm1494, %v4039, 0
      %v4075 = vsel %vm1494, %v4040, 0
      %v4078 = vsel %vm1494, %v4041, 0
      %v4081 = vsel %vm1494, %v4042, 0
      %v4084 = vsel %vm1494, %v4043, 0
      %v4087 = vsel %vm1494, %v4044, 0
      %v4090 = vsel %vm1494, %v4045, 0
      %v4093 = vsel %vm1494, %v4046, 0
      %v4096 = vsel %vm1494, %v4047, 0
      %v4099 = vsel %vm1494, %v4048, 0
      %v4101 = vsel %vm1543, %v4051, 0
      %v4103 = vsel %vm1543, %v4052, 0
      %4105 = vmatpush.bf16.msra.mxu0 0
      %4106 = vmatpush.bf16.msra.mxu0 0
      %4107 = vmatpush.bf16.msra.mxu0 0
      %4108 = vmatpush.bf16.msra.mxu0 0
      %4109 = vmatpush.bf16.msra.mxu0 0
      %4110 = vmatpush.bf16.msra.mxu0 0
      %4111 = vmatpush.bf16.msra.mxu0 0
      %4112 = vmatpush.bf16.msra.mxu0 %v4101
      %4113 = vmatmul.bf16.gmra.mxu0 %v4054
      %v4114 = vpop.f32.mrf.mxu0
      %v4115 = vadd.f32 0.0, %v4114
      %v4116 = vpop.f32.mrf.mxu0
      %v4117 = vadd.f32 0.0, %v4116
      %4118 = vmatmul.bf16.gmra.mxu0 %v4057
      %v4119 = vpop.f32.mrf.mxu0
      %v4120 = vadd.f32 0.0, %v4119
      %v4121 = vpop.f32.mrf.mxu0
      %v4122 = vadd.f32 0.0, %v4121
      %4123 = vmatmul.bf16.gmra.mxu0 %v4060
      %v4124 = vpop.f32.mrf.mxu0
      %v4125 = vadd.f32 0.0, %v4124
      %v4126 = vpop.f32.mrf.mxu0
      %v4127 = vadd.f32 0.0, %v4126
      %4128 = vmatmul.bf16.gmra.mxu0 %v4063
      %v4129 = vpop.f32.mrf.mxu0
      %v4130 = vadd.f32 0.0, %v4129
      %v4131 = vpop.f32.mrf.mxu0
      %v4132 = vadd.f32 0.0, %v4131
      %4133 = vmatmul.bf16.gmra.mxu0 %v4066
      %v4134 = vpop.f32.mrf.mxu0
      %v4135 = vadd.f32 0.0, %v4134
      %v4136 = vpop.f32.mrf.mxu0
      %v4137 = vadd.f32 0.0, %v4136
      %4138 = vmatmul.bf16.gmra.mxu0 %v4069
      %v4139 = vpop.f32.mrf.mxu0
      %v4140 = vadd.f32 0.0, %v4139
      %v4141 = vpop.f32.mrf.mxu0
      %v4142 = vadd.f32 0.0, %v4141
      %4143 = vmatmul.bf16.gmra.mxu0 %v4072
      %v4144 = vpop.f32.mrf.mxu0
      %v4145 = vadd.f32 0.0, %v4144
      %v4146 = vpop.f32.mrf.mxu0
      %v4147 = vadd.f32 0.0, %v4146
      %4148 = vmatmul.bf16.gmra.mxu0 %v4075
      %v4149 = vpop.f32.mrf.mxu0
      %v4150 = vadd.f32 0.0, %v4149
      %v4151 = vpop.f32.mrf.mxu0
      %v4152 = vadd.f32 0.0, %v4151
      %4153 = vmatmul.bf16.gmra.mxu0 %v4078
      %v4154 = vpop.f32.mrf.mxu0
      %v4155 = vadd.f32 0.0, %v4154
      %v4156 = vpop.f32.mrf.mxu0
      %v4157 = vadd.f32 0.0, %v4156
      %4158 = vmatmul.bf16.gmra.mxu0 %v4081
      %v4159 = vpop.f32.mrf.mxu0
      %v4160 = vadd.f32 0.0, %v4159
      %v4161 = vpop.f32.mrf.mxu0
      %v4162 = vadd.f32 0.0, %v4161
      %4163 = vmatmul.bf16.gmra.mxu0 %v4084
      %v4164 = vpop.f32.mrf.mxu0
      %v4165 = vadd.f32 0.0, %v4164
      %v4166 = vpop.f32.mrf.mxu0
      %v4167 = vadd.f32 0.0, %v4166
      %4168 = vmatmul.bf16.gmra.mxu0 %v4087
      %v4169 = vpop.f32.mrf.mxu0
      %v4170 = vadd.f32 0.0, %v4169
      %v4171 = vpop.f32.mrf.mxu0
      %v4172 = vadd.f32 0.0, %v4171
      %4173 = vmatmul.bf16.gmra.mxu0 %v4090
      %v4174 = vpop.f32.mrf.mxu0
      %v4175 = vadd.f32 0.0, %v4174
      %v4176 = vpop.f32.mrf.mxu0
      %v4177 = vadd.f32 0.0, %v4176
      %4178 = vmatmul.bf16.gmra.mxu0 %v4093
      %v4179 = vpop.f32.mrf.mxu0
      %v4180 = vadd.f32 0.0, %v4179
      %v4181 = vpop.f32.mrf.mxu0
      %v4182 = vadd.f32 0.0, %v4181
      %4183 = vmatmul.bf16.gmra.mxu0 %v4096
      %v4184 = vpop.f32.mrf.mxu0
      %v4185 = vadd.f32 0.0, %v4184
      %v4186 = vpop.f32.mrf.mxu0
      %v4187 = vadd.f32 0.0, %v4186
      %4188 = vmatmul.bf16.gmra.mxu0 %v4099
      %v4189 = vpop.f32.mrf.mxu0
      %v4190 = vadd.f32 0.0, %v4189
      %v4191 = vpop.f32.mrf.mxu0
      %v4192 = vadd.f32 0.0, %v4191
      %4193 = vdwg.mxu0
      %4194 = vmatpush.bf16.msra.mxu0 0
      %4195 = vmatpush.bf16.msra.mxu0 0
      %4196 = vmatpush.bf16.msra.mxu0 0
      %4197 = vmatpush.bf16.msra.mxu0 0
      %4198 = vmatpush.bf16.msra.mxu0 0
      %4199 = vmatpush.bf16.msra.mxu0 0
      %4200 = vmatpush.bf16.msra.mxu0 0
      %4201 = vmatpush.bf16.msra.mxu0 %v4103
      %4202 = vmatmul.bf16.gmra.mxu0 %v4054
      %v4203 = vpop.f32.mrf.mxu0
      %v4204 = vadd.f32 0.0, %v4203
      %v4205 = vpop.f32.mrf.mxu0
      %v4206 = vadd.f32 0.0, %v4205
      %4207 = vmatmul.bf16.gmra.mxu0 %v4057
      %v4208 = vpop.f32.mrf.mxu0
      %v4209 = vadd.f32 0.0, %v4208
      %v4210 = vpop.f32.mrf.mxu0
      %v4211 = vadd.f32 0.0, %v4210
      %4212 = vmatmul.bf16.gmra.mxu0 %v4060
      %v4213 = vpop.f32.mrf.mxu0
      %v4214 = vadd.f32 0.0, %v4213
      %v4215 = vpop.f32.mrf.mxu0
      %v4216 = vadd.f32 0.0, %v4215
      %4217 = vmatmul.bf16.gmra.mxu0 %v4063
      %v4218 = vpop.f32.mrf.mxu0
      %v4219 = vadd.f32 0.0, %v4218
      %v4220 = vpop.f32.mrf.mxu0
      %v4221 = vadd.f32 0.0, %v4220
      %4222 = vmatmul.bf16.gmra.mxu0 %v4066
      %v4223 = vpop.f32.mrf.mxu0
      %v4224 = vadd.f32 0.0, %v4223
      %v4225 = vpop.f32.mrf.mxu0
      %v4226 = vadd.f32 0.0, %v4225
      %4227 = vmatmul.bf16.gmra.mxu0 %v4069
      %v4228 = vpop.f32.mrf.mxu0
      %v4229 = vadd.f32 0.0, %v4228
      %v4230 = vpop.f32.mrf.mxu0
      %v4231 = vadd.f32 0.0, %v4230
      %4232 = vmatmul.bf16.gmra.mxu0 %v4072
      %v4233 = vpop.f32.mrf.mxu0
      %v4234 = vadd.f32 0.0, %v4233
      %v4235 = vpop.f32.mrf.mxu0
      %v4236 = vadd.f32 0.0, %v4235
      %4237 = vmatmul.bf16.gmra.mxu0 %v4075
      %v4238 = vpop.f32.mrf.mxu0
      %v4239 = vadd.f32 0.0, %v4238
      %v4240 = vpop.f32.mrf.mxu0
      %v4241 = vadd.f32 0.0, %v4240
      %4242 = vmatmul.bf16.gmra.mxu0 %v4078
      %v4243 = vpop.f32.mrf.mxu0
      %v4244 = vadd.f32 0.0, %v4243
      %v4245 = vpop.f32.mrf.mxu0
      %v4246 = vadd.f32 0.0, %v4245
      %4247 = vmatmul.bf16.gmra.mxu0 %v4081
      %v4248 = vpop.f32.mrf.mxu0
      %v4249 = vadd.f32 0.0, %v4248
      %v4250 = vpop.f32.mrf.mxu0
      %v4251 = vadd.f32 0.0, %v4250
      %4252 = vmatmul.bf16.gmra.mxu0 %v4084
      %v4253 = vpop.f32.mrf.mxu0
      %v4254 = vadd.f32 0.0, %v4253
      %v4255 = vpop.f32.mrf.mxu0
      %v4256 = vadd.f32 0.0, %v4255
      %4257 = vmatmul.bf16.gmra.mxu0 %v4087
      %v4258 = vpop.f32.mrf.mxu0
      %v4259 = vadd.f32 0.0, %v4258
      %v4260 = vpop.f32.mrf.mxu0
      %v4261 = vadd.f32 0.0, %v4260
      %4262 = vmatmul.bf16.gmra.mxu0 %v4090
      %v4263 = vpop.f32.mrf.mxu0
      %v4264 = vadd.f32 0.0, %v4263
      %v4265 = vpop.f32.mrf.mxu0
      %v4266 = vadd.f32 0.0, %v4265
      %4267 = vmatmul.bf16.gmra.mxu0 %v4093
      %v4268 = vpop.f32.mrf.mxu0
      %v4269 = vadd.f32 0.0, %v4268
      %v4270 = vpop.f32.mrf.mxu0
      %v4271 = vadd.f32 0.0, %v4270
      %4272 = vmatmul.bf16.gmra.mxu0 %v4096
      %v4273 = vpop.f32.mrf.mxu0
      %v4274 = vadd.f32 0.0, %v4273
      %v4275 = vpop.f32.mrf.mxu0
      %v4276 = vadd.f32 0.0, %v4275
      %4277 = vmatmul.bf16.gmra.mxu0 %v4099
      %v4278 = vpop.f32.mrf.mxu0
      %v4279 = vadd.f32 0.0, %v4278
      %v4280 = vpop.f32.mrf.mxu0
      %v4281 = vadd.f32 0.0, %v4280
      %4282 = vdwg.mxu0
      %v4283 = vadd.f32 %v3727, %v4115
      %v4284 = vadd.f32 %v3728, %v4204
      %v4285 = vadd.f32 %v3729, %v4117
      %v4286 = vadd.f32 %v3730, %v4206
      %v4287 = vadd.f32 %v3731, %v4120
      %v4288 = vadd.f32 %v3732, %v4209
      %v4289 = vadd.f32 %v3733, %v4122
      %v4290 = vadd.f32 %v3734, %v4211
      %v4291 = vadd.f32 %v3735, %v4125
      %v4292 = vadd.f32 %v3736, %v4214
      %v4293 = vadd.f32 %v3737, %v4127
      %v4294 = vadd.f32 %v3738, %v4216
      %v4295 = vadd.f32 %v3739, %v4130
      %v4296 = vadd.f32 %v3740, %v4219
      %v4297 = vadd.f32 %v3741, %v4132
      %v4298 = vadd.f32 %v3742, %v4221
      %v4299 = vadd.f32 %v3743, %v4135
      %v4300 = vadd.f32 %v3744, %v4224
      %v4301 = vadd.f32 %v3745, %v4137
      %v4302 = vadd.f32 %v3746, %v4226
      %v4303 = vadd.f32 %v3747, %v4140
      %v4304 = vadd.f32 %v3748, %v4229
      %v4305 = vadd.f32 %v3749, %v4142
      %v4306 = vadd.f32 %v3750, %v4231
      %v4307 = vadd.f32 %v3751, %v4145
      %v4308 = vadd.f32 %v3752, %v4234
      %v4309 = vadd.f32 %v3753, %v4147
      %v4310 = vadd.f32 %v3754, %v4236
      %v4311 = vadd.f32 %v3755, %v4150
      %v4312 = vadd.f32 %v3756, %v4239
      %v4313 = vadd.f32 %v3757, %v4152
      %v4314 = vadd.f32 %v3758, %v4241
      %v4315 = vadd.f32 %v3759, %v4155
      %v4316 = vadd.f32 %v3760, %v4244
      %v4317 = vadd.f32 %v3761, %v4157
      %v4318 = vadd.f32 %v3762, %v4246
      %v4319 = vadd.f32 %v3763, %v4160
      %v4320 = vadd.f32 %v3764, %v4249
      %v4321 = vadd.f32 %v3765, %v4162
      %v4322 = vadd.f32 %v3766, %v4251
      %v4323 = vadd.f32 %v3767, %v4165
      %v4324 = vadd.f32 %v3768, %v4254
      %v4325 = vadd.f32 %v3769, %v4167
      %v4326 = vadd.f32 %v3770, %v4256
      %v4327 = vadd.f32 %v3771, %v4170
      %v4328 = vadd.f32 %v3772, %v4259
      %v4329 = vadd.f32 %v3773, %v4172
      %v4330 = vadd.f32 %v3774, %v4261
      %v4331 = vadd.f32 %v3775, %v4175
      %v4332 = vadd.f32 %v3776, %v4264
      %v4333 = vadd.f32 %v3777, %v4177
      %v4334 = vadd.f32 %v3778, %v4266
      %v4335 = vadd.f32 %v3779, %v4180
      %v4336 = vadd.f32 %v3780, %v4269
      %v4337 = vadd.f32 %v3781, %v4182
      %v4338 = vadd.f32 %v3782, %v4271
      %v4339 = vadd.f32 %v3783, %v4185
      %v4340 = vadd.f32 %v3784, %v4274
      %v4341 = vadd.f32 %v3785, %v4187
      %v4342 = vadd.f32 %v3786, %v4276
      %v4343 = vadd.f32 %v3787, %v4190
      %v4344 = vadd.f32 %v3788, %v4279
      %v4345 = vadd.f32 %v3789, %v4192
      %v4346 = vadd.f32 %v3790, %v4281
      %s4347 = scalar_lea.vmem [#allocation2], 24
      %v4348 = vld [vmem:[%s4347] sm:$0xf]
      %v4349 = vld [vmem:[%s4347 + $0x4] sm:$0xf]
      %v4350 = vld [vmem:[%s4347 + $0xc] sm:$0xf]
      %v4351 = vld [vmem:[%s4347 + $0x10] sm:$0xf]
      %v4352 = vld [vmem:[%s4347 + $0x18] sm:$0xf]
      %v4353 = vld [vmem:[%s4347 + $0x1c] sm:$0xf]
      %v4354 = vld [vmem:[%s4347 + $0x24] sm:$0xf]
      %v4355 = vld [vmem:[%s4347 + $0x28] sm:$0xf]
      %v4356 = vld [vmem:[%s4347 + $0x30] sm:$0xf]
      %v4357 = vld [vmem:[%s4347 + $0x34] sm:$0xf]
      %v4358 = vld [vmem:[%s4347 + $0x3c] sm:$0xf]
      %v4359 = vld [vmem:[%s4347 + $0x40] sm:$0xf]
      %v4360 = vld [vmem:[%s4347 + $0x48] sm:$0xf]
      %v4361 = vld [vmem:[%s4347 + $0x4c] sm:$0xf]
      %v4362 = vld [vmem:[%s4347 + $0x54] sm:$0xf]
      %v4363 = vld [vmem:[%s4347 + $0x58] sm:$0xf]
      %v4364 = vld [vmem:[%s4347 + $0x60] sm:$0xf]
      %v4365 = vld [vmem:[%s4347 + $0x64] sm:$0xf]
      %v4366 = vld [vmem:[%s4347 + $0x6c] sm:$0xf]
      %v4367 = vld [vmem:[%s4347 + $0x70] sm:$0xf]
      %v4368 = vld [vmem:[%s4347 + $0x78] sm:$0xf]
      %v4369 = vld [vmem:[%s4347 + $0x7c] sm:$0xf]
      %v4370 = vld [vmem:[%s4347 + $0x84] sm:$0xf]
      %v4371 = vld [vmem:[%s4347 + $0x88] sm:$0xf]
      %v4372 = vld [vmem:[%s4347 + $0x90] sm:$0xf]
      %v4373 = vld [vmem:[%s4347 + $0x94] sm:$0xf]
      %v4374 = vld [vmem:[%s4347 + $0x9c] sm:$0xf]
      %v4375 = vld [vmem:[%s4347 + $0xa0] sm:$0xf]
      %v4376 = vld [vmem:[%s4347 + $0xa8] sm:$0xf]
      %v4377 = vld [vmem:[%s4347 + $0xac] sm:$0xf]
      %v4378 = vld [vmem:[%s4347 + $0xb4] sm:$0xf]
      %v4379 = vld [vmem:[%s4347 + $0xb8] sm:$0xf]
      %s4380 = scalar_lea.vmem %s2, 24
      %v4381 = vld [vmem:[%s4380] sm:$0xf]
      %v4414 = vunpack.c.l.b16 %v4348
      %v4415 = vunpack.c.l.b16 %v4349
      %v4416 = vunpack.c.l.b16 %v4350
      %v4417 = vunpack.c.l.b16 %v4351
      %v4418 = vunpack.c.l.b16 %v4352
      %v4419 = vunpack.c.l.b16 %v4353
      %v4420 = vunpack.c.l.b16 %v4354
      %v4421 = vunpack.c.l.b16 %v4355
      %v4422 = vunpack.c.l.b16 %v4356
      %v4423 = vunpack.c.l.b16 %v4357
      %v4424 = vunpack.c.l.b16 %v4358
      %v4425 = vunpack.c.l.b16 %v4359
      %v4426 = vunpack.c.l.b16 %v4360
      %v4427 = vunpack.c.l.b16 %v4361
      %v4428 = vunpack.c.l.b16 %v4362
      %v4429 = vunpack.c.l.b16 %v4363
      %v4430 = vunpack.c.l.b16 %v4364
      %v4431 = vunpack.c.l.b16 %v4365
      %v4432 = vunpack.c.l.b16 %v4366
      %v4433 = vunpack.c.l.b16 %v4367
      %v4434 = vunpack.c.l.b16 %v4368
      %v4435 = vunpack.c.l.b16 %v4369
      %v4436 = vunpack.c.l.b16 %v4370
      %v4437 = vunpack.c.l.b16 %v4371
      %v4438 = vunpack.c.l.b16 %v4372
      %v4439 = vunpack.c.l.b16 %v4373
      %v4440 = vunpack.c.l.b16 %v4374
      %v4441 = vunpack.c.l.b16 %v4375
      %v4442 = vunpack.c.l.b16 %v4376
      %v4443 = vunpack.c.l.b16 %v4377
      %v4444 = vunpack.c.l.b16 %v4378
      %v4445 = vunpack.c.l.b16 %v4379
      %v4446 = vpack.c.b16 %v4415, %v4414
      %v4447 = vpack.c.b16 %v4417, %v4416
      %v4448 = vpack.c.b16 %v4419, %v4418
      %v4449 = vpack.c.b16 %v4421, %v4420
      %v4450 = vpack.c.b16 %v4423, %v4422
      %v4451 = vpack.c.b16 %v4425, %v4424
      %v4452 = vpack.c.b16 %v4427, %v4426
      %v4453 = vpack.c.b16 %v4429, %v4428
      %v4454 = vpack.c.b16 %v4431, %v4430
      %v4455 = vpack.c.b16 %v4433, %v4432
      %v4456 = vpack.c.b16 %v4435, %v4434
      %v4457 = vpack.c.b16 %v4437, %v4436
      %v4458 = vpack.c.b16 %v4439, %v4438
      %v4459 = vpack.c.b16 %v4441, %v4440
      %v4460 = vpack.c.b16 %v4443, %v4442
      %v4461 = vpack.c.b16 %v4445, %v4444
      %4463 = vst [vmem:[#allocation1] ss:$4 sm:$0xff] %v4381
      %v4464 = vld.sshfl [vmem:[#allocation1] sm:$0xff pattern:$0x73625140]
      %v4465 = vld.sshfl [vmem:[#allocation1 + $0x8] sm:$0xff pattern:$0x73625140]
      %v4467 = vsel %vm1494, %v4446, 0
      %v4470 = vsel %vm1494, %v4447, 0
      %v4473 = vsel %vm1494, %v4448, 0
      %v4476 = vsel %vm1494, %v4449, 0
      %v4479 = vsel %vm1494, %v4450, 0
      %v4482 = vsel %vm1494, %v4451, 0
      %v4485 = vsel %vm1494, %v4452, 0
      %v4488 = vsel %vm1494, %v4453, 0
      %v4491 = vsel %vm1494, %v4454, 0
      %v4494 = vsel %vm1494, %v4455, 0
      %v4497 = vsel %vm1494, %v4456, 0
      %v4500 = vsel %vm1494, %v4457, 0
      %v4503 = vsel %vm1494, %v4458, 0
      %v4506 = vsel %vm1494, %v4459, 0
      %v4509 = vsel %vm1494, %v4460, 0
      %v4512 = vsel %vm1494, %v4461, 0
      %v4514 = vsel %vm1543, %v4464, 0
      %v4516 = vsel %vm1543, %v4465, 0
      %4518 = vmatpush.bf16.msra.mxu0 0
      %4519 = vmatpush.bf16.msra.mxu0 0
      %4520 = vmatpush.bf16.msra.mxu0 0
      %4521 = vmatpush.bf16.msra.mxu0 0
      %4522 = vmatpush.bf16.msra.mxu0 0
      %4523 = vmatpush.bf16.msra.mxu0 0
      %4524 = vmatpush.bf16.msra.mxu0 0
      %4525 = vmatpush.bf16.msra.mxu0 %v4514
      %4526 = vmatmul.bf16.gmra.mxu0 %v4467
      %v4527 = vpop.f32.mrf.mxu0
      %v4528 = vadd.f32 0.0, %v4527
      %v4529 = vpop.f32.mrf.mxu0
      %v4530 = vadd.f32 0.0, %v4529
      %4531 = vmatmul.bf16.gmra.mxu0 %v4470
      %v4532 = vpop.f32.mrf.mxu0
      %v4533 = vadd.f32 0.0, %v4532
      %v4534 = vpop.f32.mrf.mxu0
      %v4535 = vadd.f32 0.0, %v4534
      %4536 = vmatmul.bf16.gmra.mxu0 %v4473
      %v4537 = vpop.f32.mrf.mxu0
      %v4538 = vadd.f32 0.0, %v4537
      %v4539 = vpop.f32.mrf.mxu0
      %v4540 = vadd.f32 0.0, %v4539
      %4541 = vmatmul.bf16.gmra.mxu0 %v4476
      %v4542 = vpop.f32.mrf.mxu0
      %v4543 = vadd.f32 0.0, %v4542
      %v4544 = vpop.f32.mrf.mxu0
      %v4545 = vadd.f32 0.0, %v4544
      %4546 = vmatmul.bf16.gmra.mxu0 %v4479
      %v4547 = vpop.f32.mrf.mxu0
      %v4548 = vadd.f32 0.0, %v4547
      %v4549 = vpop.f32.mrf.mxu0
      %v4550 = vadd.f32 0.0, %v4549
      %4551 = vmatmul.bf16.gmra.mxu0 %v4482
      %v4552 = vpop.f32.mrf.mxu0
      %v4553 = vadd.f32 0.0, %v4552
      %v4554 = vpop.f32.mrf.mxu0
      %v4555 = vadd.f32 0.0, %v4554
      %4556 = vmatmul.bf16.gmra.mxu0 %v4485
      %v4557 = vpop.f32.mrf.mxu0
      %v4558 = vadd.f32 0.0, %v4557
      %v4559 = vpop.f32.mrf.mxu0
      %v4560 = vadd.f32 0.0, %v4559
      %4561 = vmatmul.bf16.gmra.mxu0 %v4488
      %v4562 = vpop.f32.mrf.mxu0
      %v4563 = vadd.f32 0.0, %v4562
      %v4564 = vpop.f32.mrf.mxu0
      %v4565 = vadd.f32 0.0, %v4564
      %4566 = vmatmul.bf16.gmra.mxu0 %v4491
      %v4567 = vpop.f32.mrf.mxu0
      %v4568 = vadd.f32 0.0, %v4567
      %v4569 = vpop.f32.mrf.mxu0
      %v4570 = vadd.f32 0.0, %v4569
      %4571 = vmatmul.bf16.gmra.mxu0 %v4494
      %v4572 = vpop.f32.mrf.mxu0
      %v4573 = vadd.f32 0.0, %v4572
      %v4574 = vpop.f32.mrf.mxu0
      %v4575 = vadd.f32 0.0, %v4574
      %4576 = vmatmul.bf16.gmra.mxu0 %v4497
      %v4577 = vpop.f32.mrf.mxu0
      %v4578 = vadd.f32 0.0, %v4577
      %v4579 = vpop.f32.mrf.mxu0
      %v4580 = vadd.f32 0.0, %v4579
      %4581 = vmatmul.bf16.gmra.mxu0 %v4500
      %v4582 = vpop.f32.mrf.mxu0
      %v4583 = vadd.f32 0.0, %v4582
      %v4584 = vpop.f32.mrf.mxu0
      %v4585 = vadd.f32 0.0, %v4584
      %4586 = vmatmul.bf16.gmra.mxu0 %v4503
      %v4587 = vpop.f32.mrf.mxu0
      %v4588 = vadd.f32 0.0, %v4587
      %v4589 = vpop.f32.mrf.mxu0
      %v4590 = vadd.f32 0.0, %v4589
      %4591 = vmatmul.bf16.gmra.mxu0 %v4506
      %v4592 = vpop.f32.mrf.mxu0
      %v4593 = vadd.f32 0.0, %v4592
      %v4594 = vpop.f32.mrf.mxu0
      %v4595 = vadd.f32 0.0, %v4594
      %4596 = vmatmul.bf16.gmra.mxu0 %v4509
      %v4597 = vpop.f32.mrf.mxu0
      %v4598 = vadd.f32 0.0, %v4597
      %v4599 = vpop.f32.mrf.mxu0
      %v4600 = vadd.f32 0.0, %v4599
      %4601 = vmatmul.bf16.gmra.mxu0 %v4512
      %v4602 = vpop.f32.mrf.mxu0
      %v4603 = vadd.f32 0.0, %v4602
      %v4604 = vpop.f32.mrf.mxu0
      %v4605 = vadd.f32 0.0, %v4604
      %4606 = vdwg.mxu0
      %4607 = vmatpush.bf16.msra.mxu0 0
      %4608 = vmatpush.bf16.msra.mxu0 0
      %4609 = vmatpush.bf16.msra.mxu0 0
      %4610 = vmatpush.bf16.msra.mxu0 0
      %4611 = vmatpush.bf16.msra.mxu0 0
      %4612 = vmatpush.bf16.msra.mxu0 0
      %4613 = vmatpush.bf16.msra.mxu0 0
      %4614 = vmatpush.bf16.msra.mxu0 %v4516
      %4615 = vmatmul.bf16.gmra.mxu0 %v4467
      %v4616 = vpop.f32.mrf.mxu0
      %v4617 = vadd.f32 0.0, %v4616
      %v4618 = vpop.f32.mrf.mxu0
      %v4619 = vadd.f32 0.0, %v4618
      %4620 = vmatmul.bf16.gmra.mxu0 %v4470
      %v4621 = vpop.f32.mrf.mxu0
      %v4622 = vadd.f32 0.0, %v4621
      %v4623 = vpop.f32.mrf.mxu0
      %v4624 = vadd.f32 0.0, %v4623
      %4625 = vmatmul.bf16.gmra.mxu0 %v4473
      %v4626 = vpop.f32.mrf.mxu0
      %v4627 = vadd.f32 0.0, %v4626
      %v4628 = vpop.f32.mrf.mxu0
      %v4629 = vadd.f32 0.0, %v4628
      %4630 = vmatmul.bf16.gmra.mxu0 %v4476
      %v4631 = vpop.f32.mrf.mxu0
      %v4632 = vadd.f32 0.0, %v4631
      %v4633 = vpop.f32.mrf.mxu0
      %v4634 = vadd.f32 0.0, %v4633
      %4635 = vmatmul.bf16.gmra.mxu0 %v4479
      %v4636 = vpop.f32.mrf.mxu0
      %v4637 = vadd.f32 0.0, %v4636
      %v4638 = vpop.f32.mrf.mxu0
      %v4639 = vadd.f32 0.0, %v4638
      %4640 = vmatmul.bf16.gmra.mxu0 %v4482
      %v4641 = vpop.f32.mrf.mxu0
      %v4642 = vadd.f32 0.0, %v4641
      %v4643 = vpop.f32.mrf.mxu0
      %v4644 = vadd.f32 0.0, %v4643
      %4645 = vmatmul.bf16.gmra.mxu0 %v4485
      %v4646 = vpop.f32.mrf.mxu0
      %v4647 = vadd.f32 0.0, %v4646
      %v4648 = vpop.f32.mrf.mxu0
      %v4649 = vadd.f32 0.0, %v4648
      %4650 = vmatmul.bf16.gmra.mxu0 %v4488
      %v4651 = vpop.f32.mrf.mxu0
      %v4652 = vadd.f32 0.0, %v4651
      %v4653 = vpop.f32.mrf.mxu0
      %v4654 = vadd.f32 0.0, %v4653
      %4655 = vmatmul.bf16.gmra.mxu0 %v4491
      %v4656 = vpop.f32.mrf.mxu0
      %v4657 = vadd.f32 0.0, %v4656
      %v4658 = vpop.f32.mrf.mxu0
      %v4659 = vadd.f32 0.0, %v4658
      %4660 = vmatmul.bf16.gmra.mxu0 %v4494
      %v4661 = vpop.f32.mrf.mxu0
      %v4662 = vadd.f32 0.0, %v4661
      %v4663 = vpop.f32.mrf.mxu0
      %v4664 = vadd.f32 0.0, %v4663
      %4665 = vmatmul.bf16.gmra.mxu0 %v4497
      %v4666 = vpop.f32.mrf.mxu0
      %v4667 = vadd.f32 0.0, %v4666
      %v4668 = vpop.f32.mrf.mxu0
      %v4669 = vadd.f32 0.0, %v4668
      %4670 = vmatmul.bf16.gmra.mxu0 %v4500
      %v4671 = vpop.f32.mrf.mxu0
      %v4672 = vadd.f32 0.0, %v4671
      %v4673 = vpop.f32.mrf.mxu0
      %v4674 = vadd.f32 0.0, %v4673
      %4675 = vmatmul.bf16.gmra.mxu0 %v4503
      %v4676 = vpop.f32.mrf.mxu0
      %v4677 = vadd.f32 0.0, %v4676
      %v4678 = vpop.f32.mrf.mxu0
      %v4679 = vadd.f32 0.0, %v4678
      %4680 = vmatmul.bf16.gmra.mxu0 %v4506
      %v4681 = vpop.f32.mrf.mxu0
      %v4682 = vadd.f32 0.0, %v4681
      %v4683 = vpop.f32.mrf.mxu0
      %v4684 = vadd.f32 0.0, %v4683
      %4685 = vmatmul.bf16.gmra.mxu0 %v4509
      %v4686 = vpop.f32.mrf.mxu0
      %v4687 = vadd.f32 0.0, %v4686
      %v4688 = vpop.f32.mrf.mxu0
      %v4689 = vadd.f32 0.0, %v4688
      %4690 = vmatmul.bf16.gmra.mxu0 %v4512
      %v4691 = vpop.f32.mrf.mxu0
      %v4692 = vadd.f32 0.0, %v4691
      %v4693 = vpop.f32.mrf.mxu0
      %v4694 = vadd.f32 0.0, %v4693
      %4695 = vdwg.mxu0
      %v4696 = vadd.f32 %v4283, %v4528
      %v4697 = vadd.f32 %v4284, %v4617
      %v4698 = vadd.f32 %v4285, %v4530
      %v4699 = vadd.f32 %v4286, %v4619
      %v4700 = vadd.f32 %v4287, %v4533
      %v4701 = vadd.f32 %v4288, %v4622
      %v4702 = vadd.f32 %v4289, %v4535
      %v4703 = vadd.f32 %v4290, %v4624
      %v4704 = vadd.f32 %v4291, %v4538
      %v4705 = vadd.f32 %v4292, %v4627
      %v4706 = vadd.f32 %v4293, %v4540
      %v4707 = vadd.f32 %v4294, %v4629
      %v4708 = vadd.f32 %v4295, %v4543
      %v4709 = vadd.f32 %v4296, %v4632
      %v4710 = vadd.f32 %v4297, %v4545
      %v4711 = vadd.f32 %v4298, %v4634
      %v4712 = vadd.f32 %v4299, %v4548
      %v4713 = vadd.f32 %v4300, %v4637
      %v4714 = vadd.f32 %v4301, %v4550
      %v4715 = vadd.f32 %v4302, %v4639
      %v4716 = vadd.f32 %v4303, %v4553
      %v4717 = vadd.f32 %v4304, %v4642
      %v4718 = vadd.f32 %v4305, %v4555
      %v4719 = vadd.f32 %v4306, %v4644
      %v4720 = vadd.f32 %v4307, %v4558
      %v4721 = vadd.f32 %v4308, %v4647
      %v4722 = vadd.f32 %v4309, %v4560
      %v4723 = vadd.f32 %v4310, %v4649
      %v4724 = vadd.f32 %v4311, %v4563
      %v4725 = vadd.f32 %v4312, %v4652
      %v4726 = vadd.f32 %v4313, %v4565
      %v4727 = vadd.f32 %v4314, %v4654
      %v4728 = vadd.f32 %v4315, %v4568
      %v4729 = vadd.f32 %v4316, %v4657
      %v4730 = vadd.f32 %v4317, %v4570
      %v4731 = vadd.f32 %v4318, %v4659
      %v4732 = vadd.f32 %v4319, %v4573
      %v4733 = vadd.f32 %v4320, %v4662
      %v4734 = vadd.f32 %v4321, %v4575
      %v4735 = vadd.f32 %v4322, %v4664
      %v4736 = vadd.f32 %v4323, %v4578
      %v4737 = vadd.f32 %v4324, %v4667
      %v4738 = vadd.f32 %v4325, %v4580
      %v4739 = vadd.f32 %v4326, %v4669
      %v4740 = vadd.f32 %v4327, %v4583
      %v4741 = vadd.f32 %v4328, %v4672
      %v4742 = vadd.f32 %v4329, %v4585
      %v4743 = vadd.f32 %v4330, %v4674
      %v4744 = vadd.f32 %v4331, %v4588
      %v4745 = vadd.f32 %v4332, %v4677
      %v4746 = vadd.f32 %v4333, %v4590
      %v4747 = vadd.f32 %v4334, %v4679
      %v4748 = vadd.f32 %v4335, %v4593
      %v4749 = vadd.f32 %v4336, %v4682
      %v4750 = vadd.f32 %v4337, %v4595
      %v4751 = vadd.f32 %v4338, %v4684
      %v4752 = vadd.f32 %v4339, %v4598
      %v4753 = vadd.f32 %v4340, %v4687
      %v4754 = vadd.f32 %v4341, %v4600
      %v4755 = vadd.f32 %v4342, %v4689
      %v4756 = vadd.f32 %v4343, %v4603
      %v4757 = vadd.f32 %v4344, %v4692
      %v4758 = vadd.f32 %v4345, %v4605
      %v4759 = vadd.f32 %v4346, %v4694
      %v4760 = vld [vmem:[%s4347] sm:$0xf]
      %v4761 = vld [vmem:[%s4347 + $0x4] sm:$0xf]
      %v4762 = vld [vmem:[%s4347 + $0x8] sm:$0x1]
      %v4763 = vld [vmem:[%s4347 + $0xc] sm:$0xf]
      %v4764 = vld [vmem:[%s4347 + $0x10] sm:$0xf]
      %v4765 = vld [vmem:[%s4347 + $0x14] sm:$0x1]
      %v4766 = vld [vmem:[%s4347 + $0x18] sm:$0xf]
      %v4767 = vld [vmem:[%s4347 + $0x1c] sm:$0xf]
      %v4768 = vld [vmem:[%s4347 + $0x20] sm:$0x1]
      %v4769 = vld [vmem:[%s4347 + $0x24] sm:$0xf]
      %v4770 = vld [vmem:[%s4347 + $0x28] sm:$0xf]
      %v4771 = vld [vmem:[%s4347 + $0x2c] sm:$0x1]
      %v4772 = vld [vmem:[%s4347 + $0x30] sm:$0xf]
      %v4773 = vld [vmem:[%s4347 + $0x34] sm:$0xf]
      %v4774 = vld [vmem:[%s4347 + $0x38] sm:$0x1]
      %v4775 = vld [vmem:[%s4347 + $0x3c] sm:$0xf]
      %v4776 = vld [vmem:[%s4347 + $0x40] sm:$0xf]
      %v4777 = vld [vmem:[%s4347 + $0x44] sm:$0x1]
      %v4778 = vld [vmem:[%s4347 + $0x48] sm:$0xf]
      %v4779 = vld [vmem:[%s4347 + $0x4c] sm:$0xf]
      %v4780 = vld [vmem:[%s4347 + $0x50] sm:$0x1]
      %v4781 = vld [vmem:[%s4347 + $0x54] sm:$0xf]
      %v4782 = vld [vmem:[%s4347 + $0x58] sm:$0xf]
      %v4783 = vld [vmem:[%s4347 + $0x5c] sm:$0x1]
      %v4784 = vld [vmem:[%s4347 + $0x60] sm:$0xf]
      %v4785 = vld [vmem:[%s4347 + $0x64] sm:$0xf]
      %v4786 = vld [vmem:[%s4347 + $0x68] sm:$0x1]
      %v4787 = vld [vmem:[%s4347 + $0x6c] sm:$0xf]
      %v4788 = vld [vmem:[%s4347 + $0x70] sm:$0xf]
      %v4789 = vld [vmem:[%s4347 + $0x74] sm:$0x1]
      %v4790 = vld [vmem:[%s4347 + $0x78] sm:$0xf]
      %v4791 = vld [vmem:[%s4347 + $0x7c] sm:$0xf]
      %v4792 = vld [vmem:[%s4347 + $0x80] sm:$0x1]
      %v4793 = vld [vmem:[%s4347 + $0x84] sm:$0xf]
      %v4794 = vld [vmem:[%s4347 + $0x88] sm:$0xf]
      %v4795 = vld [vmem:[%s4347 + $0x8c] sm:$0x1]
      %v4796 = vld [vmem:[%s4347 + $0x90] sm:$0xf]
      %v4797 = vld [vmem:[%s4347 + $0x94] sm:$0xf]
      %v4798 = vld [vmem:[%s4347 + $0x98] sm:$0x1]
      %v4799 = vld [vmem:[%s4347 + $0x9c] sm:$0xf]
      %v4800 = vld [vmem:[%s4347 + $0xa0] sm:$0xf]
      %v4801 = vld [vmem:[%s4347 + $0xa4] sm:$0x1]
      %v4802 = vld [vmem:[%s4347 + $0xa8] sm:$0xf]
      %v4803 = vld [vmem:[%s4347 + $0xac] sm:$0xf]
      %v4804 = vld [vmem:[%s4347 + $0xb0] sm:$0x1]
      %v4805 = vld [vmem:[%s4347 + $0xb4] sm:$0xf]
      %v4806 = vld [vmem:[%s4347 + $0xb8] sm:$0xf]
      %v4807 = vld [vmem:[%s4347 + $0xbc] sm:$0x1]
      %v4809 = vshrl.u32 %v4760, 16
      %v4811 = vrot.slane %v4809, 4
      %v4812 = vshll.u32 %v4760, 16
      %v4814 = vrot.slane %v4812, 5
      %v4815 = vor.u32 %v4811, %v4814
      %v4816 = vrot.slane %v4815, 4
      %v4818 = vshll.u32 %v4761, 16
      %v4820 = vrot.slane %v4818, 5
      %v4821 = vsel %vm1055, %v4816, %v4820
      %v4822 = vshrl.u32 %v4761, 16
      %v4824 = vrot.slane %v4822, 4
      %v4825 = vor.u32 %v4824, %v4820
      %v4826 = vrot.slane %v4825, 4
      %v4828 = vshll.u32 %v4762, 16
      %v4830 = vrot.slane %v4828, 5
      %v4831 = vsel %vm1055, %v4826, %v4830
      %v4833 = vshrl.u32 %v4763, 16
      %v4835 = vrot.slane %v4833, 4
      %v4836 = vshll.u32 %v4763, 16
      %v4838 = vrot.slane %v4836, 5
      %v4839 = vor.u32 %v4835, %v4838
      %v4840 = vrot.slane %v4839, 4
      %v4842 = vshll.u32 %v4764, 16
      %v4844 = vrot.slane %v4842, 5
      %v4845 = vsel %vm1055, %v4840, %v4844
      %v4846 = vshrl.u32 %v4764, 16
      %v4848 = vrot.slane %v4846, 4
      %v4849 = vor.u32 %v4848, %v4844
      %v4850 = vrot.slane %v4849, 4
      %v4852 = vshll.u32 %v4765, 16
      %v4854 = vrot.slane %v4852, 5
      %v4855 = vsel %vm1055, %v4850, %v4854
      %v4857 = vshrl.u32 %v4766, 16
      %v4859 = vrot.slane %v4857, 4
      %v4860 = vshll.u32 %v4766, 16
      %v4862 = vrot.slane %v4860, 5
      %v4863 = vor.u32 %v4859, %v4862
      %v4864 = vrot.slane %v4863, 4
      %v4866 = vshll.u32 %v4767, 16
      %v4868 = vrot.slane %v4866, 5
      %v4869 = vsel %vm1055, %v4864, %v4868
      %v4870 = vshrl.u32 %v4767, 16
      %v4872 = vrot.slane %v4870, 4
      %v4873 = vor.u32 %v4872, %v4868
      %v4874 = vrot.slane %v4873, 4
      %v4876 = vshll.u32 %v4768, 16
      %v4878 = vrot.slane %v4876, 5
      %v4879 = vsel %vm1055, %v4874, %v4878
      %v4881 = vshrl.u32 %v4769, 16
      %v4883 = vrot.slane %v4881, 4
      %v4884 = vshll.u32 %v4769, 16
      %v4886 = vrot.slane %v4884, 5
      %v4887 = vor.u32 %v4883, %v4886
      %v4888 = vrot.slane %v4887, 4
      %v4890 = vshll.u32 %v4770, 16
      %v4892 = vrot.slane %v4890, 5
      %v4893 = vsel %vm1055, %v4888, %v4892
      %v4894 = vshrl.u32 %v4770, 16
      %v4896 = vrot.slane %v4894, 4
      %v4897 = vor.u32 %v4896, %v4892
      %v4898 = vrot.slane %v4897, 4
      %v4900 = vshll.u32 %v4771, 16
      %v4902 = vrot.slane %v4900, 5
      %v4903 = vsel %vm1055, %v4898, %v4902
      %v4905 = vshrl.u32 %v4772, 16
      %v4907 = vrot.slane %v4905, 4
      %v4908 = vshll.u32 %v4772, 16
      %v4910 = vrot.slane %v4908, 5
      %v4911 = vor.u32 %v4907, %v4910
      %v4912 = vrot.slane %v4911, 4
      %v4914 = vshll.u32 %v4773, 16
      %v4916 = vrot.slane %v4914, 5
      %v4917 = vsel %vm1055, %v4912, %v4916
      %v4918 = vshrl.u32 %v4773, 16
      %v4920 = vrot.slane %v4918, 4
      %v4921 = vor.u32 %v4920, %v4916
      %v4922 = vrot.slane %v4921, 4
      %v4924 = vshll.u32 %v4774, 16
      %v4926 = vrot.slane %v4924, 5
      %v4927 = vsel %vm1055, %v4922, %v4926
      %v4929 = vshrl.u32 %v4775, 16
      %v4931 = vrot.slane %v4929, 4
      %v4932 = vshll.u32 %v4775, 16
      %v4934 = vrot.slane %v4932, 5
      %v4935 = vor.u32 %v4931, %v4934
      %v4936 = vrot.slane %v4935, 4
      %v4938 = vshll.u32 %v4776, 16
      %v4940 = vrot.slane %v4938, 5
      %v4941 = vsel %vm1055, %v4936, %v4940
      %v4942 = vshrl.u32 %v4776, 16
      %v4944 = vrot.slane %v4942, 4
      %v4945 = vor.u32 %v4944, %v4940
      %v4946 = vrot.slane %v4945, 4
      %v4948 = vshll.u32 %v4777, 16
      %v4950 = vrot.slane %v4948, 5
      %v4951 = vsel %vm1055, %v4946, %v4950
      %v4953 = vshrl.u32 %v4778, 16
      %v4955 = vrot.slane %v4953, 4
      %v4956 = vshll.u32 %v4778, 16
      %v4958 = vrot.slane %v4956, 5
      %v4959 = vor.u32 %v4955, %v4958
      %v4960 = vrot.slane %v4959, 4
      %v4962 = vshll.u32 %v4779, 16
      %v4964 = vrot.slane %v4962, 5
      %v4965 = vsel %vm1055, %v4960, %v4964
      %v4966 = vshrl.u32 %v4779, 16
      %v4968 = vrot.slane %v4966, 4
      %v4969 = vor.u32 %v4968, %v4964
      %v4970 = vrot.slane %v4969, 4
      %v4972 = vshll.u32 %v4780, 16
      %v4974 = vrot.slane %v4972, 5
      %v4975 = vsel %vm1055, %v4970, %v4974
      %v4977 = vshrl.u32 %v4781, 16
      %v4979 = vrot.slane %v4977, 4
      %v4980 = vshll.u32 %v4781, 16
      %v4982 = vrot.slane %v4980, 5
      %v4983 = vor.u32 %v4979, %v4982
      %v4984 = vrot.slane %v4983, 4
      %v4986 = vshll.u32 %v4782, 16
      %v4988 = vrot.slane %v4986, 5
      %v4989 = vsel %vm1055, %v4984, %v4988
      %v4990 = vshrl.u32 %v4782, 16
      %v4992 = vrot.slane %v4990, 4
      %v4993 = vor.u32 %v4992, %v4988
      %v4994 = vrot.slane %v4993, 4
      %v4996 = vshll.u32 %v4783, 16
      %v4998 = vrot.slane %v4996, 5
      %v4999 = vsel %vm1055, %v4994, %v4998
      %v5001 = vshrl.u32 %v4784, 16
      %v5003 = vrot.slane %v5001, 4
      %v5004 = vshll.u32 %v4784, 16
      %v5006 = vrot.slane %v5004, 5
      %v5007 = vor.u32 %v5003, %v5006
      %v5008 = vrot.slane %v5007, 4
      %v5010 = vshll.u32 %v4785, 16
      %v5012 = vrot.slane %v5010, 5
      %v5013 = vsel %vm1055, %v5008, %v5012
      %v5014 = vshrl.u32 %v4785, 16
      %v5016 = vrot.slane %v5014, 4
      %v5017 = vor.u32 %v5016, %v5012
      %v5018 = vrot.slane %v5017, 4
      %v5020 = vshll.u32 %v4786, 16
      %v5022 = vrot.slane %v5020, 5
      %v5023 = vsel %vm1055, %v5018, %v5022
      %v5025 = vshrl.u32 %v4787, 16
      %v5027 = vrot.slane %v5025, 4
      %v5028 = vshll.u32 %v4787, 16
      %v5030 = vrot.slane %v5028, 5
      %v5031 = vor.u32 %v5027, %v5030
      %v5032 = vrot.slane %v5031, 4
      %v5034 = vshll.u32 %v4788, 16
      %v5036 = vrot.slane %v5034, 5
      %v5037 = vsel %vm1055, %v5032, %v5036
      %v5038 = vshrl.u32 %v4788, 16
      %v5040 = vrot.slane %v5038, 4
      %v5041 = vor.u32 %v5040, %v5036
      %v5042 = vrot.slane %v5041, 4
      %v5044 = vshll.u32 %v4789, 16
      %v5046 = vrot.slane %v5044, 5
      %v5047 = vsel %vm1055, %v5042, %v5046
      %v5049 = vshrl.u32 %v4790, 16
      %v5051 = vrot.slane %v5049, 4
      %v5052 = vshll.u32 %v4790, 16
      %v5054 = vrot.slane %v5052, 5
      %v5055 = vor.u32 %v5051, %v5054
      %v5056 = vrot.slane %v5055, 4
      %v5058 = vshll.u32 %v4791, 16
      %v5060 = vrot.slane %v5058, 5
      %v5061 = vsel %vm1055, %v5056, %v5060
      %v5062 = vshrl.u32 %v4791, 16
      %v5064 = vrot.slane %v5062, 4
      %v5065 = vor.u32 %v5064, %v5060
      %v5066 = vrot.slane %v5065, 4
      %v5068 = vshll.u32 %v4792, 16
      %v5070 = vrot.slane %v5068, 5
      %v5071 = vsel %vm1055, %v5066, %v5070
      %v5073 = vshrl.u32 %v4793, 16
      %v5075 = vrot.slane %v5073, 4
      %v5076 = vshll.u32 %v4793, 16
      %v5078 = vrot.slane %v5076, 5
      %v5079 = vor.u32 %v5075, %v5078
      %v5080 = vrot.slane %v5079, 4
      %v5082 = vshll.u32 %v4794, 16
      %v5084 = vrot.slane %v5082, 5
      %v5085 = vsel %vm1055, %v5080, %v5084
      %v5086 = vshrl.u32 %v4794, 16
      %v5088 = vrot.slane %v5086, 4
      %v5089 = vor.u32 %v5088, %v5084
      %v5090 = vrot.slane %v5089, 4
      %v5092 = vshll.u32 %v4795, 16
      %v5094 = vrot.slane %v5092, 5
      %v5095 = vsel %vm1055, %v5090, %v5094
      %v5097 = vshrl.u32 %v4796, 16
      %v5099 = vrot.slane %v5097, 4
      %v5100 = vshll.u32 %v4796, 16
      %v5102 = vrot.slane %v5100, 5
      %v5103 = vor.u32 %v5099, %v5102
      %v5104 = vrot.slane %v5103, 4
      %v5106 = vshll.u32 %v4797, 16
      %v5108 = vrot.slane %v5106, 5
      %v5109 = vsel %vm1055, %v5104, %v5108
      %v5110 = vshrl.u32 %v4797, 16
      %v5112 = vrot.slane %v5110, 4
      %v5113 = vor.u32 %v5112, %v5108
      %v5114 = vrot.slane %v5113, 4
      %v5116 = vshll.u32 %v4798, 16
      %v5118 = vrot.slane %v5116, 5
      %v5119 = vsel %vm1055, %v5114, %v5118
      %v5121 = vshrl.u32 %v4799, 16
      %v5123 = vrot.slane %v5121, 4
      %v5124 = vshll.u32 %v4799, 16
      %v5126 = vrot.slane %v5124, 5
      %v5127 = vor.u32 %v5123, %v5126
      %v5128 = vrot.slane %v5127, 4
      %v5130 = vshll.u32 %v4800, 16
      %v5132 = vrot.slane %v5130, 5
      %v5133 = vsel %vm1055, %v5128, %v5132
      %v5134 = vshrl.u32 %v4800, 16
      %v5136 = vrot.slane %v5134, 4
      %v5137 = vor.u32 %v5136, %v5132
      %v5138 = vrot.slane %v5137, 4
      %v5140 = vshll.u32 %v4801, 16
      %v5142 = vrot.slane %v5140, 5
      %v5143 = vsel %vm1055, %v5138, %v5142
      %v5145 = vshrl.u32 %v4802, 16
      %v5147 = vrot.slane %v5145, 4
      %v5148 = vshll.u32 %v4802, 16
      %v5150 = vrot.slane %v5148, 5
      %v5151 = vor.u32 %v5147, %v5150
      %v5152 = vrot.slane %v5151, 4
      %v5154 = vshll.u32 %v4803, 16
      %v5156 = vrot.slane %v5154, 5
      %v5157 = vsel %vm1055, %v5152, %v5156
      %v5158 = vshrl.u32 %v4803, 16
      %v5160 = vrot.slane %v5158, 4
      %v5161 = vor.u32 %v5160, %v5156
      %v5162 = vrot.slane %v5161, 4
      %v5164 = vshll.u32 %v4804, 16
      %v5166 = vrot.slane %v5164, 5
      %v5167 = vsel %vm1055, %v5162, %v5166
      %v5169 = vshrl.u32 %v4805, 16
      %v5171 = vrot.slane %v5169, 4
      %v5172 = vshll.u32 %v4805, 16
      %v5174 = vrot.slane %v5172, 5
      %v5175 = vor.u32 %v5171, %v5174
      %v5176 = vrot.slane %v5175, 4
      %v5178 = vshll.u32 %v4806, 16
      %v5180 = vrot.slane %v5178, 5
      %v5181 = vsel %vm1055, %v5176, %v5180
      %v5182 = vshrl.u32 %v4806, 16
      %v5184 = vrot.slane %v5182, 4
      %v5185 = vor.u32 %v5184, %v5180
      %v5186 = vrot.slane %v5185, 4
      %v5188 = vshll.u32 %v4807, 16
      %v5190 = vrot.slane %v5188, 5
      %v5191 = vsel %vm1055, %v5186, %v5190
      %s5192 = scalar_lea.vmem %s2, 28
      %v5193 = vld [vmem:[%s5192] sm:$0xf]
      %v5194 = vunpack.c.l.b16 %v4821
      %v5195 = vunpack.c.l.b16 %v4831
      %v5196 = vunpack.c.l.b16 %v4845
      %v5197 = vunpack.c.l.b16 %v4855
      %v5198 = vunpack.c.l.b16 %v4869
      %v5199 = vunpack.c.l.b16 %v4879
      %v5200 = vunpack.c.l.b16 %v4893
      %v5201 = vunpack.c.l.b16 %v4903
      %v5202 = vunpack.c.l.b16 %v4917
      %v5203 = vunpack.c.l.b16 %v4927
      %v5204 = vunpack.c.l.b16 %v4941
      %v5205 = vunpack.c.l.b16 %v4951
      %v5206 = vunpack.c.l.b16 %v4965
      %v5207 = vunpack.c.l.b16 %v4975
      %v5208 = vunpack.c.l.b16 %v4989
      %v5209 = vunpack.c.l.b16 %v4999
      %v5210 = vunpack.c.l.b16 %v5013
      %v5211 = vunpack.c.l.b16 %v5023
      %v5212 = vunpack.c.l.b16 %v5037
      %v5213 = vunpack.c.l.b16 %v5047
      %v5214 = vunpack.c.l.b16 %v5061
      %v5215 = vunpack.c.l.b16 %v5071
      %v5216 = vunpack.c.l.b16 %v5085
      %v5217 = vunpack.c.l.b16 %v5095
      %v5218 = vunpack.c.l.b16 %v5109
      %v5219 = vunpack.c.l.b16 %v5119
      %v5220 = vunpack.c.l.b16 %v5133
      %v5221 = vunpack.c.l.b16 %v5143
      %v5222 = vunpack.c.l.b16 %v5157
      %v5223 = vunpack.c.l.b16 %v5167
      %v5224 = vunpack.c.l.b16 %v5181
      %v5225 = vunpack.c.l.b16 %v5191
      %v5226 = vpack.c.b16 %v5195, %v5194
      %v5227 = vpack.c.b16 %v5197, %v5196
      %v5228 = vpack.c.b16 %v5199, %v5198
      %v5229 = vpack.c.b16 %v5201, %v5200
      %v5230 = vpack.c.b16 %v5203, %v5202
      %v5231 = vpack.c.b16 %v5205, %v5204
      %v5232 = vpack.c.b16 %v5207, %v5206
      %v5233 = vpack.c.b16 %v5209, %v5208
      %v5234 = vpack.c.b16 %v5211, %v5210
      %v5235 = vpack.c.b16 %v5213, %v5212
      %v5236 = vpack.c.b16 %v5215, %v5214
      %v5237 = vpack.c.b16 %v5217, %v5216
      %v5238 = vpack.c.b16 %v5219, %v5218
      %v5239 = vpack.c.b16 %v5221, %v5220
      %v5240 = vpack.c.b16 %v5223, %v5222
      %v5241 = vpack.c.b16 %v5225, %v5224
      %5243 = vst [vmem:[#allocation1] ss:$4 sm:$0xff] %v5193
      %v5244 = vld.sshfl [vmem:[#allocation1] sm:$0xff pattern:$0x73625140]
      %v5245 = vld.sshfl [vmem:[#allocation1 + $0x8] sm:$0xff pattern:$0x73625140]
      %v5247 = vsel %vm1494, %v5226, 0
      %v5250 = vsel %vm1494, %v5227, 0
      %v5253 = vsel %vm1494, %v5228, 0
      %v5256 = vsel %vm1494, %v5229, 0
      %v5259 = vsel %vm1494, %v5230, 0
      %v5262 = vsel %vm1494, %v5231, 0
      %v5265 = vsel %vm1494, %v5232, 0
      %v5268 = vsel %vm1494, %v5233, 0
      %v5271 = vsel %vm1494, %v5234, 0
      %v5274 = vsel %vm1494, %v5235, 0
      %v5277 = vsel %vm1494, %v5236, 0
      %v5280 = vsel %vm1494, %v5237, 0
      %v5283 = vsel %vm1494, %v5238, 0
      %v5286 = vsel %vm1494, %v5239, 0
      %v5289 = vsel %vm1494, %v5240, 0
      %v5292 = vsel %vm1494, %v5241, 0
      %v5294 = vsel %vm1543, %v5244, 0
      %v5296 = vsel %vm1543, %v5245, 0
      %5298 = vmatpush.bf16.msra.mxu0 0
      %5299 = vmatpush.bf16.msra.mxu0 0
      %5300 = vmatpush.bf16.msra.mxu0 0
      %5301 = vmatpush.bf16.msra.mxu0 0
      %5302 = vmatpush.bf16.msra.mxu0 0
      %5303 = vmatpush.bf16.msra.mxu0 0
      %5304 = vmatpush.bf16.msra.mxu0 0
      %5305 = vmatpush.bf16.msra.mxu0 %v5294
      %5306 = vmatmul.bf16.gmra.mxu0 %v5247
      %v5307 = vpop.f32.mrf.mxu0
      %v5308 = vadd.f32 0.0, %v5307
      %v5309 = vpop.f32.mrf.mxu0
      %v5310 = vadd.f32 0.0, %v5309
      %5311 = vmatmul.bf16.gmra.mxu0 %v5250
      %v5312 = vpop.f32.mrf.mxu0
      %v5313 = vadd.f32 0.0, %v5312
      %v5314 = vpop.f32.mrf.mxu0
      %v5315 = vadd.f32 0.0, %v5314
      %5316 = vmatmul.bf16.gmra.mxu0 %v5253
      %v5317 = vpop.f32.mrf.mxu0
      %v5318 = vadd.f32 0.0, %v5317
      %v5319 = vpop.f32.mrf.mxu0
      %v5320 = vadd.f32 0.0, %v5319
      %5321 = vmatmul.bf16.gmra.mxu0 %v5256
      %v5322 = vpop.f32.mrf.mxu0
      %v5323 = vadd.f32 0.0, %v5322
      %v5324 = vpop.f32.mrf.mxu0
      %v5325 = vadd.f32 0.0, %v5324
      %5326 = vmatmul.bf16.gmra.mxu0 %v5259
      %v5327 = vpop.f32.mrf.mxu0
      %v5328 = vadd.f32 0.0, %v5327
      %v5329 = vpop.f32.mrf.mxu0
      %v5330 = vadd.f32 0.0, %v5329
      %5331 = vmatmul.bf16.gmra.mxu0 %v5262
      %v5332 = vpop.f32.mrf.mxu0
      %v5333 = vadd.f32 0.0, %v5332
      %v5334 = vpop.f32.mrf.mxu0
      %v5335 = vadd.f32 0.0, %v5334
      %5336 = vmatmul.bf16.gmra.mxu0 %v5265
      %v5337 = vpop.f32.mrf.mxu0
      %v5338 = vadd.f32 0.0, %v5337
      %v5339 = vpop.f32.mrf.mxu0
      %v5340 = vadd.f32 0.0, %v5339
      %5341 = vmatmul.bf16.gmra.mxu0 %v5268
      %v5342 = vpop.f32.mrf.mxu0
      %v5343 = vadd.f32 0.0, %v5342
      %v5344 = vpop.f32.mrf.mxu0
      %v5345 = vadd.f32 0.0, %v5344
      %5346 = vmatmul.bf16.gmra.mxu0 %v5271
      %v5347 = vpop.f32.mrf.mxu0
      %v5348 = vadd.f32 0.0, %v5347
      %v5349 = vpop.f32.mrf.mxu0
      %v5350 = vadd.f32 0.0, %v5349
      %5351 = vmatmul.bf16.gmra.mxu0 %v5274
      %v5352 = vpop.f32.mrf.mxu0
      %v5353 = vadd.f32 0.0, %v5352
      %v5354 = vpop.f32.mrf.mxu0
      %v5355 = vadd.f32 0.0, %v5354
      %5356 = vmatmul.bf16.gmra.mxu0 %v5277
      %v5357 = vpop.f32.mrf.mxu0
      %v5358 = vadd.f32 0.0, %v5357
      %v5359 = vpop.f32.mrf.mxu0
      %v5360 = vadd.f32 0.0, %v5359
      %5361 = vmatmul.bf16.gmra.mxu0 %v5280
      %v5362 = vpop.f32.mrf.mxu0
      %v5363 = vadd.f32 0.0, %v5362
      %v5364 = vpop.f32.mrf.mxu0
      %v5365 = vadd.f32 0.0, %v5364
      %5366 = vmatmul.bf16.gmra.mxu0 %v5283
      %v5367 = vpop.f32.mrf.mxu0
      %v5368 = vadd.f32 0.0, %v5367
      %v5369 = vpop.f32.mrf.mxu0
      %v5370 = vadd.f32 0.0, %v5369
      %5371 = vmatmul.bf16.gmra.mxu0 %v5286
      %v5372 = vpop.f32.mrf.mxu0
      %v5373 = vadd.f32 0.0, %v5372
      %v5374 = vpop.f32.mrf.mxu0
      %v5375 = vadd.f32 0.0, %v5374
      %5376 = vmatmul.bf16.gmra.mxu0 %v5289
      %v5377 = vpop.f32.mrf.mxu0
      %v5378 = vadd.f32 0.0, %v5377
      %v5379 = vpop.f32.mrf.mxu0
      %v5380 = vadd.f32 0.0, %v5379
      %5381 = vmatmul.bf16.gmra.mxu0 %v5292
      %v5382 = vpop.f32.mrf.mxu0
      %v5383 = vadd.f32 0.0, %v5382
      %v5384 = vpop.f32.mrf.mxu0
      %v5385 = vadd.f32 0.0, %v5384
      %5386 = vdwg.mxu0
      %5387 = vmatpush.bf16.msra.mxu0 0
      %5388 = vmatpush.bf16.msra.mxu0 0
      %5389 = vmatpush.bf16.msra.mxu0 0
      %5390 = vmatpush.bf16.msra.mxu0 0
      %5391 = vmatpush.bf16.msra.mxu0 0
      %5392 = vmatpush.bf16.msra.mxu0 0
      %5393 = vmatpush.bf16.msra.mxu0 0
      %5394 = vmatpush.bf16.msra.mxu0 %v5296
      %5395 = vmatmul.bf16.gmra.mxu0 %v5247
      %v5396 = vpop.f32.mrf.mxu0
      %v5397 = vadd.f32 0.0, %v5396
      %v5398 = vpop.f32.mrf.mxu0
      %v5399 = vadd.f32 0.0, %v5398
      %5400 = vmatmul.bf16.gmra.mxu0 %v5250
      %v5401 = vpop.f32.mrf.mxu0
      %v5402 = vadd.f32 0.0, %v5401
      %v5403 = vpop.f32.mrf.mxu0
      %v5404 = vadd.f32 0.0, %v5403
      %5405 = vmatmul.bf16.gmra.mxu0 %v5253
      %v5406 = vpop.f32.mrf.mxu0
      %v5407 = vadd.f32 0.0, %v5406
      %v5408 = vpop.f32.mrf.mxu0
      %v5409 = vadd.f32 0.0, %v5408
      %5410 = vmatmul.bf16.gmra.mxu0 %v5256
      %v5411 = vpop.f32.mrf.mxu0
      %v5412 = vadd.f32 0.0, %v5411
      %v5413 = vpop.f32.mrf.mxu0
      %v5414 = vadd.f32 0.0, %v5413
      %5415 = vmatmul.bf16.gmra.mxu0 %v5259
      %v5416 = vpop.f32.mrf.mxu0
      %v5417 = vadd.f32 0.0, %v5416
      %v5418 = vpop.f32.mrf.mxu0
      %v5419 = vadd.f32 0.0, %v5418
      %5420 = vmatmul.bf16.gmra.mxu0 %v5262
      %v5421 = vpop.f32.mrf.mxu0
      %v5422 = vadd.f32 0.0, %v5421
      %v5423 = vpop.f32.mrf.mxu0
      %v5424 = vadd.f32 0.0, %v5423
      %5425 = vmatmul.bf16.gmra.mxu0 %v5265
      %v5426 = vpop.f32.mrf.mxu0
      %v5427 = vadd.f32 0.0, %v5426
      %v5428 = vpop.f32.mrf.mxu0
      %v5429 = vadd.f32 0.0, %v5428
      %5430 = vmatmul.bf16.gmra.mxu0 %v5268
      %v5431 = vpop.f32.mrf.mxu0
      %v5432 = vadd.f32 0.0, %v5431
      %v5433 = vpop.f32.mrf.mxu0
      %v5434 = vadd.f32 0.0, %v5433
      %5435 = vmatmul.bf16.gmra.mxu0 %v5271
      %v5436 = vpop.f32.mrf.mxu0
      %v5437 = vadd.f32 0.0, %v5436
      %v5438 = vpop.f32.mrf.mxu0
      %v5439 = vadd.f32 0.0, %v5438
      %5440 = vmatmul.bf16.gmra.mxu0 %v5274
      %v5441 = vpop.f32.mrf.mxu0
      %v5442 = vadd.f32 0.0, %v5441
      %v5443 = vpop.f32.mrf.mxu0
      %v5444 = vadd.f32 0.0, %v5443
      %5445 = vmatmul.bf16.gmra.mxu0 %v5277
      %v5446 = vpop.f32.mrf.mxu0
      %v5447 = vadd.f32 0.0, %v5446
      %v5448 = vpop.f32.mrf.mxu0
      %v5449 = vadd.f32 0.0, %v5448
      %5450 = vmatmul.bf16.gmra.mxu0 %v5280
      %v5451 = vpop.f32.mrf.mxu0
      %v5452 = vadd.f32 0.0, %v5451
      %v5453 = vpop.f32.mrf.mxu0
      %v5454 = vadd.f32 0.0, %v5453
      %5455 = vmatmul.bf16.gmra.mxu0 %v5283
      %v5456 = vpop.f32.mrf.mxu0
      %v5457 = vadd.f32 0.0, %v5456
      %v5458 = vpop.f32.mrf.mxu0
      %v5459 = vadd.f32 0.0, %v5458
      %5460 = vmatmul.bf16.gmra.mxu0 %v5286
      %v5461 = vpop.f32.mrf.mxu0
      %v5462 = vadd.f32 0.0, %v5461
      %v5463 = vpop.f32.mrf.mxu0
      %v5464 = vadd.f32 0.0, %v5463
      %5465 = vmatmul.bf16.gmra.mxu0 %v5289
      %v5466 = vpop.f32.mrf.mxu0
      %v5467 = vadd.f32 0.0, %v5466
      %v5468 = vpop.f32.mrf.mxu0
      %v5469 = vadd.f32 0.0, %v5468
      %5470 = vmatmul.bf16.gmra.mxu0 %v5292
      %v5471 = vpop.f32.mrf.mxu0
      %v5472 = vadd.f32 0.0, %v5471
      %v5473 = vpop.f32.mrf.mxu0
      %v5474 = vadd.f32 0.0, %v5473
      %5475 = vdwg.mxu0
      %v5476 = vadd.f32 %v4696, %v5308
      %v5477 = vadd.f32 %v4697, %v5397
      %v5478 = vadd.f32 %v4698, %v5310
      %v5479 = vadd.f32 %v4699, %v5399
      %v5480 = vadd.f32 %v4700, %v5313
      %v5481 = vadd.f32 %v4701, %v5402
      %v5482 = vadd.f32 %v4702, %v5315
      %v5483 = vadd.f32 %v4703, %v5404
      %v5484 = vadd.f32 %v4704, %v5318
      %v5485 = vadd.f32 %v4705, %v5407
      %v5486 = vadd.f32 %v4706, %v5320
      %v5487 = vadd.f32 %v4707, %v5409
      %v5488 = vadd.f32 %v4708, %v5323
      %v5489 = vadd.f32 %v4709, %v5412
      %v5490 = vadd.f32 %v4710, %v5325
      %v5491 = vadd.f32 %v4711, %v5414
      %v5492 = vadd.f32 %v4712, %v5328
      %v5493 = vadd.f32 %v4713, %v5417
      %v5494 = vadd.f32 %v4714, %v5330
      %v5495 = vadd.f32 %v4715, %v5419
      %v5496 = vadd.f32 %v4716, %v5333
      %v5497 = vadd.f32 %v4717, %v5422
      %v5498 = vadd.f32 %v4718, %v5335
      %v5499 = vadd.f32 %v4719, %v5424
      %v5500 = vadd.f32 %v4720, %v5338
      %v5501 = vadd.f32 %v4721, %v5427
      %v5502 = vadd.f32 %v4722, %v5340
      %v5503 = vadd.f32 %v4723, %v5429
      %v5504 = vadd.f32 %v4724, %v5343
      %v5505 = vadd.f32 %v4725, %v5432
      %v5506 = vadd.f32 %v4726, %v5345
      %v5507 = vadd.f32 %v4727, %v5434
      %v5508 = vadd.f32 %v4728, %v5348
      %v5509 = vadd.f32 %v4729, %v5437
      %v5510 = vadd.f32 %v4730, %v5350
      %v5511 = vadd.f32 %v4731, %v5439
      %v5512 = vadd.f32 %v4732, %v5353
      %v5513 = vadd.f32 %v4733, %v5442
      %v5514 = vadd.f32 %v4734, %v5355
      %v5515 = vadd.f32 %v4735, %v5444
      %v5516 = vadd.f32 %v4736, %v5358
      %v5517 = vadd.f32 %v4737, %v5447
      %v5518 = vadd.f32 %v4738, %v5360
      %v5519 = vadd.f32 %v4739, %v5449
      %v5520 = vadd.f32 %v4740, %v5363
      %v5521 = vadd.f32 %v4741, %v5452
      %v5522 = vadd.f32 %v4742, %v5365
      %v5523 = vadd.f32 %v4743, %v5454
      %v5524 = vadd.f32 %v4744, %v5368
      %v5525 = vadd.f32 %v4745, %v5457
      %v5526 = vadd.f32 %v4746, %v5370
      %v5527 = vadd.f32 %v4747, %v5459
      %v5528 = vadd.f32 %v4748, %v5373
      %v5529 = vadd.f32 %v4749, %v5462
      %v5530 = vadd.f32 %v4750, %v5375
      %v5531 = vadd.f32 %v4751, %v5464
      %v5532 = vadd.f32 %v4752, %v5378
      %v5533 = vadd.f32 %v4753, %v5467
      %v5534 = vadd.f32 %v4754, %v5380
      %v5535 = vadd.f32 %v4755, %v5469
      %v5536 = vadd.f32 %v4756, %v5383
      %v5537 = vadd.f32 %v4757, %v5472
      %v5538 = vadd.f32 %v4758, %v5385
      %v5539 = vadd.f32 %v4759, %v5474
      %v5540 = vld [vmem:[%s4347] sm:$0xe]
      %v5541 = vld [vmem:[%s4347 + $0x4] sm:$0xf]
      %v5542 = vld [vmem:[%s4347 + $0x8] sm:$0x1]
      %v5543 = vld [vmem:[%s4347 + $0xc] sm:$0xe]
      %v5544 = vld [vmem:[%s4347 + $0x10] sm:$0xf]
      %v5545 = vld [vmem:[%s4347 + $0x14] sm:$0x1]
      %v5546 = vld [vmem:[%s4347 + $0x18] sm:$0xe]
      %v5547 = vld [vmem:[%s4347 + $0x1c] sm:$0xf]
      %v5548 = vld [vmem:[%s4347 + $0x20] sm:$0x1]
      %v5549 = vld [vmem:[%s4347 + $0x24] sm:$0xe]
      %v5550 = vld [vmem:[%s4347 + $0x28] sm:$0xf]
      %v5551 = vld [vmem:[%s4347 + $0x2c] sm:$0x1]
      %v5552 = vld [vmem:[%s4347 + $0x30] sm:$0xe]
      %v5553 = vld [vmem:[%s4347 + $0x34] sm:$0xf]
      %v5554 = vld [vmem:[%s4347 + $0x38] sm:$0x1]
      %v5555 = vld [vmem:[%s4347 + $0x3c] sm:$0xe]
      %v5556 = vld [vmem:[%s4347 + $0x40] sm:$0xf]
      %v5557 = vld [vmem:[%s4347 + $0x44] sm:$0x1]
      %v5558 = vld [vmem:[%s4347 + $0x48] sm:$0xe]
      %v5559 = vld [vmem:[%s4347 + $0x4c] sm:$0xf]
      %v5560 = vld [vmem:[%s4347 + $0x50] sm:$0x1]
      %v5561 = vld [vmem:[%s4347 + $0x54] sm:$0xe]
      %v5562 = vld [vmem:[%s4347 + $0x58] sm:$0xf]
      %v5563 = vld [vmem:[%s4347 + $0x5c] sm:$0x1]
      %v5564 = vld [vmem:[%s4347 + $0x60] sm:$0xe]
      %v5565 = vld [vmem:[%s4347 + $0x64] sm:$0xf]
      %v5566 = vld [vmem:[%s4347 + $0x68] sm:$0x1]
      %v5567 = vld [vmem:[%s4347 + $0x6c] sm:$0xe]
      %v5568 = vld [vmem:[%s4347 + $0x70] sm:$0xf]
      %v5569 = vld [vmem:[%s4347 + $0x74] sm:$0x1]
      %v5570 = vld [vmem:[%s4347 + $0x78] sm:$0xe]
      %v5571 = vld [vmem:[%s4347 + $0x7c] sm:$0xf]
      %v5572 = vld [vmem:[%s4347 + $0x80] sm:$0x1]
      %v5573 = vld [vmem:[%s4347 + $0x84] sm:$0xe]
      %v5574 = vld [vmem:[%s4347 + $0x88] sm:$0xf]
      %v5575 = vld [vmem:[%s4347 + $0x8c] sm:$0x1]
      %v5576 = vld [vmem:[%s4347 + $0x90] sm:$0xe]
      %v5577 = vld [vmem:[%s4347 + $0x94] sm:$0xf]
      %v5578 = vld [vmem:[%s4347 + $0x98] sm:$0x1]
      %v5579 = vld [vmem:[%s4347 + $0x9c] sm:$0xe]
      %v5580 = vld [vmem:[%s4347 + $0xa0] sm:$0xf]
      %v5581 = vld [vmem:[%s4347 + $0xa4] sm:$0x1]
      %v5582 = vld [vmem:[%s4347 + $0xa8] sm:$0xe]
      %v5583 = vld [vmem:[%s4347 + $0xac] sm:$0xf]
      %v5584 = vld [vmem:[%s4347 + $0xb0] sm:$0x1]
      %v5585 = vld [vmem:[%s4347 + $0xb4] sm:$0xe]
      %v5586 = vld [vmem:[%s4347 + $0xb8] sm:$0xf]
      %v5587 = vld [vmem:[%s4347 + $0xbc] sm:$0x1]
      %v5636 = vrot.slane %v5540, 5
      %v5637 = vrot.slane %v5636, 4
      %v5638 = vrot.slane %v5541, 5
      %v5639 = vsel %vm2138, %v5637, %v5638
      %v5640 = vrot.slane %v5638, 4
      %v5641 = vrot.slane %v5542, 5
      %v5642 = vsel %vm2138, %v5640, %v5641
      %v5643 = vrot.slane %v5543, 5
      %v5644 = vrot.slane %v5643, 4
      %v5645 = vrot.slane %v5544, 5
      %v5646 = vsel %vm2138, %v5644, %v5645
      %v5647 = vrot.slane %v5645, 4
      %v5648 = vrot.slane %v5545, 5
      %v5649 = vsel %vm2138, %v5647, %v5648
      %v5650 = vrot.slane %v5546, 5
      %v5651 = vrot.slane %v5650, 4
      %v5652 = vrot.slane %v5547, 5
      %v5653 = vsel %vm2138, %v5651, %v5652
      %v5654 = vrot.slane %v5652, 4
      %v5655 = vrot.slane %v5548, 5
      %v5656 = vsel %vm2138, %v5654, %v5655
      %v5657 = vrot.slane %v5549, 5
      %v5658 = vrot.slane %v5657, 4
      %v5659 = vrot.slane %v5550, 5
      %v5660 = vsel %vm2138, %v5658, %v5659
      %v5661 = vrot.slane %v5659, 4
      %v5662 = vrot.slane %v5551, 5
      %v5663 = vsel %vm2138, %v5661, %v5662
      %v5664 = vrot.slane %v5552, 5
      %v5665 = vrot.slane %v5664, 4
      %v5666 = vrot.slane %v5553, 5
      %v5667 = vsel %vm2138, %v5665, %v5666
      %v5668 = vrot.slane %v5666, 4
      %v5669 = vrot.slane %v5554, 5
      %v5670 = vsel %vm2138, %v5668, %v5669
      %v5671 = vrot.slane %v5555, 5
      %v5672 = vrot.slane %v5671, 4
      %v5673 = vrot.slane %v5556, 5
      %v5674 = vsel %vm2138, %v5672, %v5673
      %v5675 = vrot.slane %v5673, 4
      %v5676 = vrot.slane %v5557, 5
      %v5677 = vsel %vm2138, %v5675, %v5676
      %v5678 = vrot.slane %v5558, 5
      %v5679 = vrot.slane %v5678, 4
      %v5680 = vrot.slane %v5559, 5
      %v5681 = vsel %vm2138, %v5679, %v5680
      %v5682 = vrot.slane %v5680, 4
      %v5683 = vrot.slane %v5560, 5
      %v5684 = vsel %vm2138, %v5682, %v5683
      %v5685 = vrot.slane %v5561, 5
      %v5686 = vrot.slane %v5685, 4
      %v5687 = vrot.slane %v5562, 5
      %v5688 = vsel %vm2138, %v5686, %v5687
      %v5689 = vrot.slane %v5687, 4
      %v5690 = vrot.slane %v5563, 5
      %v5691 = vsel %vm2138, %v5689, %v5690
      %v5692 = vrot.slane %v5564, 5
      %v5693 = vrot.slane %v5692, 4
      %v5694 = vrot.slane %v5565, 5
      %v5695 = vsel %vm2138, %v5693, %v5694
      %v5696 = vrot.slane %v5694, 4
      %v5697 = vrot.slane %v5566, 5
      %v5698 = vsel %vm2138, %v5696, %v5697
      %v5699 = vrot.slane %v5567, 5
      %v5700 = vrot.slane %v5699, 4
      %v5701 = vrot.slane %v5568, 5
      %v5702 = vsel %vm2138, %v5700, %v5701
      %v5703 = vrot.slane %v5701, 4
      %v5704 = vrot.slane %v5569, 5
      %v5705 = vsel %vm2138, %v5703, %v5704
      %v5706 = vrot.slane %v5570, 5
      %v5707 = vrot.slane %v5706, 4
      %v5708 = vrot.slane %v5571, 5
      %v5709 = vsel %vm2138, %v5707, %v5708
      %v5710 = vrot.slane %v5708, 4
      %v5711 = vrot.slane %v5572, 5
      %v5712 = vsel %vm2138, %v5710, %v5711
      %v5713 = vrot.slane %v5573, 5
      %v5714 = vrot.slane %v5713, 4
      %v5715 = vrot.slane %v5574, 5
      %v5716 = vsel %vm2138, %v5714, %v5715
      %v5717 = vrot.slane %v5715, 4
      %v5718 = vrot.slane %v5575, 5
      %v5719 = vsel %vm2138, %v5717, %v5718
      %v5720 = vrot.slane %v5576, 5
      %v5721 = vrot.slane %v5720, 4
      %v5722 = vrot.slane %v5577, 5
      %v5723 = vsel %vm2138, %v5721, %v5722
      %v5724 = vrot.slane %v5722, 4
      %v5725 = vrot.slane %v5578, 5
      %v5726 = vsel %vm2138, %v5724, %v5725
      %v5727 = vrot.slane %v5579, 5
      %v5728 = vrot.slane %v5727, 4
      %v5729 = vrot.slane %v5580, 5
      %v5730 = vsel %vm2138, %v5728, %v5729
      %v5731 = vrot.slane %v5729, 4
      %v5732 = vrot.slane %v5581, 5
      %v5733 = vsel %vm2138, %v5731, %v5732
      %v5734 = vrot.slane %v5582, 5
      %v5735 = vrot.slane %v5734, 4
      %v5736 = vrot.slane %v5583, 5
      %v5737 = vsel %vm2138, %v5735, %v5736
      %v5738 = vrot.slane %v5736, 4
      %v5739 = vrot.slane %v5584, 5
      %v5740 = vsel %vm2138, %v5738, %v5739
      %v5741 = vrot.slane %v5585, 5
      %v5742 = vrot.slane %v5741, 4
      %v5743 = vrot.slane %v5586, 5
      %v5744 = vsel %vm2138, %v5742, %v5743
      %v5745 = vrot.slane %v5743, 4
      %v5746 = vrot.slane %v5587, 5
      %v5747 = vsel %vm2138, %v5745, %v5746
      %s5748 = scalar_lea.vmem %s2, 32
      %v5749 = vld [vmem:[%s5748] sm:$0xf]
      %v5750 = vunpack.c.l.b16 %v5639
      %v5751 = vunpack.c.l.b16 %v5642
      %v5752 = vunpack.c.l.b16 %v5646
      %v5753 = vunpack.c.l.b16 %v5649
      %v5754 = vunpack.c.l.b16 %v5653
      %v5755 = vunpack.c.l.b16 %v5656
      %v5756 = vunpack.c.l.b16 %v5660
      %v5757 = vunpack.c.l.b16 %v5663
      %v5758 = vunpack.c.l.b16 %v5667
      %v5759 = vunpack.c.l.b16 %v5670
      %v5760 = vunpack.c.l.b16 %v5674
      %v5761 = vunpack.c.l.b16 %v5677
      %v5762 = vunpack.c.l.b16 %v5681
      %v5763 = vunpack.c.l.b16 %v5684
      %v5764 = vunpack.c.l.b16 %v5688
      %v5765 = vunpack.c.l.b16 %v5691
      %v5766 = vunpack.c.l.b16 %v5695
      %v5767 = vunpack.c.l.b16 %v5698
      %v5768 = vunpack.c.l.b16 %v5702
      %v5769 = vunpack.c.l.b16 %v5705
      %v5770 = vunpack.c.l.b16 %v5709
      %v5771 = vunpack.c.l.b16 %v5712
      %v5772 = vunpack.c.l.b16 %v5716
      %v5773 = vunpack.c.l.b16 %v5719
      %v5774 = vunpack.c.l.b16 %v5723
      %v5775 = vunpack.c.l.b16 %v5726
      %v5776 = vunpack.c.l.b16 %v5730
      %v5777 = vunpack.c.l.b16 %v5733
      %v5778 = vunpack.c.l.b16 %v5737
      %v5779 = vunpack.c.l.b16 %v5740
      %v5780 = vunpack.c.l.b16 %v5744
      %v5781 = vunpack.c.l.b16 %v5747
      %v5782 = vpack.c.b16 %v5751, %v5750
      %v5783 = vpack.c.b16 %v5753, %v5752
      %v5784 = vpack.c.b16 %v5755, %v5754
      %v5785 = vpack.c.b16 %v5757, %v5756
      %v5786 = vpack.c.b16 %v5759, %v5758
      %v5787 = vpack.c.b16 %v5761, %v5760
      %v5788 = vpack.c.b16 %v5763, %v5762
      %v5789 = vpack.c.b16 %v5765, %v5764
      %v5790 = vpack.c.b16 %v5767, %v5766
      %v5791 = vpack.c.b16 %v5769, %v5768
      %v5792 = vpack.c.b16 %v5771, %v5770
      %v5793 = vpack.c.b16 %v5773, %v5772
      %v5794 = vpack.c.b16 %v5775, %v5774
      %v5795 = vpack.c.b16 %v5777, %v5776
      %v5796 = vpack.c.b16 %v5779, %v5778
      %v5797 = vpack.c.b16 %v5781, %v5780
      %5799 = vst [vmem:[#allocation1] ss:$4 sm:$0xff] %v5749
      %v5800 = vld.sshfl [vmem:[#allocation1] sm:$0xff pattern:$0x73625140]
      %v5801 = vld.sshfl [vmem:[#allocation1 + $0x8] sm:$0xff pattern:$0x73625140]
      %v5803 = vsel %vm1494, %v5782, 0
      %v5806 = vsel %vm1494, %v5783, 0
      %v5809 = vsel %vm1494, %v5784, 0
      %v5812 = vsel %vm1494, %v5785, 0
      %v5815 = vsel %vm1494, %v5786, 0
      %v5818 = vsel %vm1494, %v5787, 0
      %v5821 = vsel %vm1494, %v5788, 0
      %v5824 = vsel %vm1494, %v5789, 0
      %v5827 = vsel %vm1494, %v5790, 0
      %v5830 = vsel %vm1494, %v5791, 0
      %v5833 = vsel %vm1494, %v5792, 0
      %v5836 = vsel %vm1494, %v5793, 0
      %v5839 = vsel %vm1494, %v5794, 0
      %v5842 = vsel %vm1494, %v5795, 0
      %v5845 = vsel %vm1494, %v5796, 0
      %v5848 = vsel %vm1494, %v5797, 0
      %v5850 = vsel %vm1543, %v5800, 0
      %v5852 = vsel %vm1543, %v5801, 0
      %5854 = vmatpush.bf16.msra.mxu0 0
      %5855 = vmatpush.bf16.msra.mxu0 0
      %5856 = vmatpush.bf16.msra.mxu0 0
      %5857 = vmatpush.bf16.msra.mxu0 0
      %5858 = vmatpush.bf16.msra.mxu0 0
      %5859 = vmatpush.bf16.msra.mxu0 0
      %5860 = vmatpush.bf16.msra.mxu0 0
      %5861 = vmatpush.bf16.msra.mxu0 %v5850
      %5862 = vmatmul.bf16.gmra.mxu0 %v5803
      %v5863 = vpop.f32.mrf.mxu0
      %v5864 = vadd.f32 0.0, %v5863
      %v5865 = vpop.f32.mrf.mxu0
      %v5866 = vadd.f32 0.0, %v5865
      %5867 = vmatmul.bf16.gmra.mxu0 %v5806
      %v5868 = vpop.f32.mrf.mxu0
      %v5869 = vadd.f32 0.0, %v5868
      %v5870 = vpop.f32.mrf.mxu0
      %v5871 = vadd.f32 0.0, %v5870
      %5872 = vmatmul.bf16.gmra.mxu0 %v5809
      %v5873 = vpop.f32.mrf.mxu0
      %v5874 = vadd.f32 0.0, %v5873
      %v5875 = vpop.f32.mrf.mxu0
      %v5876 = vadd.f32 0.0, %v5875
      %5877 = vmatmul.bf16.gmra.mxu0 %v5812
      %v5878 = vpop.f32.mrf.mxu0
      %v5879 = vadd.f32 0.0, %v5878
      %v5880 = vpop.f32.mrf.mxu0
      %v5881 = vadd.f32 0.0, %v5880
      %5882 = vmatmul.bf16.gmra.mxu0 %v5815
      %v5883 = vpop.f32.mrf.mxu0
      %v5884 = vadd.f32 0.0, %v5883
      %v5885 = vpop.f32.mrf.mxu0
      %v5886 = vadd.f32 0.0, %v5885
      %5887 = vmatmul.bf16.gmra.mxu0 %v5818
      %v5888 = vpop.f32.mrf.mxu0
      %v5889 = vadd.f32 0.0, %v5888
      %v5890 = vpop.f32.mrf.mxu0
      %v5891 = vadd.f32 0.0, %v5890
      %5892 = vmatmul.bf16.gmra.mxu0 %v5821
      %v5893 = vpop.f32.mrf.mxu0
      %v5894 = vadd.f32 0.0, %v5893
      %v5895 = vpop.f32.mrf.mxu0
      %v5896 = vadd.f32 0.0, %v5895
      %5897 = vmatmul.bf16.gmra.mxu0 %v5824
      %v5898 = vpop.f32.mrf.mxu0
      %v5899 = vadd.f32 0.0, %v5898
      %v5900 = vpop.f32.mrf.mxu0
      %v5901 = vadd.f32 0.0, %v5900
      %5902 = vmatmul.bf16.gmra.mxu0 %v5827
      %v5903 = vpop.f32.mrf.mxu0
      %v5904 = vadd.f32 0.0, %v5903
      %v5905 = vpop.f32.mrf.mxu0
      %v5906 = vadd.f32 0.0, %v5905
      %5907 = vmatmul.bf16.gmra.mxu0 %v5830
      %v5908 = vpop.f32.mrf.mxu0
      %v5909 = vadd.f32 0.0, %v5908
      %v5910 = vpop.f32.mrf.mxu0
      %v5911 = vadd.f32 0.0, %v5910
      %5912 = vmatmul.bf16.gmra.mxu0 %v5833
      %v5913 = vpop.f32.mrf.mxu0
      %v5914 = vadd.f32 0.0, %v5913
      %v5915 = vpop.f32.mrf.mxu0
      %v5916 = vadd.f32 0.0, %v5915
      %5917 = vmatmul.bf16.gmra.mxu0 %v5836
      %v5918 = vpop.f32.mrf.mxu0
      %v5919 = vadd.f32 0.0, %v5918
      %v5920 = vpop.f32.mrf.mxu0
      %v5921 = vadd.f32 0.0, %v5920
      %5922 = vmatmul.bf16.gmra.mxu0 %v5839
      %v5923 = vpop.f32.mrf.mxu0
      %v5924 = vadd.f32 0.0, %v5923
      %v5925 = vpop.f32.mrf.mxu0
      %v5926 = vadd.f32 0.0, %v5925
      %5927 = vmatmul.bf16.gmra.mxu0 %v5842
      %v5928 = vpop.f32.mrf.mxu0
      %v5929 = vadd.f32 0.0, %v5928
      %v5930 = vpop.f32.mrf.mxu0
      %v5931 = vadd.f32 0.0, %v5930
      %5932 = vmatmul.bf16.gmra.mxu0 %v5845
      %v5933 = vpop.f32.mrf.mxu0
      %v5934 = vadd.f32 0.0, %v5933
      %v5935 = vpop.f32.mrf.mxu0
      %v5936 = vadd.f32 0.0, %v5935
      %5937 = vmatmul.bf16.gmra.mxu0 %v5848
      %v5938 = vpop.f32.mrf.mxu0
      %v5939 = vadd.f32 0.0, %v5938
      %v5940 = vpop.f32.mrf.mxu0
      %v5941 = vadd.f32 0.0, %v5940
      %5942 = vdwg.mxu0
      %5943 = vmatpush.bf16.msra.mxu0 0
      %5944 = vmatpush.bf16.msra.mxu0 0
      %5945 = vmatpush.bf16.msra.mxu0 0
      %5946 = vmatpush.bf16.msra.mxu0 0
      %5947 = vmatpush.bf16.msra.mxu0 0
      %5948 = vmatpush.bf16.msra.mxu0 0
      %5949 = vmatpush.bf16.msra.mxu0 0
      %5950 = vmatpush.bf16.msra.mxu0 %v5852
      %5951 = vmatmul.bf16.gmra.mxu0 %v5803
      %v5952 = vpop.f32.mrf.mxu0
      %v5953 = vadd.f32 0.0, %v5952
      %v5954 = vpop.f32.mrf.mxu0
      %v5955 = vadd.f32 0.0, %v5954
      %5956 = vmatmul.bf16.gmra.mxu0 %v5806
      %v5957 = vpop.f32.mrf.mxu0
      %v5958 = vadd.f32 0.0, %v5957
      %v5959 = vpop.f32.mrf.mxu0
      %v5960 = vadd.f32 0.0, %v5959
      %5961 = vmatmul.bf16.gmra.mxu0 %v5809
      %v5962 = vpop.f32.mrf.mxu0
      %v5963 = vadd.f32 0.0, %v5962
      %v5964 = vpop.f32.mrf.mxu0
      %v5965 = vadd.f32 0.0, %v5964
      %5966 = vmatmul.bf16.gmra.mxu0 %v5812
      %v5967 = vpop.f32.mrf.mxu0
      %v5968 = vadd.f32 0.0, %v5967
      %v5969 = vpop.f32.mrf.mxu0
      %v5970 = vadd.f32 0.0, %v5969
      %5971 = vmatmul.bf16.gmra.mxu0 %v5815
      %v5972 = vpop.f32.mrf.mxu0
      %v5973 = vadd.f32 0.0, %v5972
      %v5974 = vpop.f32.mrf.mxu0
      %v5975 = vadd.f32 0.0, %v5974
      %5976 = vmatmul.bf16.gmra.mxu0 %v5818
      %v5977 = vpop.f32.mrf.mxu0
      %v5978 = vadd.f32 0.0, %v5977
      %v5979 = vpop.f32.mrf.mxu0
      %v5980 = vadd.f32 0.0, %v5979
      %5981 = vmatmul.bf16.gmra.mxu0 %v5821
      %v5982 = vpop.f32.mrf.mxu0
      %v5983 = vadd.f32 0.0, %v5982
      %v5984 = vpop.f32.mrf.mxu0
      %v5985 = vadd.f32 0.0, %v5984
      %5986 = vmatmul.bf16.gmra.mxu0 %v5824
      %v5987 = vpop.f32.mrf.mxu0
      %v5988 = vadd.f32 0.0, %v5987
      %v5989 = vpop.f32.mrf.mxu0
      %v5990 = vadd.f32 0.0, %v5989
      %5991 = vmatmul.bf16.gmra.mxu0 %v5827
      %v5992 = vpop.f32.mrf.mxu0
      %v5993 = vadd.f32 0.0, %v5992
      %v5994 = vpop.f32.mrf.mxu0
      %v5995 = vadd.f32 0.0, %v5994
      %5996 = vmatmul.bf16.gmra.mxu0 %v5830
      %v5997 = vpop.f32.mrf.mxu0
      %v5998 = vadd.f32 0.0, %v5997
      %v5999 = vpop.f32.mrf.mxu0
      %v6000 = vadd.f32 0.0, %v5999
      %6001 = vmatmul.bf16.gmra.mxu0 %v5833
      %v6002 = vpop.f32.mrf.mxu0
      %v6003 = vadd.f32 0.0, %v6002
      %v6004 = vpop.f32.mrf.mxu0
      %v6005 = vadd.f32 0.0, %v6004
      %6006 = vmatmul.bf16.gmra.mxu0 %v5836
      %v6007 = vpop.f32.mrf.mxu0
      %v6008 = vadd.f32 0.0, %v6007
      %v6009 = vpop.f32.mrf.mxu0
      %v6010 = vadd.f32 0.0, %v6009
      %6011 = vmatmul.bf16.gmra.mxu0 %v5839
      %v6012 = vpop.f32.mrf.mxu0
      %v6013 = vadd.f32 0.0, %v6012
      %v6014 = vpop.f32.mrf.mxu0
      %v6015 = vadd.f32 0.0, %v6014
      %6016 = vmatmul.bf16.gmra.mxu0 %v5842
      %v6017 = vpop.f32.mrf.mxu0
      %v6018 = vadd.f32 0.0, %v6017
      %v6019 = vpop.f32.mrf.mxu0
      %v6020 = vadd.f32 0.0, %v6019
      %6021 = vmatmul.bf16.gmra.mxu0 %v5845
      %v6022 = vpop.f32.mrf.mxu0
      %v6023 = vadd.f32 0.0, %v6022
      %v6024 = vpop.f32.mrf.mxu0
      %v6025 = vadd.f32 0.0, %v6024
      %6026 = vmatmul.bf16.gmra.mxu0 %v5848
      %v6027 = vpop.f32.mrf.mxu0
      %v6028 = vadd.f32 0.0, %v6027
      %v6029 = vpop.f32.mrf.mxu0
      %v6030 = vadd.f32 0.0, %v6029
      %6031 = vdwg.mxu0
      %v6032 = vadd.f32 %v5476, %v5864
      %v6033 = vadd.f32 %v5477, %v5953
      %v6034 = vadd.f32 %v5478, %v5866
      %v6035 = vadd.f32 %v5479, %v5955
      %v6036 = vadd.f32 %v5480, %v5869
      %v6037 = vadd.f32 %v5481, %v5958
      %v6038 = vadd.f32 %v5482, %v5871
      %v6039 = vadd.f32 %v5483, %v5960
      %v6040 = vadd.f32 %v5484, %v5874
      %v6041 = vadd.f32 %v5485, %v5963
      %v6042 = vadd.f32 %v5486, %v5876
      %v6043 = vadd.f32 %v5487, %v5965
      %v6044 = vadd.f32 %v5488, %v5879
      %v6045 = vadd.f32 %v5489, %v5968
      %v6046 = vadd.f32 %v5490, %v5881
      %v6047 = vadd.f32 %v5491, %v5970
      %v6048 = vadd.f32 %v5492, %v5884
      %v6049 = vadd.f32 %v5493, %v5973
      %v6050 = vadd.f32 %v5494, %v5886
      %v6051 = vadd.f32 %v5495, %v5975
      %v6052 = vadd.f32 %v5496, %v5889
      %v6053 = vadd.f32 %v5497, %v5978
      %v6054 = vadd.f32 %v5498, %v5891
      %v6055 = vadd.f32 %v5499, %v5980
      %v6056 = vadd.f32 %v5500, %v5894
      %v6057 = vadd.f32 %v5501, %v5983
      %v6058 = vadd.f32 %v5502, %v5896
      %v6059 = vadd.f32 %v5503, %v5985
      %v6060 = vadd.f32 %v5504, %v5899
      %v6061 = vadd.f32 %v5505, %v5988
      %v6062 = vadd.f32 %v5506, %v5901
      %v6063 = vadd.f32 %v5507, %v5990
      %v6064 = vadd.f32 %v5508, %v5904
      %v6065 = vadd.f32 %v5509, %v5993
      %v6066 = vadd.f32 %v5510, %v5906
      %v6067 = vadd.f32 %v5511, %v5995
      %v6068 = vadd.f32 %v5512, %v5909
      %v6069 = vadd.f32 %v5513, %v5998
      %v6070 = vadd.f32 %v5514, %v5911
      %v6071 = vadd.f32 %v5515, %v6000
      %v6072 = vadd.f32 %v5516, %v5914
      %v6073 = vadd.f32 %v5517, %v6003
      %v6074 = vadd.f32 %v5518, %v5916
      %v6075 = vadd.f32 %v5519, %v6005
      %v6076 = vadd.f32 %v5520, %v5919
      %v6077 = vadd.f32 %v5521, %v6008
      %v6078 = vadd.f32 %v5522, %v5921
      %v6079 = vadd.f32 %v5523, %v6010
      %v6080 = vadd.f32 %v5524, %v5924
      %v6081 = vadd.f32 %v5525, %v6013
      %v6082 = vadd.f32 %v5526, %v5926
      %v6083 = vadd.f32 %v5527, %v6015
      %v6084 = vadd.f32 %v5528, %v5929
      %v6085 = vadd.f32 %v5529, %v6018
      %v6086 = vadd.f32 %v5530, %v5931
      %v6087 = vadd.f32 %v5531, %v6020
      %v6088 = vadd.f32 %v5532, %v5934
      %v6089 = vadd.f32 %v5533, %v6023
      %v6090 = vadd.f32 %v5534, %v5936
      %v6091 = vadd.f32 %v5535, %v6025
      %v6092 = vadd.f32 %v5536, %v5939
      %v6093 = vadd.f32 %v5537, %v6028
      %v6094 = vadd.f32 %v5538, %v5941
      %v6095 = vadd.f32 %v5539, %v6030
      %v6096 = vld [vmem:[%s3] sm:$0x3]
      %v6098 = vperm.slane %v6096, 0
      %v6099 = vperm.slane %v6096, 1
      %v6102 = vadd.f32 %v6032, %v6098
      %v6103 = vadd.f32 %v6033, %v6099
      %v6104 = vadd.f32 %v6034, %v6098
      %v6105 = vadd.f32 %v6035, %v6099
      %v6106 = vadd.f32 %v6036, %v6098
      %v6107 = vadd.f32 %v6037, %v6099
      %v6108 = vadd.f32 %v6038, %v6098
      %v6109 = vadd.f32 %v6039, %v6099
      %v6110 = vadd.f32 %v6040, %v6098
      %v6111 = vadd.f32 %v6041, %v6099
      %v6112 = vadd.f32 %v6042, %v6098
      %v6113 = vadd.f32 %v6043, %v6099
      %v6114 = vadd.f32 %v6044, %v6098
      %v6115 = vadd.f32 %v6045, %v6099
      %v6116 = vadd.f32 %v6046, %v6098
      %v6117 = vadd.f32 %v6047, %v6099
      %v6118 = vadd.f32 %v6048, %v6098
      %v6119 = vadd.f32 %v6049, %v6099
      %v6120 = vadd.f32 %v6050, %v6098
      %v6121 = vadd.f32 %v6051, %v6099
      %v6122 = vadd.f32 %v6052, %v6098
      %v6123 = vadd.f32 %v6053, %v6099
      %v6124 = vadd.f32 %v6054, %v6098
      %v6125 = vadd.f32 %v6055, %v6099
      %v6126 = vadd.f32 %v6056, %v6098
      %v6127 = vadd.f32 %v6057, %v6099
      %v6128 = vadd.f32 %v6058, %v6098
      %v6129 = vadd.f32 %v6059, %v6099
      %v6130 = vadd.f32 %v6060, %v6098
      %v6131 = vadd.f32 %v6061, %v6099
      %v6132 = vadd.f32 %v6062, %v6098
      %v6133 = vadd.f32 %v6063, %v6099
      %v6134 = vadd.f32 %v6064, %v6098
      %v6135 = vadd.f32 %v6065, %v6099
      %v6136 = vadd.f32 %v6066, %v6098
      %v6137 = vadd.f32 %v6067, %v6099
      %v6138 = vadd.f32 %v6068, %v6098
      %v6139 = vadd.f32 %v6069, %v6099
      %v6140 = vadd.f32 %v6070, %v6098
      %v6141 = vadd.f32 %v6071, %v6099
      %v6142 = vadd.f32 %v6072, %v6098
      %v6143 = vadd.f32 %v6073, %v6099
      %v6144 = vadd.f32 %v6074, %v6098
      %v6145 = vadd.f32 %v6075, %v6099
      %v6146 = vadd.f32 %v6076, %v6098
      %v6147 = vadd.f32 %v6077, %v6099
      %v6148 = vadd.f32 %v6078, %v6098
      %v6149 = vadd.f32 %v6079, %v6099
      %v6150 = vadd.f32 %v6080, %v6098
      %v6151 = vadd.f32 %v6081, %v6099
      %v6152 = vadd.f32 %v6082, %v6098
      %v6153 = vadd.f32 %v6083, %v6099
      %v6154 = vadd.f32 %v6084, %v6098
      %v6155 = vadd.f32 %v6085, %v6099
      %v6156 = vadd.f32 %v6086, %v6098
      %v6157 = vadd.f32 %v6087, %v6099
      %v6158 = vadd.f32 %v6088, %v6098
      %v6159 = vadd.f32 %v6089, %v6099
      %v6160 = vadd.f32 %v6090, %v6098
      %v6161 = vadd.f32 %v6091, %v6099
      %v6162 = vadd.f32 %v6092, %v6098
      %v6163 = vadd.f32 %v6093, %v6099
      %v6164 = vadd.f32 %v6094, %v6098
      %v6165 = vadd.f32 %v6095, %v6099
      %v6166 = vmax.f32 %v6102, 0.0
      %v6167 = vmax.f32 %v6103, 0.0
      %v6168 = vmax.f32 %v6104, 0.0
      %v6169 = vmax.f32 %v6105, 0.0
      %v6170 = vmax.f32 %v6106, 0.0
      %v6171 = vmax.f32 %v6107, 0.0
      %v6172 = vmax.f32 %v6108, 0.0
      %v6173 = vmax.f32 %v6109, 0.0
      %v6174 = vmax.f32 %v6110, 0.0
      %v6175 = vmax.f32 %v6111, 0.0
      %v6176 = vmax.f32 %v6112, 0.0
      %v6177 = vmax.f32 %v6113, 0.0
      %v6178 = vmax.f32 %v6114, 0.0
      %v6179 = vmax.f32 %v6115, 0.0
      %v6180 = vmax.f32 %v6116, 0.0
      %v6181 = vmax.f32 %v6117, 0.0
      %v6182 = vmax.f32 %v6118, 0.0
      %v6183 = vmax.f32 %v6119, 0.0
      %v6184 = vmax.f32 %v6120, 0.0
      %v6185 = vmax.f32 %v6121, 0.0
      %v6186 = vmax.f32 %v6122, 0.0
      %v6187 = vmax.f32 %v6123, 0.0
      %v6188 = vmax.f32 %v6124, 0.0
      %v6189 = vmax.f32 %v6125, 0.0
      %v6190 = vmax.f32 %v6126, 0.0
      %v6191 = vmax.f32 %v6127, 0.0
      %v6192 = vmax.f32 %v6128, 0.0
      %v6193 = vmax.f32 %v6129, 0.0
      %v6194 = vmax.f32 %v6130, 0.0
      %v6195 = vmax.f32 %v6131, 0.0
      %v6196 = vmax.f32 %v6132, 0.0
      %v6197 = vmax.f32 %v6133, 0.0
      %v6198 = vmax.f32 %v6134, 0.0
      %v6199 = vmax.f32 %v6135, 0.0
      %v6200 = vmax.f32 %v6136, 0.0
      %v6201 = vmax.f32 %v6137, 0.0
      %v6202 = vmax.f32 %v6138, 0.0
      %v6203 = vmax.f32 %v6139, 0.0
      %v6204 = vmax.f32 %v6140, 0.0
      %v6205 = vmax.f32 %v6141, 0.0
      %v6206 = vmax.f32 %v6142, 0.0
      %v6207 = vmax.f32 %v6143, 0.0
      %v6208 = vmax.f32 %v6144, 0.0
      %v6209 = vmax.f32 %v6145, 0.0
      %v6210 = vmax.f32 %v6146, 0.0
      %v6211 = vmax.f32 %v6147, 0.0
      %v6212 = vmax.f32 %v6148, 0.0
      %v6213 = vmax.f32 %v6149, 0.0
      %v6214 = vmax.f32 %v6150, 0.0
      %v6215 = vmax.f32 %v6151, 0.0
      %v6216 = vmax.f32 %v6152, 0.0
      %v6217 = vmax.f32 %v6153, 0.0
      %v6218 = vmax.f32 %v6154, 0.0
      %v6219 = vmax.f32 %v6155, 0.0
      %v6220 = vmax.f32 %v6156, 0.0
      %v6221 = vmax.f32 %v6157, 0.0
      %v6222 = vmax.f32 %v6158, 0.0
      %v6223 = vmax.f32 %v6159, 0.0
      %v6224 = vmax.f32 %v6160, 0.0
      %v6225 = vmax.f32 %v6161, 0.0
      %v6226 = vmax.f32 %v6162, 0.0
      %v6227 = vmax.f32 %v6163, 0.0
      %v6228 = vmax.f32 %v6164, 0.0
      %v6229 = vmax.f32 %v6165, 0.0
      %v6230 = vpack.c.bf16 %v6168, %v6166
      %v6231 = vpack.c.bf16 %v6169, %v6167
      %v6232 = vpack.c.bf16 %v6172, %v6170
      %v6233 = vpack.c.bf16 %v6173, %v6171
      %v6234 = vpack.c.bf16 %v6176, %v6174
      %v6235 = vpack.c.bf16 %v6177, %v6175
      %v6236 = vpack.c.bf16 %v6180, %v6178
      %v6237 = vpack.c.bf16 %v6181, %v6179
      %v6238 = vpack.c.bf16 %v6184, %v6182
      %v6239 = vpack.c.bf16 %v6185, %v6183
      %v6240 = vpack.c.bf16 %v6188, %v6186
      %v6241 = vpack.c.bf16 %v6189, %v6187
      %v6242 = vpack.c.bf16 %v6192, %v6190
      %v6243 = vpack.c.bf16 %v6193, %v6191
      %v6244 = vpack.c.bf16 %v6196, %v6194
      %v6245 = vpack.c.bf16 %v6197, %v6195
      %v6246 = vpack.c.bf16 %v6200, %v6198
      %v6247 = vpack.c.bf16 %v6201, %v6199
      %v6248 = vpack.c.bf16 %v6204, %v6202
      %v6249 = vpack.c.bf16 %v6205, %v6203
      %v6250 = vpack.c.bf16 %v6208, %v6206
      %v6251 = vpack.c.bf16 %v6209, %v6207
      %v6252 = vpack.c.bf16 %v6212, %v6210
      %v6253 = vpack.c.bf16 %v6213, %v6211
      %v6254 = vpack.c.bf16 %v6216, %v6214
      %v6255 = vpack.c.bf16 %v6217, %v6215
      %v6256 = vpack.c.bf16 %v6220, %v6218
      %v6257 = vpack.c.bf16 %v6221, %v6219
      %v6258 = vpack.c.bf16 %v6224, %v6222
      %v6259 = vpack.c.bf16 %v6225, %v6223
      %v6260 = vpack.c.bf16 %v6228, %v6226
      %v6261 = vpack.c.bf16 %v6229, %v6227
      %v6262 = vld [vmem:[%s4] sm:$0xf]
      %v6263 = vld [vmem:[%s4 + $0x4] sm:$0xf]
      %v6264 = vld [vmem:[%s4 + $0x8] sm:$0xf]
      %v6265 = vld [vmem:[%s4 + $0xc] sm:$0xf]
      %v6266 = vld [vmem:[%s4 + $0x10] sm:$0xf]
      %v6267 = vld [vmem:[%s4 + $0x14] sm:$0xf]
      %v6268 = vld [vmem:[%s4 + $0x18] sm:$0xf]
      %v6269 = vld [vmem:[%s4 + $0x1c] sm:$0xf]
      %v6270 = vld [vmem:[%s4 + $0x20] sm:$0xf]
      %v6271 = vld [vmem:[%s4 + $0x24] sm:$0xf]
      %v6272 = vld [vmem:[%s4 + $0x28] sm:$0xf]
      %v6273 = vld [vmem:[%s4 + $0x2c] sm:$0xf]
      %v6274 = vld [vmem:[%s4 + $0x30] sm:$0xf]
      %v6275 = vld [vmem:[%s4 + $0x34] sm:$0xf]
      %v6276 = vld [vmem:[%s4 + $0x38] sm:$0xf]
      %v6277 = vld [vmem:[%s4 + $0x3c] sm:$0xf]
      %v6278 = vld [vmem:[%s4 + $0x40] sm:$0xf]
      %v6279 = vld [vmem:[%s4 + $0x44] sm:$0xf]
      %v6280 = vld [vmem:[%s4 + $0x48] sm:$0xf]
      %v6281 = vld [vmem:[%s4 + $0x4c] sm:$0xf]
      %v6282 = vld [vmem:[%s4 + $0x50] sm:$0xf]
      %v6283 = vld [vmem:[%s4 + $0x54] sm:$0xf]
      %v6284 = vld [vmem:[%s4 + $0x58] sm:$0xf]
      %v6285 = vld [vmem:[%s4 + $0x5c] sm:$0xf]
      %v6286 = vld [vmem:[%s4 + $0x60] sm:$0xf]
      %v6287 = vld [vmem:[%s4 + $0x64] sm:$0xf]
      %v6288 = vld [vmem:[%s4 + $0x68] sm:$0xf]
      %v6289 = vld [vmem:[%s4 + $0x6c] sm:$0xf]
      %v6290 = vld [vmem:[%s4 + $0x70] sm:$0xf]
      %v6291 = vld [vmem:[%s4 + $0x74] sm:$0xf]
      %v6292 = vld [vmem:[%s4 + $0x78] sm:$0xf]
      %v6293 = vld [vmem:[%s4 + $0x7c] sm:$0xf]
      %v6294 = vld [vmem:[%s5] sm:$0x1]
      %v6296 = vperm.slane %v6294, 0
      %v6330 = vunpack.c.l.b16 %v6262
      %v6331 = vunpack.c.l.b16 %v6263
      %v6332 = vunpack.c.l.b16 %v6264
      %v6333 = vunpack.c.l.b16 %v6265
      %v6334 = vunpack.c.l.b16 %v6266
      %v6335 = vunpack.c.l.b16 %v6267
      %v6336 = vunpack.c.l.b16 %v6268
      %v6337 = vunpack.c.l.b16 %v6269
      %v6338 = vunpack.c.l.b16 %v6270
      %v6339 = vunpack.c.l.b16 %v6271
      %v6340 = vunpack.c.l.b16 %v6272
      %v6341 = vunpack.c.l.b16 %v6273
      %v6342 = vunpack.c.l.b16 %v6274
      %v6343 = vunpack.c.l.b16 %v6275
      %v6344 = vunpack.c.l.b16 %v6276
      %v6345 = vunpack.c.l.b16 %v6277
      %v6346 = vunpack.c.l.b16 %v6278
      %v6347 = vunpack.c.l.b16 %v6279
      %v6348 = vunpack.c.l.b16 %v6280
      %v6349 = vunpack.c.l.b16 %v6281
      %v6350 = vunpack.c.l.b16 %v6282
      %v6351 = vunpack.c.l.b16 %v6283
      %v6352 = vunpack.c.l.b16 %v6284
      %v6353 = vunpack.c.l.b16 %v6285
      %v6354 = vunpack.c.l.b16 %v6286
      %v6355 = vunpack.c.l.b16 %v6287
      %v6356 = vunpack.c.l.b16 %v6288
      %v6357 = vunpack.c.l.b16 %v6289
      %v6358 = vunpack.c.l.b16 %v6290
      %v6359 = vunpack.c.l.b16 %v6291
      %v6360 = vunpack.c.l.b16 %v6292
      %v6361 = vunpack.c.l.b16 %v6293
      %v6362 = vpack.c.b16 %v6331, %v6330
      %v6363 = vpack.c.b16 %v6333, %v6332
      %v6364 = vpack.c.b16 %v6335, %v6334
      %v6365 = vpack.c.b16 %v6337, %v6336
      %v6366 = vpack.c.b16 %v6339, %v6338
      %v6367 = vpack.c.b16 %v6341, %v6340
      %v6368 = vpack.c.b16 %v6343, %v6342
      %v6369 = vpack.c.b16 %v6345, %v6344
      %v6370 = vpack.c.b16 %v6347, %v6346
      %v6371 = vpack.c.b16 %v6349, %v6348
      %v6372 = vpack.c.b16 %v6351, %v6350
      %v6373 = vpack.c.b16 %v6353, %v6352
      %v6374 = vpack.c.b16 %v6355, %v6354
      %v6375 = vpack.c.b16 %v6357, %v6356
      %v6376 = vpack.c.b16 %v6359, %v6358
      %v6377 = vpack.c.b16 %v6361, %v6360
      %6394 = vmatpush.bf16.msra.mxu0 %v6369
      %6395 = vmatpush.bf16.msra.mxu0 %v6368
      %6396 = vmatpush.bf16.msra.mxu0 %v6367
      %6397 = vmatpush.bf16.msra.mxu0 %v6366
      %6398 = vmatpush.bf16.msra.mxu0 %v6365
      %6399 = vmatpush.bf16.msra.mxu0 %v6364
      %6400 = vmatpush.bf16.msra.mxu0 %v6363
      %6401 = vmatpush.bf16.msra.mxu0 %v6362
      %6402 = vmatmul.bf16.gmra.mxu0 %v6230
      %v6403 = vpop.f32.mrf.mxu0
      %v6404 = vadd.f32 %v6296, %v6403
      %v6405 = vpop.f32.mrf.mxu0
      %v6406 = vadd.f32 %v6296, %v6405
      %6407 = vmatmul.bf16.gmra.mxu0 %v6232
      %v6408 = vpop.f32.mrf.mxu0
      %v6409 = vadd.f32 %v6296, %v6408
      %v6410 = vpop.f32.mrf.mxu0
      %v6411 = vadd.f32 %v6296, %v6410
      %6412 = vmatmul.bf16.gmra.mxu0 %v6234
      %v6413 = vpop.f32.mrf.mxu0
      %v6414 = vadd.f32 %v6296, %v6413
      %v6415 = vpop.f32.mrf.mxu0
      %v6416 = vadd.f32 %v6296, %v6415
      %6417 = vmatmul.bf16.gmra.mxu0 %v6236
      %v6418 = vpop.f32.mrf.mxu0
      %v6419 = vadd.f32 %v6296, %v6418
      %v6420 = vpop.f32.mrf.mxu0
      %v6421 = vadd.f32 %v6296, %v6420
      %6422 = vmatmul.bf16.gmra.mxu0 %v6238
      %v6423 = vpop.f32.mrf.mxu0
      %v6424 = vadd.f32 %v6296, %v6423
      %v6425 = vpop.f32.mrf.mxu0
      %v6426 = vadd.f32 %v6296, %v6425
      %6427 = vmatmul.bf16.gmra.mxu0 %v6240
      %v6428 = vpop.f32.mrf.mxu0
      %v6429 = vadd.f32 %v6296, %v6428
      %v6430 = vpop.f32.mrf.mxu0
      %v6431 = vadd.f32 %v6296, %v6430
      %6432 = vmatmul.bf16.gmra.mxu0 %v6242
      %v6433 = vpop.f32.mrf.mxu0
      %v6434 = vadd.f32 %v6296, %v6433
      %v6435 = vpop.f32.mrf.mxu0
      %v6436 = vadd.f32 %v6296, %v6435
      %6437 = vmatmul.bf16.gmra.mxu0 %v6244
      %v6438 = vpop.f32.mrf.mxu0
      %v6439 = vadd.f32 %v6296, %v6438
      %v6440 = vpop.f32.mrf.mxu0
      %v6441 = vadd.f32 %v6296, %v6440
      %6442 = vmatmul.bf16.gmra.mxu0 %v6246
      %v6443 = vpop.f32.mrf.mxu0
      %v6444 = vadd.f32 %v6296, %v6443
      %v6445 = vpop.f32.mrf.mxu0
      %v6446 = vadd.f32 %v6296, %v6445
      %6447 = vmatmul.bf16.gmra.mxu0 %v6248
      %v6448 = vpop.f32.mrf.mxu0
      %v6449 = vadd.f32 %v6296, %v6448
      %v6450 = vpop.f32.mrf.mxu0
      %v6451 = vadd.f32 %v6296, %v6450
      %6452 = vmatmul.bf16.gmra.mxu0 %v6250
      %v6453 = vpop.f32.mrf.mxu0
      %v6454 = vadd.f32 %v6296, %v6453
      %v6455 = vpop.f32.mrf.mxu0
      %v6456 = vadd.f32 %v6296, %v6455
      %6457 = vmatmul.bf16.gmra.mxu0 %v6252
      %v6458 = vpop.f32.mrf.mxu0
      %v6459 = vadd.f32 %v6296, %v6458
      %v6460 = vpop.f32.mrf.mxu0
      %v6461 = vadd.f32 %v6296, %v6460
      %6462 = vmatmul.bf16.gmra.mxu0 %v6254
      %v6463 = vpop.f32.mrf.mxu0
      %v6464 = vadd.f32 %v6296, %v6463
      %v6465 = vpop.f32.mrf.mxu0
      %v6466 = vadd.f32 %v6296, %v6465
      %6467 = vmatmul.bf16.gmra.mxu0 %v6256
      %v6468 = vpop.f32.mrf.mxu0
      %v6469 = vadd.f32 %v6296, %v6468
      %v6470 = vpop.f32.mrf.mxu0
      %v6471 = vadd.f32 %v6296, %v6470
      %6472 = vmatmul.bf16.gmra.mxu0 %v6258
      %v6473 = vpop.f32.mrf.mxu0
      %v6474 = vadd.f32 %v6296, %v6473
      %v6475 = vpop.f32.mrf.mxu0
      %v6476 = vadd.f32 %v6296, %v6475
      %6477 = vmatmul.bf16.gmra.mxu0 %v6260
      %v6478 = vpop.f32.mrf.mxu0
      %v6479 = vadd.f32 %v6296, %v6478
      %v6480 = vpop.f32.mrf.mxu0
      %v6481 = vadd.f32 %v6296, %v6480
      %6482 = vdwg.mxu0
      %6483 = vmatpush.bf16.msra.mxu0 %v6377
      %6484 = vmatpush.bf16.msra.mxu0 %v6376
      %6485 = vmatpush.bf16.msra.mxu0 %v6375
      %6486 = vmatpush.bf16.msra.mxu0 %v6374
      %6487 = vmatpush.bf16.msra.mxu0 %v6373
      %6488 = vmatpush.bf16.msra.mxu0 %v6372
      %6489 = vmatpush.bf16.msra.mxu0 %v6371
      %6490 = vmatpush.bf16.msra.mxu0 %v6370
      %6491 = vmatmul.bf16.gmra.mxu0 %v6231
      %v6492 = vpop.f32.mrf.mxu0
      %v6493 = vadd.f32 %v6404, %v6492
      %v6494 = vpop.f32.mrf.mxu0
      %v6495 = vadd.f32 %v6406, %v6494
      %6496 = vmatmul.bf16.gmra.mxu0 %v6233
      %v6497 = vpop.f32.mrf.mxu0
      %v6498 = vadd.f32 %v6409, %v6497
      %v6499 = vpop.f32.mrf.mxu0
      %v6500 = vadd.f32 %v6411, %v6499
      %6501 = vmatmul.bf16.gmra.mxu0 %v6235
      %v6502 = vpop.f32.mrf.mxu0
      %v6503 = vadd.f32 %v6414, %v6502
      %v6504 = vpop.f32.mrf.mxu0
      %v6505 = vadd.f32 %v6416, %v6504
      %6506 = vmatmul.bf16.gmra.mxu0 %v6237
      %v6507 = vpop.f32.mrf.mxu0
      %v6508 = vadd.f32 %v6419, %v6507
      %v6509 = vpop.f32.mrf.mxu0
      %v6510 = vadd.f32 %v6421, %v6509
      %6511 = vmatmul.bf16.gmra.mxu0 %v6239
      %v6512 = vpop.f32.mrf.mxu0
      %v6513 = vadd.f32 %v6424, %v6512
      %v6514 = vpop.f32.mrf.mxu0
      %v6515 = vadd.f32 %v6426, %v6514
      %6516 = vmatmul.bf16.gmra.mxu0 %v6241
      %v6517 = vpop.f32.mrf.mxu0
      %v6518 = vadd.f32 %v6429, %v6517
      %v6519 = vpop.f32.mrf.mxu0
      %v6520 = vadd.f32 %v6431, %v6519
      %6521 = vmatmul.bf16.gmra.mxu0 %v6243
      %v6522 = vpop.f32.mrf.mxu0
      %v6523 = vadd.f32 %v6434, %v6522
      %v6524 = vpop.f32.mrf.mxu0
      %v6525 = vadd.f32 %v6436, %v6524
      %6526 = vmatmul.bf16.gmra.mxu0 %v6245
      %v6527 = vpop.f32.mrf.mxu0
      %v6528 = vadd.f32 %v6439, %v6527
      %v6529 = vpop.f32.mrf.mxu0
      %v6530 = vadd.f32 %v6441, %v6529
      %6531 = vmatmul.bf16.gmra.mxu0 %v6247
      %v6532 = vpop.f32.mrf.mxu0
      %v6533 = vadd.f32 %v6444, %v6532
      %v6534 = vpop.f32.mrf.mxu0
      %v6535 = vadd.f32 %v6446, %v6534
      %6536 = vmatmul.bf16.gmra.mxu0 %v6249
      %v6537 = vpop.f32.mrf.mxu0
      %v6538 = vadd.f32 %v6449, %v6537
      %v6539 = vpop.f32.mrf.mxu0
      %v6540 = vadd.f32 %v6451, %v6539
      %6541 = vmatmul.bf16.gmra.mxu0 %v6251
      %v6542 = vpop.f32.mrf.mxu0
      %v6543 = vadd.f32 %v6454, %v6542
      %v6544 = vpop.f32.mrf.mxu0
      %v6545 = vadd.f32 %v6456, %v6544
      %6546 = vmatmul.bf16.gmra.mxu0 %v6253
      %v6547 = vpop.f32.mrf.mxu0
      %v6548 = vadd.f32 %v6459, %v6547
      %v6549 = vpop.f32.mrf.mxu0
      %v6550 = vadd.f32 %v6461, %v6549
      %6551 = vmatmul.bf16.gmra.mxu0 %v6255
      %v6552 = vpop.f32.mrf.mxu0
      %v6553 = vadd.f32 %v6464, %v6552
      %v6554 = vpop.f32.mrf.mxu0
      %v6555 = vadd.f32 %v6466, %v6554
      %6556 = vmatmul.bf16.gmra.mxu0 %v6257
      %v6557 = vpop.f32.mrf.mxu0
      %v6558 = vadd.f32 %v6469, %v6557
      %v6559 = vpop.f32.mrf.mxu0
      %v6560 = vadd.f32 %v6471, %v6559
      %6561 = vmatmul.bf16.gmra.mxu0 %v6259
      %v6562 = vpop.f32.mrf.mxu0
      %v6563 = vadd.f32 %v6474, %v6562
      %v6564 = vpop.f32.mrf.mxu0
      %v6565 = vadd.f32 %v6476, %v6564
      %6566 = vmatmul.bf16.gmra.mxu0 %v6261
      %v6567 = vpop.f32.mrf.mxu0
      %v6568 = vadd.f32 %v6479, %v6567
      %v6569 = vpop.f32.mrf.mxu0
      %v6570 = vadd.f32 %v6481, %v6569
      %6571 = vdwg.mxu0
      %v6572 = vpack.c.bf16 %v6493, %v6493
      %v6573 = vpack.c.bf16 %v6495, %v6495
      %v6574 = vpack.c.bf16 %v6498, %v6498
      %v6575 = vpack.c.bf16 %v6500, %v6500
      %v6576 = vpack.c.bf16 %v6503, %v6503
      %v6577 = vpack.c.bf16 %v6505, %v6505
      %v6578 = vpack.c.bf16 %v6508, %v6508
      %v6579 = vpack.c.bf16 %v6510, %v6510
      %v6580 = vpack.c.bf16 %v6513, %v6513
      %v6581 = vpack.c.bf16 %v6515, %v6515
      %v6582 = vpack.c.bf16 %v6518, %v6518
      %v6583 = vpack.c.bf16 %v6520, %v6520
      %v6584 = vpack.c.bf16 %v6523, %v6523
      %v6585 = vpack.c.bf16 %v6525, %v6525
      %v6586 = vpack.c.bf16 %v6528, %v6528
      %v6587 = vpack.c.bf16 %v6530, %v6530
      %v6588 = vpack.c.bf16 %v6533, %v6533
      %v6589 = vpack.c.bf16 %v6535, %v6535
      %v6590 = vpack.c.bf16 %v6538, %v6538
      %v6591 = vpack.c.bf16 %v6540, %v6540
      %v6592 = vpack.c.bf16 %v6543, %v6543
      %v6593 = vpack.c.bf16 %v6545, %v6545
      %v6594 = vpack.c.bf16 %v6548, %v6548
      %v6595 = vpack.c.bf16 %v6550, %v6550
      %v6596 = vpack.c.bf16 %v6553, %v6553
      %v6597 = vpack.c.bf16 %v6555, %v6555
      %v6598 = vpack.c.bf16 %v6558, %v6558
      %v6599 = vpack.c.bf16 %v6560, %v6560
      %v6600 = vpack.c.bf16 %v6563, %v6563
      %v6601 = vpack.c.bf16 %v6565, %v6565
      %v6602 = vpack.c.bf16 %v6568, %v6568
      %v6603 = vpack.c.bf16 %v6570, %v6570
      %6604 = vst.msk [vmem:[%s251] sm:$0xf] %vm445, %v6572
      %6605 = vst.msk [vmem:[%s251 + $0x4] sm:$0xf] %vm445, %v6573
      %6606 = vst.msk [vmem:[%s251 + $0x8] sm:$0xf] %vm445, %v6574
      %6607 = vst.msk [vmem:[%s251 + $0xc] sm:$0xf] %vm445, %v6575
      %6608 = vst.msk [vmem:[%s251 + $0x10] sm:$0xf] %vm445, %v6576
      %6609 = vst.msk [vmem:[%s251 + $0x14] sm:$0xf] %vm445, %v6577
      %6610 = vst.msk [vmem:[%s251 + $0x18] sm:$0xf] %vm445, %v6578
      %6611 = vst.msk [vmem:[%s251 + $0x1c] sm:$0xf] %vm445, %v6579
      %6612 = vst.msk [vmem:[%s251 + $0x20] sm:$0xf] %vm445, %v6580
      %6613 = vst.msk [vmem:[%s251 + $0x24] sm:$0xf] %vm445, %v6581
      %6614 = vst.msk [vmem:[%s251 + $0x28] sm:$0xf] %vm445, %v6582
      %6615 = vst.msk [vmem:[%s251 + $0x2c] sm:$0xf] %vm445, %v6583
      %6616 = vst.msk [vmem:[%s251 + $0x30] sm:$0xf] %vm445, %v6584
      %6617 = vst.msk [vmem:[%s251 + $0x34] sm:$0xf] %vm445, %v6585
      %6618 = vst.msk [vmem:[%s251 + $0x38] sm:$0xf] %vm445, %v6586
      %6619 = vst.msk [vmem:[%s251 + $0x3c] sm:$0xf] %vm445, %v6587
      %6620 = vst.msk [vmem:[%s251 + $0x40] sm:$0xf] %vm445, %v6588
      %6621 = vst.msk [vmem:[%s251 + $0x44] sm:$0xf] %vm445, %v6589
      %6622 = vst.msk [vmem:[%s251 + $0x48] sm:$0xf] %vm445, %v6590
      %6623 = vst.msk [vmem:[%s251 + $0x4c] sm:$0xf] %vm445, %v6591
      %6624 = vst.msk [vmem:[%s251 + $0x50] sm:$0xf] %vm445, %v6592
      %6625 = vst.msk [vmem:[%s251 + $0x54] sm:$0xf] %vm445, %v6593
      %6626 = vst.msk [vmem:[%s251 + $0x58] sm:$0xf] %vm445, %v6594
      %6627 = vst.msk [vmem:[%s251 + $0x5c] sm:$0xf] %vm445, %v6595
      %6628 = vst.msk [vmem:[%s251 + $0x60] sm:$0xf] %vm445, %v6596
      %6629 = vst.msk [vmem:[%s251 + $0x64] sm:$0xf] %vm445, %v6597
      %6630 = vst.msk [vmem:[%s251 + $0x68] sm:$0xf] %vm445, %v6598
      %6631 = vst.msk [vmem:[%s251 + $0x6c] sm:$0xf] %vm445, %v6599
      %6632 = vst.msk [vmem:[%s251 + $0x70] sm:$0xf] %vm445, %v6600
      %6633 = vst.msk [vmem:[%s251 + $0x74] sm:$0xf] %vm445, %v6601
      %6634 = vst.msk [vmem:[%s251 + $0x78] sm:$0xf] %vm445, %v6602
      %6635 = vst.msk [vmem:[%s251 + $0x7c] sm:$0xf] %vm445, %v6603
      %p6636 = scmp.lt.s32.totalorder %s17, 1
      %s6637 = scalar_select %p6636, %s17, 1
      %s6638 = smul.addr %s6637, 32
      %s6639 = smul.addr %s6638, 4
      %s6640 = scalar_lea.vmem %s6, %s6639
      // Predicated region
      $region45: #{tpu_custom_call.1} parent=43 // pred_check
        %p6641 = pneg %p166
      $region46: #{tpu_custom_call.1} parent=43 // pred_check_branch
        %6643 = sbr.rel (%p6641) target = $region48
      $region47: #{tpu_custom_call.1} parent=43 // pred_region
        _
      $region48: #{tpu_custom_call.1} parent=43 // pred_fallthru
        _
    $region44: #{tpu_custom_call.1} parent=5 // pred_fallthru
      _
    %p6644 = scmp.le.s32.totalorder 2, %s12
    // Predicated region
    $region49: #{tpu_custom_call.1} parent=5 // pred_check
      %p6645 = pneg %p6644
    $region50: #{tpu_custom_call.1} parent=5 // pred_check_branch
      %6647 = sbr.rel (%p6645) target = $region52
    $region51: #{tpu_custom_call.1} parent=5 // pred_region
      %s6648 = ssub.s32 %s12, 2
      // Predicated region
      $region53: #{tpu_custom_call.1} parent=51 // pred_check
        %p6649 = pneg %p172
      $region54: #{tpu_custom_call.1} parent=51 // pred_check_branch
        %6651 = sbr.rel (%p6649) target = $region56
      $region55: #{tpu_custom_call.1} parent=51 // pred_region
        %p6652 = scmp.lt.s32.totalorder %s18, 1
        %s6653 = scalar_select %p6652, %s18, 1
        %s6654 = smul.addr %s6653, 32
        %s6655 = smul.addr %s6654, 4
        %s6656 = scalar_lea.vmem %s6, %s6655
      $region56: #{tpu_custom_call.1} parent=51 // pred_fallthru
        _
    $region52: #{tpu_custom_call.1} parent=5 // pred_fallthru
      _
  $region6: #{tpu_custom_call.1} parent=0 // loop_footer
    %s16 = sadd.s32 1, %s12
  $region7: #{tpu_custom_call.1} parent=0 // loop_footer_branch
    %11 = sbr.rel target = $region3
  $region8: #{tpu_custom_call.1} parent=0 // loop_exit
    _

</llo_original>
